<compile_context>
chip_gen: v6e
topology: v6e:2x2x1
jax: 0.10.0
libtpu: 0.0.40
codegen_flags: <defaults>
</compile_context>

<pallas_src>
import functools

import jax
import jax.numpy as jnp
from jax.experimental import pallas as pl
from jax.experimental.pallas import tpu as pltpu


# -----------------------------------------------------------------------------
# Pallas kernel: one invocation per batch block
#   x_ref    : (T, BB, E)  time-major clicked-history block
#   wx_ref   : (E, 4H)     LSTM input weights (transposed, gate order i,f,g,o)
#   wh_ref   : (H, 4H)     LSTM recurrent weights (transposed)
#   b_ref    : (1, 4H)     b_ih + b_hh
#   wfc_ref  : (T*H, O)    FC weights (transposed)
#   bfc_ref  : (1, O)      FC bias
#   bns_ref  : (1, O)      folded BatchNorm scale  = gamma / sqrt(var + eps)
#   bnb_ref  : (1, O)      folded BatchNorm shift  = beta - mean * scale
#   out_ref  : (BB, O)
#   hhist_sc : (BB, T*H)   VMEM scratch holding the concatenated h_t history
# -----------------------------------------------------------------------------
def _news_rec_kernel(x_ref, wx_ref, wh_ref, b_ref, wfc_ref, bfc_ref,
                     bns_ref, bnb_ref, out_ref, hhist_sc):
    T, BB, E = x_ref.shape
    H = wh_ref.shape[0]

    # ---- 1) input projection for ALL timesteps in one MXU matmul -------------
    # (T, BB, E) -> (T*BB, E); row t*BB + b is timestep t, batch row b.
    x2d = x_ref[...].reshape(T * BB, E)
    gx = jnp.dot(x2d, wx_ref[...], preferred_element_type=jnp.float32)
    gx = gx + b_ref[...]                                   # broadcast (1, 4H)

    # ---- 2) serial LSTM recurrence (statically unrolled) ---------------------
    # Only the small h @ Wh matmul sits on the serial dependency chain.
    h = jnp.zeros((BB, H), jnp.float32)
    c = jnp.zeros((BB, H), jnp.float32)
    for t in range(T):                                     # T is static & small
        gates = gx[t * BB:(t + 1) * BB, :] + jnp.dot(
            h, wh_ref[...], preferred_element_type=jnp.float32)
        # PyTorch gate order [i, f, g, o]; H chosen 128-aligned -> lane-aligned slices
        i_g = jax.nn.sigmoid(gates[:, 0 * H:1 * H])
        f_g = jax.nn.sigmoid(gates[:, 1 * H:2 * H])
        g_g = jnp.tanh(gates[:, 2 * H:3 * H])
        o_g = jax.nn.sigmoid(gates[:, 3 * H:4 * H])
        c = f_g * c + i_g * g_g
        h = o_g * jnp.tanh(c)
        hhist_sc[:, t * H:(t + 1) * H] = h                 # static, lane-aligned store

    # ---- 3) Linear (single K = T*H matmul) + BatchNorm(eval) + Sigmoid -------
    y = jnp.dot(hhist_sc[...], wfc_ref[...], preferred_element_type=jnp.float32)
    y = y + bfc_ref[...]
    y = y * bns_ref[...] + bnb_ref[...]                    # folded BN; Dropout = id
    out_ref[...] = jax.nn.sigmoid(y).astype(out_ref.dtype)


# -----------------------------------------------------------------------------
# Wrapper
# -----------------------------------------------------------------------------
@functools.partial(jax.jit, static_argnames=("batch_block",))
def news_rec_forward(x_clicked, params, *, batch_block=8):
    """x_clicked: (B, T, E) float32 (batch_first, like the PyTorch module)."""
    B, T, E = x_clicked.shape
    H = params["w_hh"].shape[1]          # w_hh: (4H, H)
    O = params["w_fc"].shape[0]          # w_fc: (O, T*H)
    eps = 1e-5

    # Pad batch to a sublane-aligned multiple of the batch block.
    BB = max(8, batch_block)
    B_pad = ((B + BB - 1) // BB) * BB
    if B_pad != B:
        x_clicked = jnp.pad(x_clicked, ((0, B_pad - B), (0, 0), (0, 0)))

    # Parameter re-layout (plain JAX glue, done once per call).
    wx = params["w_ih"].T                                   # (E, 4H)
    wh = params["w_hh"].T                                   # (H, 4H)
    b = (params["b_ih"] + params["b_hh"])[None, :]          # (1, 4H)
    wfc = params["w_fc"].T                                  # (T*H, O)
    bfc = params["b_fc"][None, :]                           # (1, O)
    bn_scale = (params["gamma"] *
                jax.lax.rsqrt(params["running_var"] + eps))[None, :]   # (1, O)
    bn_shift = (params["beta"] -
                params["running_mean"] * bn_scale[0])[None, :]         # (1, O)

    x_tm = jnp.transpose(x_clicked, (1, 0, 2))              # time-major (T, B_pad, E)

    grid_spec = pltpu.PrefetchScalarGridSpec(
        num_scalar_prefetch=0,
        grid=(B_pad // BB,),                                # batch blocks only
        in_specs=[
            pl.BlockSpec((T, BB, E), lambda bb: (0, bb, 0)),     # x (time-major)
            pl.BlockSpec((E, 4 * H), lambda bb: (0, 0)),         # Wx   (resident)
            pl.BlockSpec((H, 4 * H), lambda bb: (0, 0)),         # Wh   (resident)
            pl.BlockSpec((1, 4 * H), lambda bb: (0, 0)),         # bias (resident)
            pl.BlockSpec((T * H, O), lambda bb: (0, 0)),         # W_fc (resident)
            pl.BlockSpec((1, O), lambda bb: (0, 0)),             # b_fc
            pl.BlockSpec((1, O), lambda bb: (0, 0)),             # BN scale
            pl.BlockSpec((1, O), lambda bb: (0, 0)),             # BN shift
        ],
        out_specs=pl.BlockSpec((BB, O), lambda bb: (bb, 0)),
        scratch_shapes=[
            pltpu.VMEM((BB, T * H), jnp.float32),                # h-history
        ],
    )

    out = pl.pallas_call(
        _news_rec_kernel,
        out_shape=jax.ShapeDtypeStruct((B_pad, O), jnp.float32),
        grid_spec=grid_spec,
        compiler_params=pltpu.CompilerParams(
            dimension_semantics=("parallel",)),                  # batch across TCs (v7x)
    )(x_tm, wx, wh, b, wfc, bfc, bn_scale, bn_shift)

    return out[:B]


# -----------------------------------------------------------------------------
# Pure-JAX reference (for correctness check)
# -----------------------------------------------------------------------------
def news_rec_reference(x_clicked, params):
    B, T, E = x_clicked.shape
    H = params["w_hh"].shape[1]
    eps = 1e-5

    def step(carry, x_t):
        h, c = carry
        gates = (x_t @ params["w_ih"].T + params["b_ih"]
                 + h @ params["w_hh"].T + params["b_hh"])
        i = jax.nn.sigmoid(gates[:, 0 * H:1 * H])
        f = jax.nn.sigmoid(gates[:, 1 * H:2 * H])
        g = jnp.tanh(gates[:, 2 * H:3 * H])
        o = jax.nn.sigmoid(gates[:, 3 * H:4 * H])
        c = f * c + i * g
        h = o * jnp.tanh(c)
        return (h, c), h

    h0 = jnp.zeros((B, H), jnp.float32)
    c0 = jnp.zeros((B, H), jnp.float32)
    (_, _), hs = jax.lax.scan(step, (h0, c0), jnp.transpose(x_clicked, (1, 0, 2)))
    lstm_out = jnp.transpose(hs, (1, 0, 2))          # (B, T, H)
    flat = lstm_out.reshape(B, -1)                   # (B, T*H)
    y = flat @ params["w_fc"].T + params["b_fc"]
    y = ((y - params["running_mean"])
         / jnp.sqrt(params["running_var"] + eps)) * params["gamma"] + params["beta"]
    return jax.nn.sigmoid(y)                         # Dropout = identity (eval)


# -----------------------------------------------------------------------------
# Main
# -----------------------------------------------------------------------------
if __name__ == "__main__":
    # Small, hardware-friendly shapes consistent with the module structure
    # (real model: T=35, E=768, H=384, O=768).  B=6 exercises the pad path.
    B, T, E, H, O = 6, 8, 128, 128, 128

    key = jax.random.PRNGKey(0)
    ks = jax.random.split(key, 8)
    s_lstm = 1.0 / jnp.sqrt(H)
    s_fc = 1.0 / jnp.sqrt(T * H)

    params = {
        "w_ih": jax.random.uniform(ks[0], (4 * H, E), jnp.float32, -s_lstm, s_lstm),
        "w_hh": jax.random.uniform(ks[1], (4 * H, H), jnp.float32, -s_lstm, s_lstm),
        "b_ih": jax.random.uniform(ks[2], (4 * H,), jnp.float32, -s_lstm, s_lstm),
        "b_hh": jax.random.uniform(ks[3], (4 * H,), jnp.float32, -s_lstm, s_lstm),
        "w_fc": jax.random.uniform(ks[4], (O, T * H), jnp.float32, -s_fc, s_fc),
        "b_fc": jax.random.uniform(ks[5], (O,), jnp.float32, -s_fc, s_fc),
        "gamma": jnp.ones((O,), jnp.float32),
        "beta": jnp.zeros((O,), jnp.float32),
        "running_mean": jnp.zeros((O,), jnp.float32),
        "running_var": jnp.ones((O,), jnp.float32),
    }

    x_clicked = jax.random.normal(ks[6], (B, T, E), jnp.float32)

    out = news_rec_forward(x_clicked, params)
    out = jax.block_until_ready(out)

    ref = news_rec_reference(x_clicked, params)
    assert out.shape == (B, O)
    assert jnp.allclose(out, ref, atol=1e-4, rtol=1e-4), "mismatch vs reference"

    print("KERNEL_OK")
</pallas_src>

<mosaic_0001>
module attributes {stable_mosaic.version = 11 : i64} {
  func.func @_news_rec_kernel(%arg0: i32, %arg1: memref<8x8x128xf32, #tpu.memory_space<vmem>>, %arg2: memref<128x512xf32, #tpu.memory_space<vmem>>, %arg3: memref<128x512xf32, #tpu.memory_space<vmem>>, %arg4: memref<1x512xf32, #tpu.memory_space<vmem>>, %arg5: memref<1024x128xf32, #tpu.memory_space<vmem>>, %arg6: memref<1x128xf32, #tpu.memory_space<vmem>>, %arg7: memref<1x128xf32, #tpu.memory_space<vmem>>, %arg8: memref<1x128xf32, #tpu.memory_space<vmem>>, %arg9: memref<8x128xf32, #tpu.memory_space<vmem>>, %arg10: memref<8x1024xf32, #tpu.memory_space<vmem>>) attributes {dimension_semantics = [#tpu.dimension_semantics<parallel>], iteration_bounds = array<i64: 1>, scalar_prefetch = 0 : i64, scratch_operands = 1 : i64, tpu.core_type = #tpu.core_type<tc>, window_params = [{transform_indices = @transform_0, window_bounds = array<i64: 8, 8, 128>}, {pipeline_mode = #tpu.pipeline_mode<synchronous>, transform_indices = @transform_1, window_bounds = array<i64: 128, 512>}, {pipeline_mode = #tpu.pipeline_mode<synchronous>, transform_indices = @transform_2, window_bounds = array<i64: 128, 512>}, {pipeline_mode = #tpu.pipeline_mode<synchronous>, transform_indices = @transform_3, window_bounds = array<i64: 1, 512>}, {pipeline_mode = #tpu.pipeline_mode<synchronous>, transform_indices = @transform_4, window_bounds = array<i64: 1024, 128>}, {pipeline_mode = #tpu.pipeline_mode<synchronous>, transform_indices = @transform_5, window_bounds = array<i64: 1, 128>}, {pipeline_mode = #tpu.pipeline_mode<synchronous>, transform_indices = @transform_6, window_bounds = array<i64: 1, 128>}, {pipeline_mode = #tpu.pipeline_mode<synchronous>, transform_indices = @transform_7, window_bounds = array<i64: 1, 128>}, {transform_indices = @transform_8, window_bounds = array<i64: 8, 128>}]} {
    %c0 = arith.constant 0 : index
    %c0_0 = arith.constant 0 : index
    %c0_1 = arith.constant 0 : index
    %0 = vector.load %arg1[%c0, %c0_0, %c0_1] : memref<8x8x128xf32, #tpu.memory_space<vmem>>, vector<8x8x128xf32>
    %1 = vector.shape_cast %0 : vector<8x8x128xf32> to vector<64x128xf32>
    %c0_2 = arith.constant 0 : index
    %c0_3 = arith.constant 0 : index
    %2 = vector.load %arg2[%c0_2, %c0_3] : memref<128x512xf32, #tpu.memory_space<vmem>>, vector<128x512xf32>
    %cst = arith.constant dense<0.000000e+00> : vector<64x512xf32>
    %3 = tpu.matmul %1, %2, %cst {dimension_numbers = #tpu.dot_dimension_numbers<[1], [0], [0], [1], [0, 0, 1, 1], [], []>} : vector<64x128xf32>, vector<128x512xf32>, vector<64x512xf32> -> vector<64x512xf32>
    %c0_4 = arith.constant 0 : index
    %c0_5 = arith.constant 0 : index
    %4 = vector.load %arg4[%c0_4, %c0_5] : memref<1x512xf32, #tpu.memory_space<vmem>>, vector<1x512xf32>
    %5 = vector.broadcast %4 : vector<1x512xf32> to vector<64x512xf32>
    %6 = arith.addf %3, %5 : vector<64x512xf32>
    %cst_6 = arith.constant 0.000000e+00 : f32
    %7 = vector.broadcast %cst_6 : f32 to vector<8x128xf32>
    %cst_7 = arith.constant 0.000000e+00 : f32
    %8 = vector.broadcast %cst_7 : f32 to vector<8x128xf32>
    %9 = vector.extract_strided_slice %6 {offsets = [0, 0], sizes = [8, 512], strides = [1, 1]} : vector<64x512xf32> to vector<8x512xf32>
    %c0_8 = arith.constant 0 : index
    %c0_9 = arith.constant 0 : index
    %10 = vector.load %arg3[%c0_8, %c0_9] : memref<128x512xf32, #tpu.memory_space<vmem>>, vector<128x512xf32>
    %cst_10 = arith.constant dense<0.000000e+00> : vector<8x512xf32>
    %11 = tpu.matmul %7, %10, %cst_10 {dimension_numbers = #tpu.dot_dimension_numbers<[1], [0], [0], [1], [0, 0, 1, 1], [], []>} : vector<8x128xf32>, vector<128x512xf32>, vector<8x512xf32> -> vector<8x512xf32>
    %12 = arith.addf %9, %11 : vector<8x512xf32>
    %13 = vector.extract_strided_slice %12 {offsets = [0, 0], sizes = [8, 128], strides = [1, 1]} : vector<8x512xf32> to vector<8x128xf32>
    %14 = arith.negf %13 : vector<8x128xf32>
    %15 = math.exp %14 : vector<8x128xf32>
    %cst_11 = arith.constant 1.000000e+00 : f32
    %16 = vector.broadcast %cst_11 : f32 to vector<8x128xf32>
    %17 = arith.addf %16, %15 : vector<8x128xf32>
    %18 = arith.divf %16, %17 : vector<8x128xf32>
    %19 = vector.extract_strided_slice %12 {offsets = [0, 128], sizes = [8, 128], strides = [1, 1]} : vector<8x512xf32> to vector<8x128xf32>
    %20 = arith.negf %19 : vector<8x128xf32>
    %21 = math.exp %20 : vector<8x128xf32>
    %cst_12 = arith.constant 1.000000e+00 : f32
    %22 = vector.broadcast %cst_12 : f32 to vector<8x128xf32>
    %23 = arith.addf %22, %21 : vector<8x128xf32>
    %24 = arith.divf %22, %23 : vector<8x128xf32>
    %25 = vector.extract_strided_slice %12 {offsets = [0, 256], sizes = [8, 128], strides = [1, 1]} : vector<8x512xf32> to vector<8x128xf32>
    %26 = math.tanh %25 : vector<8x128xf32>
    %27 = vector.extract_strided_slice %12 {offsets = [0, 384], sizes = [8, 128], strides = [1, 1]} : vector<8x512xf32> to vector<8x128xf32>
    %28 = arith.negf %27 : vector<8x128xf32>
    %29 = math.exp %28 : vector<8x128xf32>
    %cst_13 = arith.constant 1.000000e+00 : f32
    %30 = vector.broadcast %cst_13 : f32 to vector<8x128xf32>
    %31 = arith.addf %30, %29 : vector<8x128xf32>
    %32 = arith.divf %30, %31 : vector<8x128xf32>
    %33 = arith.mulf %24, %8 : vector<8x128xf32>
    %34 = arith.mulf %18, %26 : vector<8x128xf32>
    %35 = arith.addf %33, %34 : vector<8x128xf32>
    %36 = math.tanh %35 : vector<8x128xf32>
    %37 = arith.mulf %32, %36 : vector<8x128xf32>
    %c0_14 = arith.constant 0 : index
    %c0_15 = arith.constant 0 : index
    %38 = vector.load %arg10[%c0_14, %c0_15] : memref<8x1024xf32, #tpu.memory_space<vmem>>, vector<8x128xf32>
    tpu.vector_store %arg10[%c0_14, %c0_15], %37 {strides = array<i32>} : memref<8x1024xf32, #tpu.memory_space<vmem>>, vector<8x128xf32>,
    %39 = vector.extract_strided_slice %6 {offsets = [8, 0], sizes = [8, 512], strides = [1, 1]} : vector<64x512xf32> to vector<8x512xf32>
    %c0_16 = arith.constant 0 : index
    %c0_17 = arith.constant 0 : index
    %40 = vector.load %arg3[%c0_16, %c0_17] : memref<128x512xf32, #tpu.memory_space<vmem>>, vector<128x512xf32>
    %cst_18 = arith.constant dense<0.000000e+00> : vector<8x512xf32>
    %41 = tpu.matmul %37, %40, %cst_18 {dimension_numbers = #tpu.dot_dimension_numbers<[1], [0], [0], [1], [0, 0, 1, 1], [], []>} : vector<8x128xf32>, vector<128x512xf32>, vector<8x512xf32> -> vector<8x512xf32>
    %42 = arith.addf %39, %41 : vector<8x512xf32>
    %43 = vector.extract_strided_slice %42 {offsets = [0, 0], sizes = [8, 128], strides = [1, 1]} : vector<8x512xf32> to vector<8x128xf32>
    %44 = arith.negf %43 : vector<8x128xf32>
    %45 = math.exp %44 : vector<8x128xf32>
    %cst_19 = arith.constant 1.000000e+00 : f32
    %46 = vector.broadcast %cst_19 : f32 to vector<8x128xf32>
    %47 = arith.addf %46, %45 : vector<8x128xf32>
    %48 = arith.divf %46, %47 : vector<8x128xf32>
    %49 = vector.extract_strided_slice %42 {offsets = [0, 128], sizes = [8, 128], strides = [1, 1]} : vector<8x512xf32> to vector<8x128xf32>
    %50 = arith.negf %49 : vector<8x128xf32>
    %51 = math.exp %50 : vector<8x128xf32>
    %cst_20 = arith.constant 1.000000e+00 : f32
    %52 = vector.broadcast %cst_20 : f32 to vector<8x128xf32>
    %53 = arith.addf %52, %51 : vector<8x128xf32>
    %54 = arith.divf %52, %53 : vector<8x128xf32>
    %55 = vector.extract_strided_slice %42 {offsets = [0, 256], sizes = [8, 128], strides = [1, 1]} : vector<8x512xf32> to vector<8x128xf32>
    %56 = math.tanh %55 : vector<8x128xf32>
    %57 = vector.extract_strided_slice %42 {offsets = [0, 384], sizes = [8, 128], strides = [1, 1]} : vector<8x512xf32> to vector<8x128xf32>
    %58 = arith.negf %57 : vector<8x128xf32>
    %59 = math.exp %58 : vector<8x128xf32>
    %cst_21 = arith.constant 1.000000e+00 : f32
    %60 = vector.broadcast %cst_21 : f32 to vector<8x128xf32>
    %61 = arith.addf %60, %59 : vector<8x128xf32>
    %62 = arith.divf %60, %61 : vector<8x128xf32>
    %63 = arith.mulf %54, %35 : vector<8x128xf32>
    %64 = arith.mulf %48, %56 : vector<8x128xf32>
    %65 = arith.addf %63, %64 : vector<8x128xf32>
    %66 = math.tanh %65 : vector<8x128xf32>
    %67 = arith.mulf %62, %66 : vector<8x128xf32>
    %c0_22 = arith.constant 0 : index
    %c128 = arith.constant 128 : index
    %68 = vector.load %arg10[%c0_22, %c128] : memref<8x1024xf32, #tpu.memory_space<vmem>>, vector<8x128xf32>
    tpu.vector_store %arg10[%c0_22, %c128], %67 {strides = array<i32>} : memref<8x1024xf32, #tpu.memory_space<vmem>>, vector<8x128xf32>,
    %69 = vector.extract_strided_slice %6 {offsets = [16, 0], sizes = [8, 512], strides = [1, 1]} : vector<64x512xf32> to vector<8x512xf32>
    %c0_23 = arith.constant 0 : index
    %c0_24 = arith.constant 0 : index
    %70 = vector.load %arg3[%c0_23, %c0_24] : memref<128x512xf32, #tpu.memory_space<vmem>>, vector<128x512xf32>
    %cst_25 = arith.constant dense<0.000000e+00> : vector<8x512xf32>
    %71 = tpu.matmul %67, %70, %cst_25 {dimension_numbers = #tpu.dot_dimension_numbers<[1], [0], [0], [1], [0, 0, 1, 1], [], []>} : vector<8x128xf32>, vector<128x512xf32>, vector<8x512xf32> -> vector<8x512xf32>
    %72 = arith.addf %69, %71 : vector<8x512xf32>
    %73 = vector.extract_strided_slice %72 {offsets = [0, 0], sizes = [8, 128], strides = [1, 1]} : vector<8x512xf32> to vector<8x128xf32>
    %74 = arith.negf %73 : vector<8x128xf32>
    %75 = math.exp %74 : vector<8x128xf32>
    %cst_26 = arith.constant 1.000000e+00 : f32
    %76 = vector.broadcast %cst_26 : f32 to vector<8x128xf32>
    %77 = arith.addf %76, %75 : vector<8x128xf32>
    %78 = arith.divf %76, %77 : vector<8x128xf32>
    %79 = vector.extract_strided_slice %72 {offsets = [0, 128], sizes = [8, 128], strides = [1, 1]} : vector<8x512xf32> to vector<8x128xf32>
    %80 = arith.negf %79 : vector<8x128xf32>
    %81 = math.exp %80 : vector<8x128xf32>
    %cst_27 = arith.constant 1.000000e+00 : f32
    %82 = vector.broadcast %cst_27 : f32 to vector<8x128xf32>
    %83 = arith.addf %82, %81 : vector<8x128xf32>
    %84 = arith.divf %82, %83 : vector<8x128xf32>
    %85 = vector.extract_strided_slice %72 {offsets = [0, 256], sizes = [8, 128], strides = [1, 1]} : vector<8x512xf32> to vector<8x128xf32>
    %86 = math.tanh %85 : vector<8x128xf32>
    %87 = vector.extract_strided_slice %72 {offsets = [0, 384], sizes = [8, 128], strides = [1, 1]} : vector<8x512xf32> to vector<8x128xf32>
    %88 = arith.negf %87 : vector<8x128xf32>
    %89 = math.exp %88 : vector<8x128xf32>
    %cst_28 = arith.constant 1.000000e+00 : f32
    %90 = vector.broadcast %cst_28 : f32 to vector<8x128xf32>
    %91 = arith.addf %90, %89 : vector<8x128xf32>
    %92 = arith.divf %90, %91 : vector<8x128xf32>
    %93 = arith.mulf %84, %65 : vector<8x128xf32>
    %94 = arith.mulf %78, %86 : vector<8x128xf32>
    %95 = arith.addf %93, %94 : vector<8x128xf32>
    %96 = math.tanh %95 : vector<8x128xf32>
    %97 = arith.mulf %92, %96 : vector<8x128xf32>
    %c0_29 = arith.constant 0 : index
    %c256 = arith.constant 256 : index
    %98 = vector.load %arg10[%c0_29, %c256] : memref<8x1024xf32, #tpu.memory_space<vmem>>, vector<8x128xf32>
    tpu.vector_store %arg10[%c0_29, %c256], %97 {strides = array<i32>} : memref<8x1024xf32, #tpu.memory_space<vmem>>, vector<8x128xf32>,
    %99 = vector.extract_strided_slice %6 {offsets = [24, 0], sizes = [8, 512], strides = [1, 1]} : vector<64x512xf32> to vector<8x512xf32>
    %c0_30 = arith.constant 0 : index
    %c0_31 = arith.constant 0 : index
    %100 = vector.load %arg3[%c0_30, %c0_31] : memref<128x512xf32, #tpu.memory_space<vmem>>, vector<128x512xf32>
    %cst_32 = arith.constant dense<0.000000e+00> : vector<8x512xf32>
    %101 = tpu.matmul %97, %100, %cst_32 {dimension_numbers = #tpu.dot_dimension_numbers<[1], [0], [0], [1], [0, 0, 1, 1], [], []>} : vector<8x128xf32>, vector<128x512xf32>, vector<8x512xf32> -> vector<8x512xf32>
    %102 = arith.addf %99, %101 : vector<8x512xf32>
    %103 = vector.extract_strided_slice %102 {offsets = [0, 0], sizes = [8, 128], strides = [1, 1]} : vector<8x512xf32> to vector<8x128xf32>
    %104 = arith.negf %103 : vector<8x128xf32>
    %105 = math.exp %104 : vector<8x128xf32>
    %cst_33 = arith.constant 1.000000e+00 : f32
    %106 = vector.broadcast %cst_33 : f32 to vector<8x128xf32>
    %107 = arith.addf %106, %105 : vector<8x128xf32>
    %108 = arith.divf %106, %107 : vector<8x128xf32>
    %109 = vector.extract_strided_slice %102 {offsets = [0, 128], sizes = [8, 128], strides = [1, 1]} : vector<8x512xf32> to vector<8x128xf32>
    %110 = arith.negf %109 : vector<8x128xf32>
    %111 = math.exp %110 : vector<8x128xf32>
    %cst_34 = arith.constant 1.000000e+00 : f32
    %112 = vector.broadcast %cst_34 : f32 to vector<8x128xf32>
    %113 = arith.addf %112, %111 : vector<8x128xf32>
    %114 = arith.divf %112, %113 : vector<8x128xf32>
    %115 = vector.extract_strided_slice %102 {offsets = [0, 256], sizes = [8, 128], strides = [1, 1]} : vector<8x512xf32> to vector<8x128xf32>
    %116 = math.tanh %115 : vector<8x128xf32>
    %117 = vector.extract_strided_slice %102 {offsets = [0, 384], sizes = [8, 128], strides = [1, 1]} : vector<8x512xf32> to vector<8x128xf32>
    %118 = arith.negf %117 : vector<8x128xf32>
    %119 = math.exp %118 : vector<8x128xf32>
    %cst_35 = arith.constant 1.000000e+00 : f32
    %120 = vector.broadcast %cst_35 : f32 to vector<8x128xf32>
    %121 = arith.addf %120, %119 : vector<8x128xf32>
    %122 = arith.divf %120, %121 : vector<8x128xf32>
    %123 = arith.mulf %114, %95 : vector<8x128xf32>
    %124 = arith.mulf %108, %116 : vector<8x128xf32>
    %125 = arith.addf %123, %124 : vector<8x128xf32>
    %126 = math.tanh %125 : vector<8x128xf32>
    %127 = arith.mulf %122, %126 : vector<8x128xf32>
    %c0_36 = arith.constant 0 : index
    %c384 = arith.constant 384 : index
    %128 = vector.load %arg10[%c0_36, %c384] : memref<8x1024xf32, #tpu.memory_space<vmem>>, vector<8x128xf32>
    tpu.vector_store %arg10[%c0_36, %c384], %127 {strides = array<i32>} : memref<8x1024xf32, #tpu.memory_space<vmem>>, vector<8x128xf32>,
    %129 = vector.extract_strided_slice %6 {offsets = [32, 0], sizes = [8, 512], strides = [1, 1]} : vector<64x512xf32> to vector<8x512xf32>
    %c0_37 = arith.constant 0 : index
    %c0_38 = arith.constant 0 : index
    %130 = vector.load %arg3[%c0_37, %c0_38] : memref<128x512xf32, #tpu.memory_space<vmem>>, vector<128x512xf32>
    %cst_39 = arith.constant dense<0.000000e+00> : vector<8x512xf32>
    %131 = tpu.matmul %127, %130, %cst_39 {dimension_numbers = #tpu.dot_dimension_numbers<[1], [0], [0], [1], [0, 0, 1, 1], [], []>} : vector<8x128xf32>, vector<128x512xf32>, vector<8x512xf32> -> vector<8x512xf32>
    %132 = arith.addf %129, %131 : vector<8x512xf32>
    %133 = vector.extract_strided_slice %132 {offsets = [0, 0], sizes = [8, 128], strides = [1, 1]} : vector<8x512xf32> to vector<8x128xf32>
    %134 = arith.negf %133 : vector<8x128xf32>
    %135 = math.exp %134 : vector<8x128xf32>
    %cst_40 = arith.constant 1.000000e+00 : f32
    %136 = vector.broadcast %cst_40 : f32 to vector<8x128xf32>
    %137 = arith.addf %136, %135 : vector<8x128xf32>
    %138 = arith.divf %136, %137 : vector<8x128xf32>
    %139 = vector.extract_strided_slice %132 {offsets = [0, 128], sizes = [8, 128], strides = [1, 1]} : vector<8x512xf32> to vector<8x128xf32>
    %140 = arith.negf %139 : vector<8x128xf32>
    %141 = math.exp %140 : vector<8x128xf32>
    %cst_41 = arith.constant 1.000000e+00 : f32
    %142 = vector.broadcast %cst_41 : f32 to vector<8x128xf32>
    %143 = arith.addf %142, %141 : vector<8x128xf32>
    %144 = arith.divf %142, %143 : vector<8x128xf32>
    %145 = vector.extract_strided_slice %132 {offsets = [0, 256], sizes = [8, 128], strides = [1, 1]} : vector<8x512xf32> to vector<8x128xf32>
    %146 = math.tanh %145 : vector<8x128xf32>
    %147 = vector.extract_strided_slice %132 {offsets = [0, 384], sizes = [8, 128], strides = [1, 1]} : vector<8x512xf32> to vector<8x128xf32>
    %148 = arith.negf %147 : vector<8x128xf32>
    %149 = math.exp %148 : vector<8x128xf32>
    %cst_42 = arith.constant 1.000000e+00 : f32
    %150 = vector.broadcast %cst_42 : f32 to vector<8x128xf32>
    %151 = arith.addf %150, %149 : vector<8x128xf32>
    %152 = arith.divf %150, %151 : vector<8x128xf32>
    %153 = arith.mulf %144, %125 : vector<8x128xf32>
    %154 = arith.mulf %138, %146 : vector<8x128xf32>
    %155 = arith.addf %153, %154 : vector<8x128xf32>
    %156 = math.tanh %155 : vector<8x128xf32>
    %157 = arith.mulf %152, %156 : vector<8x128xf32>
    %c0_43 = arith.constant 0 : index
    %c512 = arith.constant 512 : index
    %158 = vector.load %arg10[%c0_43, %c512] : memref<8x1024xf32, #tpu.memory_space<vmem>>, vector<8x128xf32>
    tpu.vector_store %arg10[%c0_43, %c512], %157 {strides = array<i32>} : memref<8x1024xf32, #tpu.memory_space<vmem>>, vector<8x128xf32>,
    %159 = vector.extract_strided_slice %6 {offsets = [40, 0], sizes = [8, 512], strides = [1, 1]} : vector<64x512xf32> to vector<8x512xf32>
    %c0_44 = arith.constant 0 : index
    %c0_45 = arith.constant 0 : index
    %160 = vector.load %arg3[%c0_44, %c0_45] : memref<128x512xf32, #tpu.memory_space<vmem>>, vector<128x512xf32>
    %cst_46 = arith.constant dense<0.000000e+00> : vector<8x512xf32>
    %161 = tpu.matmul %157, %160, %cst_46 {dimension_numbers = #tpu.dot_dimension_numbers<[1], [0], [0], [1], [0, 0, 1, 1], [], []>} : vector<8x128xf32>, vector<128x512xf32>, vector<8x512xf32> -> vector<8x512xf32>
    %162 = arith.addf %159, %161 : vector<8x512xf32>
    %163 = vector.extract_strided_slice %162 {offsets = [0, 0], sizes = [8, 128], strides = [1, 1]} : vector<8x512xf32> to vector<8x128xf32>
    %164 = arith.negf %163 : vector<8x128xf32>
    %165 = math.exp %164 : vector<8x128xf32>
    %cst_47 = arith.constant 1.000000e+00 : f32
    %166 = vector.broadcast %cst_47 : f32 to vector<8x128xf32>
    %167 = arith.addf %166, %165 : vector<8x128xf32>
    %168 = arith.divf %166, %167 : vector<8x128xf32>
    %169 = vector.extract_strided_slice %162 {offsets = [0, 128], sizes = [8, 128], strides = [1, 1]} : vector<8x512xf32> to vector<8x128xf32>
    %170 = arith.negf %169 : vector<8x128xf32>
    %171 = math.exp %170 : vector<8x128xf32>
    %cst_48 = arith.constant 1.000000e+00 : f32
    %172 = vector.broadcast %cst_48 : f32 to vector<8x128xf32>
    %173 = arith.addf %172, %171 : vector<8x128xf32>
    %174 = arith.divf %172, %173 : vector<8x128xf32>
    %175 = vector.extract_strided_slice %162 {offsets = [0, 256], sizes = [8, 128], strides = [1, 1]} : vector<8x512xf32> to vector<8x128xf32>
    %176 = math.tanh %175 : vector<8x128xf32>
    %177 = vector.extract_strided_slice %162 {offsets = [0, 384], sizes = [8, 128], strides = [1, 1]} : vector<8x512xf32> to vector<8x128xf32>
    %178 = arith.negf %177 : vector<8x128xf32>
    %179 = math.exp %178 : vector<8x128xf32>
    %cst_49 = arith.constant 1.000000e+00 : f32
    %180 = vector.broadcast %cst_49 : f32 to vector<8x128xf32>
    %181 = arith.addf %180, %179 : vector<8x128xf32>
    %182 = arith.divf %180, %181 : vector<8x128xf32>
    %183 = arith.mulf %174, %155 : vector<8x128xf32>
    %184 = arith.mulf %168, %176 : vector<8x128xf32>
    %185 = arith.addf %183, %184 : vector<8x128xf32>
    %186 = math.tanh %185 : vector<8x128xf32>
    %187 = arith.mulf %182, %186 : vector<8x128xf32>
    %c0_50 = arith.constant 0 : index
    %c640 = arith.constant 640 : index
    %188 = vector.load %arg10[%c0_50, %c640] : memref<8x1024xf32, #tpu.memory_space<vmem>>, vector<8x128xf32>
    tpu.vector_store %arg10[%c0_50, %c640], %187 {strides = array<i32>} : memref<8x1024xf32, #tpu.memory_space<vmem>>, vector<8x128xf32>,
    %189 = vector.extract_strided_slice %6 {offsets = [48, 0], sizes = [8, 512], strides = [1, 1]} : vector<64x512xf32> to vector<8x512xf32>
    %c0_51 = arith.constant 0 : index
    %c0_52 = arith.constant 0 : index
    %190 = vector.load %arg3[%c0_51, %c0_52] : memref<128x512xf32, #tpu.memory_space<vmem>>, vector<128x512xf32>
    %cst_53 = arith.constant dense<0.000000e+00> : vector<8x512xf32>
    %191 = tpu.matmul %187, %190, %cst_53 {dimension_numbers = #tpu.dot_dimension_numbers<[1], [0], [0], [1], [0, 0, 1, 1], [], []>} : vector<8x128xf32>, vector<128x512xf32>, vector<8x512xf32> -> vector<8x512xf32>
    %192 = arith.addf %189, %191 : vector<8x512xf32>
    %193 = vector.extract_strided_slice %192 {offsets = [0, 0], sizes = [8, 128], strides = [1, 1]} : vector<8x512xf32> to vector<8x128xf32>
    %194 = arith.negf %193 : vector<8x128xf32>
    %195 = math.exp %194 : vector<8x128xf32>
    %cst_54 = arith.constant 1.000000e+00 : f32
    %196 = vector.broadcast %cst_54 : f32 to vector<8x128xf32>
    %197 = arith.addf %196, %195 : vector<8x128xf32>
    %198 = arith.divf %196, %197 : vector<8x128xf32>
    %199 = vector.extract_strided_slice %192 {offsets = [0, 128], sizes = [8, 128], strides = [1, 1]} : vector<8x512xf32> to vector<8x128xf32>
    %200 = arith.negf %199 : vector<8x128xf32>
    %201 = math.exp %200 : vector<8x128xf32>
    %cst_55 = arith.constant 1.000000e+00 : f32
    %202 = vector.broadcast %cst_55 : f32 to vector<8x128xf32>
    %203 = arith.addf %202, %201 : vector<8x128xf32>
    %204 = arith.divf %202, %203 : vector<8x128xf32>
    %205 = vector.extract_strided_slice %192 {offsets = [0, 256], sizes = [8, 128], strides = [1, 1]} : vector<8x512xf32> to vector<8x128xf32>
    %206 = math.tanh %205 : vector<8x128xf32>
    %207 = vector.extract_strided_slice %192 {offsets = [0, 384], sizes = [8, 128], strides = [1, 1]} : vector<8x512xf32> to vector<8x128xf32>
    %208 = arith.negf %207 : vector<8x128xf32>
    %209 = math.exp %208 : vector<8x128xf32>
    %cst_56 = arith.constant 1.000000e+00 : f32
    %210 = vector.broadcast %cst_56 : f32 to vector<8x128xf32>
    %211 = arith.addf %210, %209 : vector<8x128xf32>
    %212 = arith.divf %210, %211 : vector<8x128xf32>
    %213 = arith.mulf %204, %185 : vector<8x128xf32>
    %214 = arith.mulf %198, %206 : vector<8x128xf32>
    %215 = arith.addf %213, %214 : vector<8x128xf32>
    %216 = math.tanh %215 : vector<8x128xf32>
    %217 = arith.mulf %212, %216 : vector<8x128xf32>
    %c0_57 = arith.constant 0 : index
    %c768 = arith.constant 768 : index
    %218 = vector.load %arg10[%c0_57, %c768] : memref<8x1024xf32, #tpu.memory_space<vmem>>, vector<8x128xf32>
    tpu.vector_store %arg10[%c0_57, %c768], %217 {strides = array<i32>} : memref<8x1024xf32, #tpu.memory_space<vmem>>, vector<8x128xf32>,
    %219 = vector.extract_strided_slice %6 {offsets = [56, 0], sizes = [8, 512], strides = [1, 1]} : vector<64x512xf32> to vector<8x512xf32>
    %c0_58 = arith.constant 0 : index
    %c0_59 = arith.constant 0 : index
    %220 = vector.load %arg3[%c0_58, %c0_59] : memref<128x512xf32, #tpu.memory_space<vmem>>, vector<128x512xf32>
    %cst_60 = arith.constant dense<0.000000e+00> : vector<8x512xf32>
    %221 = tpu.matmul %217, %220, %cst_60 {dimension_numbers = #tpu.dot_dimension_numbers<[1], [0], [0], [1], [0, 0, 1, 1], [], []>} : vector<8x128xf32>, vector<128x512xf32>, vector<8x512xf32> -> vector<8x512xf32>
    %222 = arith.addf %219, %221 : vector<8x512xf32>
    %223 = vector.extract_strided_slice %222 {offsets = [0, 0], sizes = [8, 128], strides = [1, 1]} : vector<8x512xf32> to vector<8x128xf32>
    %224 = arith.negf %223 : vector<8x128xf32>
    %225 = math.exp %224 : vector<8x128xf32>
    %cst_61 = arith.constant 1.000000e+00 : f32
    %226 = vector.broadcast %cst_61 : f32 to vector<8x128xf32>
    %227 = arith.addf %226, %225 : vector<8x128xf32>
    %228 = arith.divf %226, %227 : vector<8x128xf32>
    %229 = vector.extract_strided_slice %222 {offsets = [0, 128], sizes = [8, 128], strides = [1, 1]} : vector<8x512xf32> to vector<8x128xf32>
    %230 = arith.negf %229 : vector<8x128xf32>
    %231 = math.exp %230 : vector<8x128xf32>
    %cst_62 = arith.constant 1.000000e+00 : f32
    %232 = vector.broadcast %cst_62 : f32 to vector<8x128xf32>
    %233 = arith.addf %232, %231 : vector<8x128xf32>
    %234 = arith.divf %232, %233 : vector<8x128xf32>
    %235 = vector.extract_strided_slice %222 {offsets = [0, 256], sizes = [8, 128], strides = [1, 1]} : vector<8x512xf32> to vector<8x128xf32>
    %236 = math.tanh %235 : vector<8x128xf32>
    %237 = vector.extract_strided_slice %222 {offsets = [0, 384], sizes = [8, 128], strides = [1, 1]} : vector<8x512xf32> to vector<8x128xf32>
    %238 = arith.negf %237 : vector<8x128xf32>
    %239 = math.exp %238 : vector<8x128xf32>
    %cst_63 = arith.constant 1.000000e+00 : f32
    %240 = vector.broadcast %cst_63 : f32 to vector<8x128xf32>
    %241 = arith.addf %240, %239 : vector<8x128xf32>
    %242 = arith.divf %240, %241 : vector<8x128xf32>
    %243 = arith.mulf %234, %215 : vector<8x128xf32>
    %244 = arith.mulf %228, %236 : vector<8x128xf32>
    %245 = arith.addf %243, %244 : vector<8x128xf32>
    %246 = math.tanh %245 : vector<8x128xf32>
    %247 = arith.mulf %242, %246 : vector<8x128xf32>
    %c0_64 = arith.constant 0 : index
    %c896 = arith.constant 896 : index
    %248 = vector.load %arg10[%c0_64, %c896] : memref<8x1024xf32, #tpu.memory_space<vmem>>, vector<8x128xf32>
    tpu.vector_store %arg10[%c0_64, %c896], %247 {strides = array<i32>} : memref<8x1024xf32, #tpu.memory_space<vmem>>, vector<8x128xf32>,
    %c0_65 = arith.constant 0 : index
    %c0_66 = arith.constant 0 : index
    %249 = vector.load %arg10[%c0_65, %c0_66] : memref<8x1024xf32, #tpu.memory_space<vmem>>, vector<8x1024xf32>
    %c0_67 = arith.constant 0 : index
    %c0_68 = arith.constant 0 : index
    %250 = vector.load %arg5[%c0_67, %c0_68] : memref<1024x128xf32, #tpu.memory_space<vmem>>, vector<1024x128xf32>
    %cst_69 = arith.constant dense<0.000000e+00> : vector<8x128xf32>
    %251 = tpu.matmul %249, %250, %cst_69 {dimension_numbers = #tpu.dot_dimension_numbers<[1], [0], [0], [1], [0, 0, 1, 1], [], []>} : vector<8x1024xf32>, vector<1024x128xf32>, vector<8x128xf32> -> vector<8x128xf32>
    %c0_70 = arith.constant 0 : index
    %c0_71 = arith.constant 0 : index
    %252 = vector.load %arg6[%c0_70, %c0_71] : memref<1x128xf32, #tpu.memory_space<vmem>>, vector<1x128xf32>
    %253 = vector.broadcast %252 : vector<1x128xf32> to vector<8x128xf32>
    %254 = arith.addf %251, %253 : vector<8x128xf32>
    %c0_72 = arith.constant 0 : index
    %c0_73 = arith.constant 0 : index
    %255 = vector.load %arg7[%c0_72, %c0_73] : memref<1x128xf32, #tpu.memory_space<vmem>>, vector<1x128xf32>
    %256 = vector.broadcast %255 : vector<1x128xf32> to vector<8x128xf32>
    %257 = arith.mulf %254, %256 : vector<8x128xf32>
    %c0_74 = arith.constant 0 : index
    %c0_75 = arith.constant 0 : index
    %258 = vector.load %arg8[%c0_74, %c0_75] : memref<1x128xf32, #tpu.memory_space<vmem>>, vector<1x128xf32>
    %259 = vector.broadcast %258 : vector<1x128xf32> to vector<8x128xf32>
    %260 = arith.addf %257, %259 : vector<8x128xf32>
    %261 = arith.negf %260 : vector<8x128xf32>
    %262 = math.exp %261 : vector<8x128xf32>
    %cst_76 = arith.constant 1.000000e+00 : f32
    %263 = vector.broadcast %cst_76 : f32 to vector<8x128xf32>
    %264 = arith.addf %263, %262 : vector<8x128xf32>
    %265 = arith.divf %263, %264 : vector<8x128xf32>
    %c0_77 = arith.constant 0 : index
    %c0_78 = arith.constant 0 : index
    %266 = vector.load %arg9[%c0_77, %c0_78] : memref<8x128xf32, #tpu.memory_space<vmem>>, vector<8x128xf32>
    tpu.vector_store %arg9[%c0_77, %c0_78], %265 {strides = array<i32>} : memref<8x128xf32, #tpu.memory_space<vmem>>, vector<8x128xf32>,
    return
  }
  func.func @transform_0(%arg0: i32) -> (i32, i32, i32) {
    %c0_i32 = arith.constant 0 : i32
    %c0_i32_0 = arith.constant 0 : i32
    %c0_i32_1 = arith.constant 0 : i32
    return %c0_i32, %arg0, %c0_i32_0 : i32, i32, i32
  }
  func.func @transform_1(%arg0: i32) -> (i32, i32) {
    %c0_i32 = arith.constant 0 : i32
    %c0_i32_0 = arith.constant 0 : i32
    %c0_i32_1 = arith.constant 0 : i32
    return %c0_i32, %c0_i32_0 : i32, i32
  }
  func.func @transform_2(%arg0: i32) -> (i32, i32) {
    %c0_i32 = arith.constant 0 : i32
    %c0_i32_0 = arith.constant 0 : i32
    %c0_i32_1 = arith.constant 0 : i32
    return %c0_i32, %c0_i32_0 : i32, i32
  }
  func.func @transform_3(%arg0: i32) -> (i32, i32) {
    %c0_i32 = arith.constant 0 : i32
    %c0_i32_0 = arith.constant 0 : i32
    %c0_i32_1 = arith.constant 0 : i32
    return %c0_i32, %c0_i32_0 : i32, i32
  }
  func.func @transform_4(%arg0: i32) -> (i32, i32) {
    %c0_i32 = arith.constant 0 : i32
    %c0_i32_0 = arith.constant 0 : i32
    %c0_i32_1 = arith.constant 0 : i32
    return %c0_i32, %c0_i32_0 : i32, i32
  }
  func.func @transform_5(%arg0: i32) -> (i32, i32) {
    %c0_i32 = arith.constant 0 : i32
    %c0_i32_0 = arith.constant 0 : i32
    %c0_i32_1 = arith.constant 0 : i32
    return %c0_i32, %c0_i32_0 : i32, i32
  }
  func.func @transform_6(%arg0: i32) -> (i32, i32) {
    %c0_i32 = arith.constant 0 : i32
    %c0_i32_0 = arith.constant 0 : i32
    %c0_i32_1 = arith.constant 0 : i32
    return %c0_i32, %c0_i32_0 : i32, i32
  }
  func.func @transform_7(%arg0: i32) -> (i32, i32) {
    %c0_i32 = arith.constant 0 : i32
    %c0_i32_0 = arith.constant 0 : i32
    %c0_i32_1 = arith.constant 0 : i32
    return %c0_i32, %c0_i32_0 : i32, i32
  }
  func.func @transform_8(%arg0: i32) -> (i32, i32) {
    %c0_i32 = arith.constant 0 : i32
    %c0_i32_0 = arith.constant 0 : i32
    return %arg0, %c0_i32 : i32, i32
  }
}

</mosaic_0001>

<llo_original>
// kernel: news_rec_forward.1
$region0: #{news_rec_forward.1}
  #allocation0 [shape = 'u32[]', space=smem, size = 0x4, offset = 0x4, fixed_abs, tag = 'smem constant byte address 0x4 - core index']
  #allocation1 [shape = 'u32[144,128]{1,0:T(1,128)}', space=vmem, size = 0x12000, scoped, tag = 'internal scratch']
  #allocation2 [shape = 'f32[8,1024]{1,0:T(8,128)}', space=vmem, size = 0x8000, scoped, tag = 'scratch operand']
  %s0 = inlined_call_operand.vmem [shape: f32[8,8,128], index: 0, kind: input, shape index: {}]
  %s1 = inlined_call_operand.vmem [shape: f32[128,512], index: 1, kind: input, shape index: {}]
  %s2 = inlined_call_operand.vmem [shape: f32[128,512], index: 2, kind: input, shape index: {}]
  %s3 = inlined_call_operand.vmem [shape: f32[1,512], index: 3, kind: input, shape index: {}]
  %s4 = inlined_call_operand.vmem [shape: f32[1024,128], index: 4, kind: input, shape index: {}]
  %s5 = inlined_call_operand.vmem [shape: f32[1,128], index: 5, kind: input, shape index: {}]
  %s6 = inlined_call_operand.vmem [shape: f32[1,128], index: 6, kind: input, shape index: {}]
  %s7 = inlined_call_operand.vmem [shape: f32[1,128], index: 7, kind: input, shape index: {}]
  %s8 = inlined_call_operand.hbm [shape: f32[8,128], index: 8, kind: output, shape index: {}]
  %s9 = sld [smem:[#allocation0]]
  $region42: #{news_rec_forward.1} parent=0
    _
  %s11 = ssub.s32 1, %s9
  %s12 = scalar_select 0, %s11, %s9
  $region1: #{news_rec_forward.1} parent=0
    #allocation3 [shape = 'u8[4096]{0}', space=vmem, size = 0x1000, scoped, tag = 'output window, operand 0, single buffered']
    #allocation4 [shape = 's32[1]{0}', space=sflag, size = 0x4, scoped, tag = 'scoped memory for news_rec_forward.1']
    %13 = vsyncpa [#allocation4], 0
    // Predicated region
    $region2: #{news_rec_forward.1} parent=1 // pred_check
      _
    $region3: #{news_rec_forward.1} parent=1 // pred_check_branch
      %15 = sbr.rel (0) target = $region5
    $region4: #{news_rec_forward.1} parent=1 // pred_region
      _
    $region5: #{news_rec_forward.1} parent=1 // pred_fallthru
      _
    // Predicated region
    $region6: #{news_rec_forward.1} parent=1 // pred_check
      _
    $region7: #{news_rec_forward.1} parent=1 // pred_check_branch
      %17 = sbr.rel (0) target = $region9
    $region8: #{news_rec_forward.1} parent=1 // pred_region
      _
    $region9: #{news_rec_forward.1} parent=1 // pred_fallthru
      _
    // Predicated region
    $region10: #{news_rec_forward.1} parent=1 // pred_check
      _
    $region11: #{news_rec_forward.1} parent=1 // pred_check_branch
      %19 = sbr.rel (0) target = $region13
    $region12: #{news_rec_forward.1} parent=1 // pred_region
      _
    $region13: #{news_rec_forward.1} parent=1 // pred_fallthru
      _
    // Predicated region
    $region14: #{news_rec_forward.1} parent=1 // pred_check
      _
    $region15: #{news_rec_forward.1} parent=1 // pred_check_branch
      %21 = sbr.rel (0) target = $region17
    $region16: #{news_rec_forward.1} parent=1 // pred_region
      _
    $region17: #{news_rec_forward.1} parent=1 // pred_fallthru
      _
    // Predicated region
    $region18: #{news_rec_forward.1} parent=1 // pred_check
      _
    $region19: #{news_rec_forward.1} parent=1 // pred_check_branch
      %23 = sbr.rel (0) target = $region21
    $region20: #{news_rec_forward.1} parent=1 // pred_region
      _
    $region21: #{news_rec_forward.1} parent=1 // pred_fallthru
      _
    // Predicated region
    $region22: #{news_rec_forward.1} parent=1 // pred_check
      _
    $region23: #{news_rec_forward.1} parent=1 // pred_check_branch
      %25 = sbr.rel (0) target = $region25
    $region24: #{news_rec_forward.1} parent=1 // pred_region
      _
    $region25: #{news_rec_forward.1} parent=1 // pred_fallthru
      _
    // Predicated region
    $region26: #{news_rec_forward.1} parent=1 // pred_check
      _
    $region27: #{news_rec_forward.1} parent=1 // pred_check_branch
      %27 = sbr.rel (0) target = $region29
    $region28: #{news_rec_forward.1} parent=1 // pred_region
      _
    $region29: #{news_rec_forward.1} parent=1 // pred_fallthru
      _
    // Predicated region
    $region30: #{news_rec_forward.1} parent=1 // pred_check
      _
    $region31: #{news_rec_forward.1} parent=1 // pred_check_branch
      %29 = sbr.rel (0) target = $region33
    $region32: #{news_rec_forward.1} parent=1 // pred_region
      _
    $region33: #{news_rec_forward.1} parent=1 // pred_fallthru
      _
    %v30 = vld [vmem:[%s0] sm:$0xff]
    %v31 = vld [vmem:[%s0 + $0x8] sm:$0xff]
    %v32 = vld [vmem:[%s0 + $0x10] sm:$0xff]
    %v33 = vld [vmem:[%s0 + $0x18] sm:$0xff]
    %v34 = vld [vmem:[%s0 + $0x20] sm:$0xff]
    %v35 = vld [vmem:[%s0 + $0x28] sm:$0xff]
    %v36 = vld [vmem:[%s0 + $0x30] sm:$0xff]
    %v37 = vld [vmem:[%s0 + $0x38] sm:$0xff]
    %v38 = vld [vmem:[%s1] sm:$0xff]
    %v39 = vld [vmem:[%s1 + $0x8] sm:$0xff]
    %v40 = vld [vmem:[%s1 + $0x10] sm:$0xff]
    %v41 = vld [vmem:[%s1 + $0x18] sm:$0xff]
    %v42 = vld [vmem:[%s1 + $0x20] sm:$0xff]
    %v43 = vld [vmem:[%s1 + $0x28] sm:$0xff]
    %v44 = vld [vmem:[%s1 + $0x30] sm:$0xff]
    %v45 = vld [vmem:[%s1 + $0x38] sm:$0xff]
    %v46 = vld [vmem:[%s1 + $0x40] sm:$0xff]
    %v47 = vld [vmem:[%s1 + $0x48] sm:$0xff]
    %v48 = vld [vmem:[%s1 + $0x50] sm:$0xff]
    %v49 = vld [vmem:[%s1 + $0x58] sm:$0xff]
    %v50 = vld [vmem:[%s1 + $0x60] sm:$0xff]
    %v51 = vld [vmem:[%s1 + $0x68] sm:$0xff]
    %v52 = vld [vmem:[%s1 + $0x70] sm:$0xff]
    %v53 = vld [vmem:[%s1 + $0x78] sm:$0xff]
    %v54 = vld [vmem:[%s1 + $0x80] sm:$0xff]
    %v55 = vld [vmem:[%s1 + $0x88] sm:$0xff]
    %v56 = vld [vmem:[%s1 + $0x90] sm:$0xff]
    %v57 = vld [vmem:[%s1 + $0x98] sm:$0xff]
    %v58 = vld [vmem:[%s1 + $0xa0] sm:$0xff]
    %v59 = vld [vmem:[%s1 + $0xa8] sm:$0xff]
    %v60 = vld [vmem:[%s1 + $0xb0] sm:$0xff]
    %v61 = vld [vmem:[%s1 + $0xb8] sm:$0xff]
    %v62 = vld [vmem:[%s1 + $0xc0] sm:$0xff]
    %v63 = vld [vmem:[%s1 + $0xc8] sm:$0xff]
    %v64 = vld [vmem:[%s1 + $0xd0] sm:$0xff]
    %v65 = vld [vmem:[%s1 + $0xd8] sm:$0xff]
    %v66 = vld [vmem:[%s1 + $0xe0] sm:$0xff]
    %v67 = vld [vmem:[%s1 + $0xe8] sm:$0xff]
    %v68 = vld [vmem:[%s1 + $0xf0] sm:$0xff]
    %v69 = vld [vmem:[%s1 + $0xf8] sm:$0xff]
    %v70 = vld [vmem:[%s1 + $0x100] sm:$0xff]
    %v71 = vld [vmem:[%s1 + $0x108] sm:$0xff]
    %v72 = vld [vmem:[%s1 + $0x110] sm:$0xff]
    %v73 = vld [vmem:[%s1 + $0x118] sm:$0xff]
    %v74 = vld [vmem:[%s1 + $0x120] sm:$0xff]
    %v75 = vld [vmem:[%s1 + $0x128] sm:$0xff]
    %v76 = vld [vmem:[%s1 + $0x130] sm:$0xff]
    %v77 = vld [vmem:[%s1 + $0x138] sm:$0xff]
    %v78 = vld [vmem:[%s1 + $0x140] sm:$0xff]
    %v79 = vld [vmem:[%s1 + $0x148] sm:$0xff]
    %v80 = vld [vmem:[%s1 + $0x150] sm:$0xff]
    %v81 = vld [vmem:[%s1 + $0x158] sm:$0xff]
    %v82 = vld [vmem:[%s1 + $0x160] sm:$0xff]
    %v83 = vld [vmem:[%s1 + $0x168] sm:$0xff]
    %v84 = vld [vmem:[%s1 + $0x170] sm:$0xff]
    %v85 = vld [vmem:[%s1 + $0x178] sm:$0xff]
    %v86 = vld [vmem:[%s1 + $0x180] sm:$0xff]
    %v87 = vld [vmem:[%s1 + $0x188] sm:$0xff]
    %v88 = vld [vmem:[%s1 + $0x190] sm:$0xff]
    %v89 = vld [vmem:[%s1 + $0x198] sm:$0xff]
    %v90 = vld [vmem:[%s1 + $0x1a0] sm:$0xff]
    %v91 = vld [vmem:[%s1 + $0x1a8] sm:$0xff]
    %v92 = vld [vmem:[%s1 + $0x1b0] sm:$0xff]
    %v93 = vld [vmem:[%s1 + $0x1b8] sm:$0xff]
    %v94 = vld [vmem:[%s1 + $0x1c0] sm:$0xff]
    %v95 = vld [vmem:[%s1 + $0x1c8] sm:$0xff]
    %v96 = vld [vmem:[%s1 + $0x1d0] sm:$0xff]
    %v97 = vld [vmem:[%s1 + $0x1d8] sm:$0xff]
    %v98 = vld [vmem:[%s1 + $0x1e0] sm:$0xff]
    %v99 = vld [vmem:[%s1 + $0x1e8] sm:$0xff]
    %v100 = vld [vmem:[%s1 + $0x1f0] sm:$0xff]
    %v101 = vld [vmem:[%s1 + $0x1f8] sm:$0xff]
    %v102 = vld [vmem:[%s3] sm:$0xf]
    %v104 = vlaneseq
    %v105 = vshrl.u32 %v104, 7
    %v106 = vsub.s32 0, %v105
    %v107 = vrot.slane %v102, %v106
    %v108 = vlaneseq
    %v109 = vshrl.u32 %v108, 7
    %v110 = vsub.s32 1, %v109
    %v111 = vrot.slane %v102, %v110
    %v112 = vlaneseq
    %v113 = vshrl.u32 %v112, 7
    %v114 = vsub.s32 2, %v113
    %v115 = vrot.slane %v102, %v114
    %v116 = vlaneseq
    %v117 = vshrl.u32 %v116, 7
    %v118 = vsub.s32 3, %v117
    %v119 = vrot.slane %v102, %v118
    %124 = vmatprep.subr.mxu0 %v99
    %125 = vmatpush1.msra.mxu0 %v98
    %126 = vmatprep.subr.mxu0 %v95
    %127 = vmatpush1.msra.mxu0 %v94
    %128 = vmatprep.subr.mxu0 %v91
    %129 = vmatpush1.msra.mxu0 %v90
    %130 = vmatprep.subr.mxu0 %v87
    %131 = vmatpush1.msra.mxu0 %v86
    %132 = vmatprep.subr.mxu0 %v83
    %133 = vmatpush1.msra.mxu0 %v82
    %134 = vmatprep.subr.mxu0 %v79
    %135 = vmatpush1.msra.mxu0 %v78
    %136 = vmatprep.subr.mxu0 %v75
    %137 = vmatpush1.msra.mxu0 %v74
    %138 = vmatprep.subr.mxu0 %v71
    %139 = vmatpush1.msra.mxu0 %v70
    %140 = vmatprep.subr.mxu0 %v67
    %141 = vmatpush1.msra.mxu0 %v66
    %142 = vmatprep.subr.mxu0 %v63
    %143 = vmatpush1.msra.mxu0 %v62
    %144 = vmatprep.subr.mxu0 %v59
    %145 = vmatpush1.msra.mxu0 %v58
    %146 = vmatprep.subr.mxu0 %v55
    %147 = vmatpush1.msra.mxu0 %v54
    %148 = vmatprep.subr.mxu0 %v51
    %149 = vmatpush1.msra.mxu0 %v50
    %150 = vmatprep.subr.mxu0 %v47
    %151 = vmatpush1.msra.mxu0 %v46
    %152 = vmatprep.subr.mxu0 %v43
    %153 = vmatpush1.msra.mxu0 %v42
    %154 = vmatprep.subr.mxu0 %v39
    %155 = vmatpush1.msra.mxu0 %v38
    %156 = vmatprep.subr.mxu0 0.0
    %157 = vmatpush2.msra.mxu0 0.0
    %158 = vmatprep.subr.mxu0 0.0
    %159 = vmatpush2.msra.mxu0 0.0
    %160 = vmatprep.subr.mxu0 0.0
    %161 = vmatpush2.msra.mxu0 0.0
    %162 = vmatprep.subr.mxu0 0.0
    %163 = vmatpush2.msra.mxu0 0.0
    %164 = vmatprep.subr.mxu0 0.0
    %165 = vmatpush2.msra.mxu0 0.0
    %166 = vmatprep.subr.mxu0 0.0
    %167 = vmatpush2.msra.mxu0 0.0
    %168 = vmatprep.subr.mxu0 0.0
    %169 = vmatpush2.msra.mxu0 0.0
    %170 = vmatprep.subr.mxu0 0.0
    %171 = vmatpush2.msra.mxu0 0.0
    %172 = vmatprep.subr.mxu0 0.0
    %173 = vmatpush2.msra.mxu0 0.0
    %174 = vmatprep.subr.mxu0 0.0
    %175 = vmatpush2.msra.mxu0 0.0
    %176 = vmatprep.subr.mxu0 0.0
    %177 = vmatpush2.msra.mxu0 0.0
    %178 = vmatprep.subr.mxu0 0.0
    %179 = vmatpush2.msra.mxu0 0.0
    %180 = vmatprep.subr.mxu0 0.0
    %181 = vmatpush2.msra.mxu0 0.0
    %182 = vmatprep.subr.mxu0 0.0
    %183 = vmatpush2.msra.mxu0 0.0
    %184 = vmatprep.subr.mxu0 0.0
    %185 = vmatpush2.msra.mxu0 0.0
    %186 = vmatprep.subr.mxu0 0.0
    %187 = vmatpush2.msra.mxu0 0.0
    %188 = vmatprep.mubr.f32.mxu0 0.0
    %189 = vmatmul.mubr.f32.gmra.mxu0 %v30
    %v190 = vpop.f32.mrf.mxu0
    %v191 = vadd.f32 %v107, %v190
    %v192 = vpop.f32.mrf.mxu0
    %v193 = vadd.f32 %v111, %v192
    %194 = vmatprep.mubr.f32.mxu0 0.0
    %195 = vmatmul.mubr.f32.gmra.mxu0 %v31
    %v196 = vpop.f32.mrf.mxu0
    %v197 = vadd.f32 %v107, %v196
    %v198 = vpop.f32.mrf.mxu0
    %v199 = vadd.f32 %v111, %v198
    %200 = vmatprep.mubr.f32.mxu0 0.0
    %201 = vmatmul.mubr.f32.gmra.mxu0 %v32
    %v202 = vpop.f32.mrf.mxu0
    %v203 = vadd.f32 %v107, %v202
    %v204 = vpop.f32.mrf.mxu0
    %v205 = vadd.f32 %v111, %v204
    %206 = vmatprep.mubr.f32.mxu0 0.0
    %207 = vmatmul.mubr.f32.gmra.mxu0 %v33
    %v208 = vpop.f32.mrf.mxu0
    %v209 = vadd.f32 %v107, %v208
    %v210 = vpop.f32.mrf.mxu0
    %v211 = vadd.f32 %v111, %v210
    %212 = vmatprep.mubr.f32.mxu0 0.0
    %213 = vmatmul.mubr.f32.gmra.mxu0 %v34
    %v214 = vpop.f32.mrf.mxu0
    %v215 = vadd.f32 %v107, %v214
    %v216 = vpop.f32.mrf.mxu0
    %v217 = vadd.f32 %v111, %v216
    %218 = vmatprep.mubr.f32.mxu0 0.0
    %219 = vmatmul.mubr.f32.gmra.mxu0 %v35
    %v220 = vpop.f32.mrf.mxu0
    %v221 = vadd.f32 %v107, %v220
    %v222 = vpop.f32.mrf.mxu0
    %v223 = vadd.f32 %v111, %v222
    %224 = vmatprep.mubr.f32.mxu0 0.0
    %225 = vmatmul.mubr.f32.gmra.mxu0 %v36
    %v226 = vpop.f32.mrf.mxu0
    %v227 = vadd.f32 %v107, %v226
    %v228 = vpop.f32.mrf.mxu0
    %v229 = vadd.f32 %v111, %v228
    %230 = vmatprep.mubr.f32.mxu0 0.0
    %231 = vmatmul.mubr.f32.gmra.mxu0 %v37
    %v232 = vpop.f32.mrf.mxu0
    %v233 = vadd.f32 %v107, %v232
    %v234 = vpop.f32.mrf.mxu0
    %v235 = vadd.f32 %v111, %v234
    %236 = vdwg.mxu0
    %237 = vmatprep.subr.mxu0 %v101
    %238 = vmatpush1.msra.mxu0 %v100
    %239 = vmatprep.subr.mxu0 %v97
    %240 = vmatpush1.msra.mxu0 %v96
    %241 = vmatprep.subr.mxu0 %v93
    %242 = vmatpush1.msra.mxu0 %v92
    %243 = vmatprep.subr.mxu0 %v89
    %244 = vmatpush1.msra.mxu0 %v88
    %245 = vmatprep.subr.mxu0 %v85
    %246 = vmatpush1.msra.mxu0 %v84
    %247 = vmatprep.subr.mxu0 %v81
    %248 = vmatpush1.msra.mxu0 %v80
    %249 = vmatprep.subr.mxu0 %v77
    %250 = vmatpush1.msra.mxu0 %v76
    %251 = vmatprep.subr.mxu0 %v73
    %252 = vmatpush1.msra.mxu0 %v72
    %253 = vmatprep.subr.mxu0 %v69
    %254 = vmatpush1.msra.mxu0 %v68
    %255 = vmatprep.subr.mxu0 %v65
    %256 = vmatpush1.msra.mxu0 %v64
    %257 = vmatprep.subr.mxu0 %v61
    %258 = vmatpush1.msra.mxu0 %v60
    %259 = vmatprep.subr.mxu0 %v57
    %260 = vmatpush1.msra.mxu0 %v56
    %261 = vmatprep.subr.mxu0 %v53
    %262 = vmatpush1.msra.mxu0 %v52
    %263 = vmatprep.subr.mxu0 %v49
    %264 = vmatpush1.msra.mxu0 %v48
    %265 = vmatprep.subr.mxu0 %v45
    %266 = vmatpush1.msra.mxu0 %v44
    %267 = vmatprep.subr.mxu0 %v41
    %268 = vmatpush1.msra.mxu0 %v40
    %269 = vmatprep.subr.mxu0 0.0
    %270 = vmatpush2.msra.mxu0 0.0
    %271 = vmatprep.subr.mxu0 0.0
    %272 = vmatpush2.msra.mxu0 0.0
    %273 = vmatprep.subr.mxu0 0.0
    %274 = vmatpush2.msra.mxu0 0.0
    %275 = vmatprep.subr.mxu0 0.0
    %276 = vmatpush2.msra.mxu0 0.0
    %277 = vmatprep.subr.mxu0 0.0
    %278 = vmatpush2.msra.mxu0 0.0
    %279 = vmatprep.subr.mxu0 0.0
    %280 = vmatpush2.msra.mxu0 0.0
    %281 = vmatprep.subr.mxu0 0.0
    %282 = vmatpush2.msra.mxu0 0.0
    %283 = vmatprep.subr.mxu0 0.0
    %284 = vmatpush2.msra.mxu0 0.0
    %285 = vmatprep.subr.mxu0 0.0
    %286 = vmatpush2.msra.mxu0 0.0
    %287 = vmatprep.subr.mxu0 0.0
    %288 = vmatpush2.msra.mxu0 0.0
    %289 = vmatprep.subr.mxu0 0.0
    %290 = vmatpush2.msra.mxu0 0.0
    %291 = vmatprep.subr.mxu0 0.0
    %292 = vmatpush2.msra.mxu0 0.0
    %293 = vmatprep.subr.mxu0 0.0
    %294 = vmatpush2.msra.mxu0 0.0
    %295 = vmatprep.subr.mxu0 0.0
    %296 = vmatpush2.msra.mxu0 0.0
    %297 = vmatprep.subr.mxu0 0.0
    %298 = vmatpush2.msra.mxu0 0.0
    %299 = vmatprep.subr.mxu0 0.0
    %300 = vmatpush2.msra.mxu0 0.0
    %301 = vmatprep.mubr.f32.mxu0 0.0
    %302 = vmatmul.mubr.f32.gmra.mxu0 %v30
    %v303 = vpop.f32.mrf.mxu0
    %v304 = vadd.f32 %v115, %v303
    %v305 = vpop.f32.mrf.mxu0
    %v306 = vadd.f32 %v119, %v305
    %307 = vmatprep.mubr.f32.mxu0 0.0
    %308 = vmatmul.mubr.f32.gmra.mxu0 %v31
    %v309 = vpop.f32.mrf.mxu0
    %v310 = vadd.f32 %v115, %v309
    %v311 = vpop.f32.mrf.mxu0
    %v312 = vadd.f32 %v119, %v311
    %313 = vmatprep.mubr.f32.mxu0 0.0
    %314 = vmatmul.mubr.f32.gmra.mxu0 %v32
    %v315 = vpop.f32.mrf.mxu0
    %v316 = vadd.f32 %v115, %v315
    %v317 = vpop.f32.mrf.mxu0
    %v318 = vadd.f32 %v119, %v317
    %319 = vmatprep.mubr.f32.mxu0 0.0
    %320 = vmatmul.mubr.f32.gmra.mxu0 %v33
    %v321 = vpop.f32.mrf.mxu0
    %v322 = vadd.f32 %v115, %v321
    %v323 = vpop.f32.mrf.mxu0
    %v324 = vadd.f32 %v119, %v323
    %325 = vmatprep.mubr.f32.mxu0 0.0
    %326 = vmatmul.mubr.f32.gmra.mxu0 %v34
    %v327 = vpop.f32.mrf.mxu0
    %v328 = vadd.f32 %v115, %v327
    %v329 = vpop.f32.mrf.mxu0
    %v330 = vadd.f32 %v119, %v329
    %331 = vmatprep.mubr.f32.mxu0 0.0
    %332 = vmatmul.mubr.f32.gmra.mxu0 %v35
    %v333 = vpop.f32.mrf.mxu0
    %v334 = vadd.f32 %v115, %v333
    %v335 = vpop.f32.mrf.mxu0
    %v336 = vadd.f32 %v119, %v335
    %337 = vmatprep.mubr.f32.mxu0 0.0
    %338 = vmatmul.mubr.f32.gmra.mxu0 %v36
    %v339 = vpop.f32.mrf.mxu0
    %v340 = vadd.f32 %v115, %v339
    %v341 = vpop.f32.mrf.mxu0
    %v342 = vadd.f32 %v119, %v341
    %343 = vmatprep.mubr.f32.mxu0 0.0
    %344 = vmatmul.mubr.f32.gmra.mxu0 %v37
    %v345 = vpop.f32.mrf.mxu0
    %v346 = vadd.f32 %v115, %v345
    %v347 = vpop.f32.mrf.mxu0
    %v348 = vadd.f32 %v119, %v347
    %349 = vdwg.mxu0
    %v350 = vld [vmem:[%s2] sm:$0xff]
    %v351 = vld [vmem:[%s2 + $0x8] sm:$0xff]
    %v352 = vld [vmem:[%s2 + $0x10] sm:$0xff]
    %v353 = vld [vmem:[%s2 + $0x18] sm:$0xff]
    %v354 = vld [vmem:[%s2 + $0x20] sm:$0xff]
    %v355 = vld [vmem:[%s2 + $0x28] sm:$0xff]
    %v356 = vld [vmem:[%s2 + $0x30] sm:$0xff]
    %v357 = vld [vmem:[%s2 + $0x38] sm:$0xff]
    %v358 = vld [vmem:[%s2 + $0x40] sm:$0xff]
    %v359 = vld [vmem:[%s2 + $0x48] sm:$0xff]
    %v360 = vld [vmem:[%s2 + $0x50] sm:$0xff]
    %v361 = vld [vmem:[%s2 + $0x58] sm:$0xff]
    %v362 = vld [vmem:[%s2 + $0x60] sm:$0xff]
    %v363 = vld [vmem:[%s2 + $0x68] sm:$0xff]
    %v364 = vld [vmem:[%s2 + $0x70] sm:$0xff]
    %v365 = vld [vmem:[%s2 + $0x78] sm:$0xff]
    %v366 = vld [vmem:[%s2 + $0x80] sm:$0xff]
    %v367 = vld [vmem:[%s2 + $0x88] sm:$0xff]
    %v368 = vld [vmem:[%s2 + $0x90] sm:$0xff]
    %v369 = vld [vmem:[%s2 + $0x98] sm:$0xff]
    %v370 = vld [vmem:[%s2 + $0xa0] sm:$0xff]
    %v371 = vld [vmem:[%s2 + $0xa8] sm:$0xff]
    %v372 = vld [vmem:[%s2 + $0xb0] sm:$0xff]
    %v373 = vld [vmem:[%s2 + $0xb8] sm:$0xff]
    %v374 = vld [vmem:[%s2 + $0xc0] sm:$0xff]
    %v375 = vld [vmem:[%s2 + $0xc8] sm:$0xff]
    %v376 = vld [vmem:[%s2 + $0xd0] sm:$0xff]
    %v377 = vld [vmem:[%s2 + $0xd8] sm:$0xff]
    %v378 = vld [vmem:[%s2 + $0xe0] sm:$0xff]
    %v379 = vld [vmem:[%s2 + $0xe8] sm:$0xff]
    %v380 = vld [vmem:[%s2 + $0xf0] sm:$0xff]
    %v381 = vld [vmem:[%s2 + $0xf8] sm:$0xff]
    %v382 = vld [vmem:[%s2 + $0x100] sm:$0xff]
    %v383 = vld [vmem:[%s2 + $0x108] sm:$0xff]
    %v384 = vld [vmem:[%s2 + $0x110] sm:$0xff]
    %v385 = vld [vmem:[%s2 + $0x118] sm:$0xff]
    %v386 = vld [vmem:[%s2 + $0x120] sm:$0xff]
    %v387 = vld [vmem:[%s2 + $0x128] sm:$0xff]
    %v388 = vld [vmem:[%s2 + $0x130] sm:$0xff]
    %v389 = vld [vmem:[%s2 + $0x138] sm:$0xff]
    %v390 = vld [vmem:[%s2 + $0x140] sm:$0xff]
    %v391 = vld [vmem:[%s2 + $0x148] sm:$0xff]
    %v392 = vld [vmem:[%s2 + $0x150] sm:$0xff]
    %v393 = vld [vmem:[%s2 + $0x158] sm:$0xff]
    %v394 = vld [vmem:[%s2 + $0x160] sm:$0xff]
    %v395 = vld [vmem:[%s2 + $0x168] sm:$0xff]
    %v396 = vld [vmem:[%s2 + $0x170] sm:$0xff]
    %v397 = vld [vmem:[%s2 + $0x178] sm:$0xff]
    %v398 = vld [vmem:[%s2 + $0x180] sm:$0xff]
    %v399 = vld [vmem:[%s2 + $0x188] sm:$0xff]
    %v400 = vld [vmem:[%s2 + $0x190] sm:$0xff]
    %v401 = vld [vmem:[%s2 + $0x198] sm:$0xff]
    %v402 = vld [vmem:[%s2 + $0x1a0] sm:$0xff]
    %v403 = vld [vmem:[%s2 + $0x1a8] sm:$0xff]
    %v404 = vld [vmem:[%s2 + $0x1b0] sm:$0xff]
    %v405 = vld [vmem:[%s2 + $0x1b8] sm:$0xff]
    %v406 = vld [vmem:[%s2 + $0x1c0] sm:$0xff]
    %v407 = vld [vmem:[%s2 + $0x1c8] sm:$0xff]
    %v408 = vld [vmem:[%s2 + $0x1d0] sm:$0xff]
    %v409 = vld [vmem:[%s2 + $0x1d8] sm:$0xff]
    %v410 = vld [vmem:[%s2 + $0x1e0] sm:$0xff]
    %v411 = vld [vmem:[%s2 + $0x1e8] sm:$0xff]
    %v412 = vld [vmem:[%s2 + $0x1f0] sm:$0xff]
    %v413 = vld [vmem:[%s2 + $0x1f8] sm:$0xff]
    %414 = vmatprep.subr.mxu0 %v411
    %415 = vmatpush1.msra.mxu0 %v410
    %416 = vmatprep.subr.mxu0 %v407
    %417 = vmatpush1.msra.mxu0 %v406
    %418 = vmatprep.subr.mxu0 %v403
    %419 = vmatpush1.msra.mxu0 %v402
    %420 = vmatprep.subr.mxu0 %v399
    %421 = vmatpush1.msra.mxu0 %v398
    %422 = vmatprep.subr.mxu0 %v395
    %423 = vmatpush1.msra.mxu0 %v394
    %424 = vmatprep.subr.mxu0 %v391
    %425 = vmatpush1.msra.mxu0 %v390
    %426 = vmatprep.subr.mxu0 %v387
    %427 = vmatpush1.msra.mxu0 %v386
    %428 = vmatprep.subr.mxu0 %v383
    %429 = vmatpush1.msra.mxu0 %v382
    %430 = vmatprep.subr.mxu0 %v379
    %431 = vmatpush1.msra.mxu0 %v378
    %432 = vmatprep.subr.mxu0 %v375
    %433 = vmatpush1.msra.mxu0 %v374
    %434 = vmatprep.subr.mxu0 %v371
    %435 = vmatpush1.msra.mxu0 %v370
    %436 = vmatprep.subr.mxu0 %v367
    %437 = vmatpush1.msra.mxu0 %v366
    %438 = vmatprep.subr.mxu0 %v363
    %439 = vmatpush1.msra.mxu0 %v362
    %440 = vmatprep.subr.mxu0 %v359
    %441 = vmatpush1.msra.mxu0 %v358
    %442 = vmatprep.subr.mxu0 %v355
    %443 = vmatpush1.msra.mxu0 %v354
    %444 = vmatprep.subr.mxu0 %v351
    %445 = vmatpush1.msra.mxu0 %v350
    %446 = vmatprep.subr.mxu0 0.0
    %447 = vmatpush2.msra.mxu0 0.0
    %448 = vmatprep.subr.mxu0 0.0
    %449 = vmatpush2.msra.mxu0 0.0
    %450 = vmatprep.subr.mxu0 0.0
    %451 = vmatpush2.msra.mxu0 0.0
    %452 = vmatprep.subr.mxu0 0.0
    %453 = vmatpush2.msra.mxu0 0.0
    %454 = vmatprep.subr.mxu0 0.0
    %455 = vmatpush2.msra.mxu0 0.0
    %456 = vmatprep.subr.mxu0 0.0
    %457 = vmatpush2.msra.mxu0 0.0
    %458 = vmatprep.subr.mxu0 0.0
    %459 = vmatpush2.msra.mxu0 0.0
    %460 = vmatprep.subr.mxu0 0.0
    %461 = vmatpush2.msra.mxu0 0.0
    %462 = vmatprep.subr.mxu0 0.0
    %463 = vmatpush2.msra.mxu0 0.0
    %464 = vmatprep.subr.mxu0 0.0
    %465 = vmatpush2.msra.mxu0 0.0
    %466 = vmatprep.subr.mxu0 0.0
    %467 = vmatpush2.msra.mxu0 0.0
    %468 = vmatprep.subr.mxu0 0.0
    %469 = vmatpush2.msra.mxu0 0.0
    %470 = vmatprep.subr.mxu0 0.0
    %471 = vmatpush2.msra.mxu0 0.0
    %472 = vmatprep.subr.mxu0 0.0
    %473 = vmatpush2.msra.mxu0 0.0
    %474 = vmatprep.subr.mxu0 0.0
    %475 = vmatpush2.msra.mxu0 0.0
    %476 = vmatprep.subr.mxu0 0.0
    %477 = vmatpush2.msra.mxu0 0.0
    %478 = vmatprep.mubr.f32.mxu0 0.0
    %479 = vmatmul.mubr.f32.gmra.mxu0 0.0
    %v480 = vpop.f32.mrf.mxu0
    %v481 = vadd.f32 0.0, %v480
    %v482 = vpop.f32.mrf.mxu0
    %v483 = vadd.f32 0.0, %v482
    %484 = vdwg.mxu0
    %485 = vmatprep.subr.mxu0 %v413
    %486 = vmatpush1.msra.mxu0 %v412
    %487 = vmatprep.subr.mxu0 %v409
    %488 = vmatpush1.msra.mxu0 %v408
    %489 = vmatprep.subr.mxu0 %v405
    %490 = vmatpush1.msra.mxu0 %v404
    %491 = vmatprep.subr.mxu0 %v401
    %492 = vmatpush1.msra.mxu0 %v400
    %493 = vmatprep.subr.mxu0 %v397
    %494 = vmatpush1.msra.mxu0 %v396
    %495 = vmatprep.subr.mxu0 %v393
    %496 = vmatpush1.msra.mxu0 %v392
    %497 = vmatprep.subr.mxu0 %v389
    %498 = vmatpush1.msra.mxu0 %v388
    %499 = vmatprep.subr.mxu0 %v385
    %500 = vmatpush1.msra.mxu0 %v384
    %501 = vmatprep.subr.mxu0 %v381
    %502 = vmatpush1.msra.mxu0 %v380
    %503 = vmatprep.subr.mxu0 %v377
    %504 = vmatpush1.msra.mxu0 %v376
    %505 = vmatprep.subr.mxu0 %v373
    %506 = vmatpush1.msra.mxu0 %v372
    %507 = vmatprep.subr.mxu0 %v369
    %508 = vmatpush1.msra.mxu0 %v368
    %509 = vmatprep.subr.mxu0 %v365
    %510 = vmatpush1.msra.mxu0 %v364
    %511 = vmatprep.subr.mxu0 %v361
    %512 = vmatpush1.msra.mxu0 %v360
    %513 = vmatprep.subr.mxu0 %v357
    %514 = vmatpush1.msra.mxu0 %v356
    %515 = vmatprep.subr.mxu0 %v353
    %516 = vmatpush1.msra.mxu0 %v352
    %517 = vmatprep.subr.mxu0 0.0
    %518 = vmatpush2.msra.mxu0 0.0
    %519 = vmatprep.subr.mxu0 0.0
    %520 = vmatpush2.msra.mxu0 0.0
    %521 = vmatprep.subr.mxu0 0.0
    %522 = vmatpush2.msra.mxu0 0.0
    %523 = vmatprep.subr.mxu0 0.0
    %524 = vmatpush2.msra.mxu0 0.0
    %525 = vmatprep.subr.mxu0 0.0
    %526 = vmatpush2.msra.mxu0 0.0
    %527 = vmatprep.subr.mxu0 0.0
    %528 = vmatpush2.msra.mxu0 0.0
    %529 = vmatprep.subr.mxu0 0.0
    %530 = vmatpush2.msra.mxu0 0.0
    %531 = vmatprep.subr.mxu0 0.0
    %532 = vmatpush2.msra.mxu0 0.0
    %533 = vmatprep.subr.mxu0 0.0
    %534 = vmatpush2.msra.mxu0 0.0
    %535 = vmatprep.subr.mxu0 0.0
    %536 = vmatpush2.msra.mxu0 0.0
    %537 = vmatprep.subr.mxu0 0.0
    %538 = vmatpush2.msra.mxu0 0.0
    %539 = vmatprep.subr.mxu0 0.0
    %540 = vmatpush2.msra.mxu0 0.0
    %541 = vmatprep.subr.mxu0 0.0
    %542 = vmatpush2.msra.mxu0 0.0
    %543 = vmatprep.subr.mxu0 0.0
    %544 = vmatpush2.msra.mxu0 0.0
    %545 = vmatprep.subr.mxu0 0.0
    %546 = vmatpush2.msra.mxu0 0.0
    %547 = vmatprep.subr.mxu0 0.0
    %548 = vmatpush2.msra.mxu0 0.0
    %549 = vmatprep.mubr.f32.mxu0 0.0
    %550 = vmatmul.mubr.f32.gmra.mxu0 0.0
    %v551 = vpop.f32.mrf.mxu0
    %v552 = vadd.f32 0.0, %v551
    %v553 = vpop.f32.mrf.mxu0
    %v554 = vadd.f32 0.0, %v553
    %555 = vdwg.mxu0
    %v556 = vadd.f32 %v191, %v481
    %v557 = vadd.f32 %v193, %v483
    %v558 = vadd.f32 %v304, %v552
    %v559 = vadd.f32 %v306, %v554
    %v560 = vxor.u32 %v556, 2147483648
    %v561 = vmul.f32 %v560, 1.442695
    %v562 = vpow.pop %v561
    %v563 = vadd.f32 %v562, 1.0
    %v564 = vrcp.pop %v563
    %v565 = vmul.f32 1.0, %v564
    %v566 = vxor.u32 %v557, 2147483648
    %v567 = vmul.f32 %v566, 1.442695
    %v568 = vpow.pop %v567
    %v569 = vadd.f32 %v568, 1.0
    %v570 = vrcp.pop %v569
    %v571 = vmul.f32 1.0, %v570
    %v572 = vtanh.pop %v558
    %v573 = vxor.u32 %v559, 2147483648
    %v574 = vmul.f32 %v573, 1.442695
    %v575 = vpow.pop %v574
    %v576 = vadd.f32 %v575, 1.0
    %v577 = vrcp.pop %v576
    %v578 = vmul.f32 1.0, %v577
    %v579 = vmul.f32 %v571, 0.0
    %v580 = vmul.f32 %v565, %v572
    %v581 = vadd.f32 %v579, %v580
    %v582 = vtanh.pop %v581
    %v583 = vmul.f32 %v578, %v582
    %584 = vst [vmem:[#allocation2] sm:$0xff] %v583
    %v585 = vld [vmem:[%s2] sm:$0xff]
    %v586 = vld [vmem:[%s2 + $0x8] sm:$0xff]
    %v587 = vld [vmem:[%s2 + $0x10] sm:$0xff]
    %v588 = vld [vmem:[%s2 + $0x18] sm:$0xff]
    %v589 = vld [vmem:[%s2 + $0x20] sm:$0xff]
    %v590 = vld [vmem:[%s2 + $0x28] sm:$0xff]
    %v591 = vld [vmem:[%s2 + $0x30] sm:$0xff]
    %v592 = vld [vmem:[%s2 + $0x38] sm:$0xff]
    %v593 = vld [vmem:[%s2 + $0x40] sm:$0xff]
    %v594 = vld [vmem:[%s2 + $0x48] sm:$0xff]
    %v595 = vld [vmem:[%s2 + $0x50] sm:$0xff]
    %v596 = vld [vmem:[%s2 + $0x58] sm:$0xff]
    %v597 = vld [vmem:[%s2 + $0x60] sm:$0xff]
    %v598 = vld [vmem:[%s2 + $0x68] sm:$0xff]
    %v599 = vld [vmem:[%s2 + $0x70] sm:$0xff]
    %v600 = vld [vmem:[%s2 + $0x78] sm:$0xff]
    %v601 = vld [vmem:[%s2 + $0x80] sm:$0xff]
    %v602 = vld [vmem:[%s2 + $0x88] sm:$0xff]
    %v603 = vld [vmem:[%s2 + $0x90] sm:$0xff]
    %v604 = vld [vmem:[%s2 + $0x98] sm:$0xff]
    %v605 = vld [vmem:[%s2 + $0xa0] sm:$0xff]
    %v606 = vld [vmem:[%s2 + $0xa8] sm:$0xff]
    %v607 = vld [vmem:[%s2 + $0xb0] sm:$0xff]
    %v608 = vld [vmem:[%s2 + $0xb8] sm:$0xff]
    %v609 = vld [vmem:[%s2 + $0xc0] sm:$0xff]
    %v610 = vld [vmem:[%s2 + $0xc8] sm:$0xff]
    %v611 = vld [vmem:[%s2 + $0xd0] sm:$0xff]
    %v612 = vld [vmem:[%s2 + $0xd8] sm:$0xff]
    %v613 = vld [vmem:[%s2 + $0xe0] sm:$0xff]
    %v614 = vld [vmem:[%s2 + $0xe8] sm:$0xff]
    %v615 = vld [vmem:[%s2 + $0xf0] sm:$0xff]
    %v616 = vld [vmem:[%s2 + $0xf8] sm:$0xff]
    %v617 = vld [vmem:[%s2 + $0x100] sm:$0xff]
    %v618 = vld [vmem:[%s2 + $0x108] sm:$0xff]
    %v619 = vld [vmem:[%s2 + $0x110] sm:$0xff]
    %v620 = vld [vmem:[%s2 + $0x118] sm:$0xff]
    %v621 = vld [vmem:[%s2 + $0x120] sm:$0xff]
    %v622 = vld [vmem:[%s2 + $0x128] sm:$0xff]
    %v623 = vld [vmem:[%s2 + $0x130] sm:$0xff]
    %v624 = vld [vmem:[%s2 + $0x138] sm:$0xff]
    %v625 = vld [vmem:[%s2 + $0x140] sm:$0xff]
    %v626 = vld [vmem:[%s2 + $0x148] sm:$0xff]
    %v627 = vld [vmem:[%s2 + $0x150] sm:$0xff]
    %v628 = vld [vmem:[%s2 + $0x158] sm:$0xff]
    %v629 = vld [vmem:[%s2 + $0x160] sm:$0xff]
    %v630 = vld [vmem:[%s2 + $0x168] sm:$0xff]
    %v631 = vld [vmem:[%s2 + $0x170] sm:$0xff]
    %v632 = vld [vmem:[%s2 + $0x178] sm:$0xff]
    %v633 = vld [vmem:[%s2 + $0x180] sm:$0xff]
    %v634 = vld [vmem:[%s2 + $0x188] sm:$0xff]
    %v635 = vld [vmem:[%s2 + $0x190] sm:$0xff]
    %v636 = vld [vmem:[%s2 + $0x198] sm:$0xff]
    %v637 = vld [vmem:[%s2 + $0x1a0] sm:$0xff]
    %v638 = vld [vmem:[%s2 + $0x1a8] sm:$0xff]
    %v639 = vld [vmem:[%s2 + $0x1b0] sm:$0xff]
    %v640 = vld [vmem:[%s2 + $0x1b8] sm:$0xff]
    %v641 = vld [vmem:[%s2 + $0x1c0] sm:$0xff]
    %v642 = vld [vmem:[%s2 + $0x1c8] sm:$0xff]
    %v643 = vld [vmem:[%s2 + $0x1d0] sm:$0xff]
    %v644 = vld [vmem:[%s2 + $0x1d8] sm:$0xff]
    %v645 = vld [vmem:[%s2 + $0x1e0] sm:$0xff]
    %v646 = vld [vmem:[%s2 + $0x1e8] sm:$0xff]
    %v647 = vld [vmem:[%s2 + $0x1f0] sm:$0xff]
    %v648 = vld [vmem:[%s2 + $0x1f8] sm:$0xff]
    %649 = vmatprep.subr.mxu0 %v646
    %650 = vmatpush1.msra.mxu0 %v645
    %651 = vmatprep.subr.mxu0 %v642
    %652 = vmatpush1.msra.mxu0 %v641
    %653 = vmatprep.subr.mxu0 %v638
    %654 = vmatpush1.msra.mxu0 %v637
    %655 = vmatprep.subr.mxu0 %v634
    %656 = vmatpush1.msra.mxu0 %v633
    %657 = vmatprep.subr.mxu0 %v630
    %658 = vmatpush1.msra.mxu0 %v629
    %659 = vmatprep.subr.mxu0 %v626
    %660 = vmatpush1.msra.mxu0 %v625
    %661 = vmatprep.subr.mxu0 %v622
    %662 = vmatpush1.msra.mxu0 %v621
    %663 = vmatprep.subr.mxu0 %v618
    %664 = vmatpush1.msra.mxu0 %v617
    %665 = vmatprep.subr.mxu0 %v614
    %666 = vmatpush1.msra.mxu0 %v613
    %667 = vmatprep.subr.mxu0 %v610
    %668 = vmatpush1.msra.mxu0 %v609
    %669 = vmatprep.subr.mxu0 %v606
    %670 = vmatpush1.msra.mxu0 %v605
    %671 = vmatprep.subr.mxu0 %v602
    %672 = vmatpush1.msra.mxu0 %v601
    %673 = vmatprep.subr.mxu0 %v598
    %674 = vmatpush1.msra.mxu0 %v597
    %675 = vmatprep.subr.mxu0 %v594
    %676 = vmatpush1.msra.mxu0 %v593
    %677 = vmatprep.subr.mxu0 %v590
    %678 = vmatpush1.msra.mxu0 %v589
    %679 = vmatprep.subr.mxu0 %v586
    %680 = vmatpush1.msra.mxu0 %v585
    %681 = vmatprep.subr.mxu0 0.0
    %682 = vmatpush2.msra.mxu0 0.0
    %683 = vmatprep.subr.mxu0 0.0
    %684 = vmatpush2.msra.mxu0 0.0
    %685 = vmatprep.subr.mxu0 0.0
    %686 = vmatpush2.msra.mxu0 0.0
    %687 = vmatprep.subr.mxu0 0.0
    %688 = vmatpush2.msra.mxu0 0.0
    %689 = vmatprep.subr.mxu0 0.0
    %690 = vmatpush2.msra.mxu0 0.0
    %691 = vmatprep.subr.mxu0 0.0
    %692 = vmatpush2.msra.mxu0 0.0
    %693 = vmatprep.subr.mxu0 0.0
    %694 = vmatpush2.msra.mxu0 0.0
    %695 = vmatprep.subr.mxu0 0.0
    %696 = vmatpush2.msra.mxu0 0.0
    %697 = vmatprep.subr.mxu0 0.0
    %698 = vmatpush2.msra.mxu0 0.0
    %699 = vmatprep.subr.mxu0 0.0
    %700 = vmatpush2.msra.mxu0 0.0
    %701 = vmatprep.subr.mxu0 0.0
    %702 = vmatpush2.msra.mxu0 0.0
    %703 = vmatprep.subr.mxu0 0.0
    %704 = vmatpush2.msra.mxu0 0.0
    %705 = vmatprep.subr.mxu0 0.0
    %706 = vmatpush2.msra.mxu0 0.0
    %707 = vmatprep.subr.mxu0 0.0
    %708 = vmatpush2.msra.mxu0 0.0
    %709 = vmatprep.subr.mxu0 0.0
    %710 = vmatpush2.msra.mxu0 0.0
    %711 = vmatprep.subr.mxu0 0.0
    %712 = vmatpush2.msra.mxu0 0.0
    %713 = vmatprep.mubr.f32.mxu0 0.0
    %714 = vmatmul.mubr.f32.gmra.mxu0 %v583
    %v715 = vpop.f32.mrf.mxu0
    %v716 = vadd.f32 0.0, %v715
    %v717 = vpop.f32.mrf.mxu0
    %v718 = vadd.f32 0.0, %v717
    %719 = vdwg.mxu0
    %720 = vmatprep.subr.mxu0 %v648
    %721 = vmatpush1.msra.mxu0 %v647
    %722 = vmatprep.subr.mxu0 %v644
    %723 = vmatpush1.msra.mxu0 %v643
    %724 = vmatprep.subr.mxu0 %v640
    %725 = vmatpush1.msra.mxu0 %v639
    %726 = vmatprep.subr.mxu0 %v636
    %727 = vmatpush1.msra.mxu0 %v635
    %728 = vmatprep.subr.mxu0 %v632
    %729 = vmatpush1.msra.mxu0 %v631
    %730 = vmatprep.subr.mxu0 %v628
    %731 = vmatpush1.msra.mxu0 %v627
    %732 = vmatprep.subr.mxu0 %v624
    %733 = vmatpush1.msra.mxu0 %v623
    %734 = vmatprep.subr.mxu0 %v620
    %735 = vmatpush1.msra.mxu0 %v619
    %736 = vmatprep.subr.mxu0 %v616
    %737 = vmatpush1.msra.mxu0 %v615
    %738 = vmatprep.subr.mxu0 %v612
    %739 = vmatpush1.msra.mxu0 %v611
    %740 = vmatprep.subr.mxu0 %v608
    %741 = vmatpush1.msra.mxu0 %v607
    %742 = vmatprep.subr.mxu0 %v604
    %743 = vmatpush1.msra.mxu0 %v603
    %744 = vmatprep.subr.mxu0 %v600
    %745 = vmatpush1.msra.mxu0 %v599
    %746 = vmatprep.subr.mxu0 %v596
    %747 = vmatpush1.msra.mxu0 %v595
    %748 = vmatprep.subr.mxu0 %v592
    %749 = vmatpush1.msra.mxu0 %v591
    %750 = vmatprep.subr.mxu0 %v588
    %751 = vmatpush1.msra.mxu0 %v587
    %752 = vmatprep.subr.mxu0 0.0
    %753 = vmatpush2.msra.mxu0 0.0
    %754 = vmatprep.subr.mxu0 0.0
    %755 = vmatpush2.msra.mxu0 0.0
    %756 = vmatprep.subr.mxu0 0.0
    %757 = vmatpush2.msra.mxu0 0.0
    %758 = vmatprep.subr.mxu0 0.0
    %759 = vmatpush2.msra.mxu0 0.0
    %760 = vmatprep.subr.mxu0 0.0
    %761 = vmatpush2.msra.mxu0 0.0
    %762 = vmatprep.subr.mxu0 0.0
    %763 = vmatpush2.msra.mxu0 0.0
    %764 = vmatprep.subr.mxu0 0.0
    %765 = vmatpush2.msra.mxu0 0.0
    %766 = vmatprep.subr.mxu0 0.0
    %767 = vmatpush2.msra.mxu0 0.0
    %768 = vmatprep.subr.mxu0 0.0
    %769 = vmatpush2.msra.mxu0 0.0
    %770 = vmatprep.subr.mxu0 0.0
    %771 = vmatpush2.msra.mxu0 0.0
    %772 = vmatprep.subr.mxu0 0.0
    %773 = vmatpush2.msra.mxu0 0.0
    %774 = vmatprep.subr.mxu0 0.0
    %775 = vmatpush2.msra.mxu0 0.0
    %776 = vmatprep.subr.mxu0 0.0
    %777 = vmatpush2.msra.mxu0 0.0
    %778 = vmatprep.subr.mxu0 0.0
    %779 = vmatpush2.msra.mxu0 0.0
    %780 = vmatprep.subr.mxu0 0.0
    %781 = vmatpush2.msra.mxu0 0.0
    %782 = vmatprep.subr.mxu0 0.0
    %783 = vmatpush2.msra.mxu0 0.0
    %784 = vmatprep.mubr.f32.mxu0 0.0
    %785 = vmatmul.mubr.f32.gmra.mxu0 %v583
    %v786 = vpop.f32.mrf.mxu0
    %v787 = vadd.f32 0.0, %v786
    %v788 = vpop.f32.mrf.mxu0
    %v789 = vadd.f32 0.0, %v788
    %790 = vdwg.mxu0
    %v791 = vadd.f32 %v197, %v716
    %v792 = vadd.f32 %v199, %v718
    %v793 = vadd.f32 %v310, %v787
    %v794 = vadd.f32 %v312, %v789
    %v795 = vxor.u32 %v791, 2147483648
    %v796 = vmul.f32 %v795, 1.442695
    %v797 = vpow.pop %v796
    %v798 = vadd.f32 %v797, 1.0
    %v799 = vrcp.pop %v798
    %v800 = vmul.f32 1.0, %v799
    %v801 = vxor.u32 %v792, 2147483648
    %v802 = vmul.f32 %v801, 1.442695
    %v803 = vpow.pop %v802
    %v804 = vadd.f32 %v803, 1.0
    %v805 = vrcp.pop %v804
    %v806 = vmul.f32 1.0, %v805
    %v807 = vtanh.pop %v793
    %v808 = vxor.u32 %v794, 2147483648
    %v809 = vmul.f32 %v808, 1.442695
    %v810 = vpow.pop %v809
    %v811 = vadd.f32 %v810, 1.0
    %v812 = vrcp.pop %v811
    %v813 = vmul.f32 1.0, %v812
    %v814 = vmul.f32 %v806, %v581
    %v815 = vmul.f32 %v800, %v807
    %v816 = vadd.f32 %v814, %v815
    %v817 = vtanh.pop %v816
    %v818 = vmul.f32 %v813, %v817
    %819 = vst [vmem:[#allocation2 + $0x8] sm:$0xff] %v818
    %v820 = vld [vmem:[%s2] sm:$0xff]
    %v821 = vld [vmem:[%s2 + $0x8] sm:$0xff]
    %v822 = vld [vmem:[%s2 + $0x10] sm:$0xff]
    %v823 = vld [vmem:[%s2 + $0x18] sm:$0xff]
    %v824 = vld [vmem:[%s2 + $0x20] sm:$0xff]
    %v825 = vld [vmem:[%s2 + $0x28] sm:$0xff]
    %v826 = vld [vmem:[%s2 + $0x30] sm:$0xff]
    %v827 = vld [vmem:[%s2 + $0x38] sm:$0xff]
    %v828 = vld [vmem:[%s2 + $0x40] sm:$0xff]
    %v829 = vld [vmem:[%s2 + $0x48] sm:$0xff]
    %v830 = vld [vmem:[%s2 + $0x50] sm:$0xff]
    %v831 = vld [vmem:[%s2 + $0x58] sm:$0xff]
    %v832 = vld [vmem:[%s2 + $0x60] sm:$0xff]
    %v833 = vld [vmem:[%s2 + $0x68] sm:$0xff]
    %v834 = vld [vmem:[%s2 + $0x70] sm:$0xff]
    %v835 = vld [vmem:[%s2 + $0x78] sm:$0xff]
    %v836 = vld [vmem:[%s2 + $0x80] sm:$0xff]
    %v837 = vld [vmem:[%s2 + $0x88] sm:$0xff]
    %v838 = vld [vmem:[%s2 + $0x90] sm:$0xff]
    %v839 = vld [vmem:[%s2 + $0x98] sm:$0xff]
    %v840 = vld [vmem:[%s2 + $0xa0] sm:$0xff]
    %v841 = vld [vmem:[%s2 + $0xa8] sm:$0xff]
    %v842 = vld [vmem:[%s2 + $0xb0] sm:$0xff]
    %v843 = vld [vmem:[%s2 + $0xb8] sm:$0xff]
    %v844 = vld [vmem:[%s2 + $0xc0] sm:$0xff]
    %v845 = vld [vmem:[%s2 + $0xc8] sm:$0xff]
    %v846 = vld [vmem:[%s2 + $0xd0] sm:$0xff]
    %v847 = vld [vmem:[%s2 + $0xd8] sm:$0xff]
    %v848 = vld [vmem:[%s2 + $0xe0] sm:$0xff]
    %v849 = vld [vmem:[%s2 + $0xe8] sm:$0xff]
    %v850 = vld [vmem:[%s2 + $0xf0] sm:$0xff]
    %v851 = vld [vmem:[%s2 + $0xf8] sm:$0xff]
    %v852 = vld [vmem:[%s2 + $0x100] sm:$0xff]
    %v853 = vld [vmem:[%s2 + $0x108] sm:$0xff]
    %v854 = vld [vmem:[%s2 + $0x110] sm:$0xff]
    %v855 = vld [vmem:[%s2 + $0x118] sm:$0xff]
    %v856 = vld [vmem:[%s2 + $0x120] sm:$0xff]
    %v857 = vld [vmem:[%s2 + $0x128] sm:$0xff]
    %v858 = vld [vmem:[%s2 + $0x130] sm:$0xff]
    %v859 = vld [vmem:[%s2 + $0x138] sm:$0xff]
    %v860 = vld [vmem:[%s2 + $0x140] sm:$0xff]
    %v861 = vld [vmem:[%s2 + $0x148] sm:$0xff]
    %v862 = vld [vmem:[%s2 + $0x150] sm:$0xff]
    %v863 = vld [vmem:[%s2 + $0x158] sm:$0xff]
    %v864 = vld [vmem:[%s2 + $0x160] sm:$0xff]
    %v865 = vld [vmem:[%s2 + $0x168] sm:$0xff]
    %v866 = vld [vmem:[%s2 + $0x170] sm:$0xff]
    %v867 = vld [vmem:[%s2 + $0x178] sm:$0xff]
    %v868 = vld [vmem:[%s2 + $0x180] sm:$0xff]
    %v869 = vld [vmem:[%s2 + $0x188] sm:$0xff]
    %v870 = vld [vmem:[%s2 + $0x190] sm:$0xff]
    %v871 = vld [vmem:[%s2 + $0x198] sm:$0xff]
    %v872 = vld [vmem:[%s2 + $0x1a0] sm:$0xff]
    %v873 = vld [vmem:[%s2 + $0x1a8] sm:$0xff]
    %v874 = vld [vmem:[%s2 + $0x1b0] sm:$0xff]
    %v875 = vld [vmem:[%s2 + $0x1b8] sm:$0xff]
    %v876 = vld [vmem:[%s2 + $0x1c0] sm:$0xff]
    %v877 = vld [vmem:[%s2 + $0x1c8] sm:$0xff]
    %v878 = vld [vmem:[%s2 + $0x1d0] sm:$0xff]
    %v879 = vld [vmem:[%s2 + $0x1d8] sm:$0xff]
    %v880 = vld [vmem:[%s2 + $0x1e0] sm:$0xff]
    %v881 = vld [vmem:[%s2 + $0x1e8] sm:$0xff]
    %v882 = vld [vmem:[%s2 + $0x1f0] sm:$0xff]
    %v883 = vld [vmem:[%s2 + $0x1f8] sm:$0xff]
    %884 = vmatprep.subr.mxu0 %v881
    %885 = vmatpush1.msra.mxu0 %v880
    %886 = vmatprep.subr.mxu0 %v877
    %887 = vmatpush1.msra.mxu0 %v876
    %888 = vmatprep.subr.mxu0 %v873
    %889 = vmatpush1.msra.mxu0 %v872
    %890 = vmatprep.subr.mxu0 %v869
    %891 = vmatpush1.msra.mxu0 %v868
    %892 = vmatprep.subr.mxu0 %v865
    %893 = vmatpush1.msra.mxu0 %v864
    %894 = vmatprep.subr.mxu0 %v861
    %895 = vmatpush1.msra.mxu0 %v860
    %896 = vmatprep.subr.mxu0 %v857
    %897 = vmatpush1.msra.mxu0 %v856
    %898 = vmatprep.subr.mxu0 %v853
    %899 = vmatpush1.msra.mxu0 %v852
    %900 = vmatprep.subr.mxu0 %v849
    %901 = vmatpush1.msra.mxu0 %v848
    %902 = vmatprep.subr.mxu0 %v845
    %903 = vmatpush1.msra.mxu0 %v844
    %904 = vmatprep.subr.mxu0 %v841
    %905 = vmatpush1.msra.mxu0 %v840
    %906 = vmatprep.subr.mxu0 %v837
    %907 = vmatpush1.msra.mxu0 %v836
    %908 = vmatprep.subr.mxu0 %v833
    %909 = vmatpush1.msra.mxu0 %v832
    %910 = vmatprep.subr.mxu0 %v829
    %911 = vmatpush1.msra.mxu0 %v828
    %912 = vmatprep.subr.mxu0 %v825
    %913 = vmatpush1.msra.mxu0 %v824
    %914 = vmatprep.subr.mxu0 %v821
    %915 = vmatpush1.msra.mxu0 %v820
    %916 = vmatprep.subr.mxu0 0.0
    %917 = vmatpush2.msra.mxu0 0.0
    %918 = vmatprep.subr.mxu0 0.0
    %919 = vmatpush2.msra.mxu0 0.0
    %920 = vmatprep.subr.mxu0 0.0
    %921 = vmatpush2.msra.mxu0 0.0
    %922 = vmatprep.subr.mxu0 0.0
    %923 = vmatpush2.msra.mxu0 0.0
    %924 = vmatprep.subr.mxu0 0.0
    %925 = vmatpush2.msra.mxu0 0.0
    %926 = vmatprep.subr.mxu0 0.0
    %927 = vmatpush2.msra.mxu0 0.0
    %928 = vmatprep.subr.mxu0 0.0
    %929 = vmatpush2.msra.mxu0 0.0
    %930 = vmatprep.subr.mxu0 0.0
    %931 = vmatpush2.msra.mxu0 0.0
    %932 = vmatprep.subr.mxu0 0.0
    %933 = vmatpush2.msra.mxu0 0.0
    %934 = vmatprep.subr.mxu0 0.0
    %935 = vmatpush2.msra.mxu0 0.0
    %936 = vmatprep.subr.mxu0 0.0
    %937 = vmatpush2.msra.mxu0 0.0
    %938 = vmatprep.subr.mxu0 0.0
    %939 = vmatpush2.msra.mxu0 0.0
    %940 = vmatprep.subr.mxu0 0.0
    %941 = vmatpush2.msra.mxu0 0.0
    %942 = vmatprep.subr.mxu0 0.0
    %943 = vmatpush2.msra.mxu0 0.0
    %944 = vmatprep.subr.mxu0 0.0
    %945 = vmatpush2.msra.mxu0 0.0
    %946 = vmatprep.subr.mxu0 0.0
    %947 = vmatpush2.msra.mxu0 0.0
    %948 = vmatprep.mubr.f32.mxu0 0.0
    %949 = vmatmul.mubr.f32.gmra.mxu0 %v818
    %v950 = vpop.f32.mrf.mxu0
    %v951 = vadd.f32 0.0, %v950
    %v952 = vpop.f32.mrf.mxu0
    %v953 = vadd.f32 0.0, %v952
    %954 = vdwg.mxu0
    %955 = vmatprep.subr.mxu0 %v883
    %956 = vmatpush1.msra.mxu0 %v882
    %957 = vmatprep.subr.mxu0 %v879
    %958 = vmatpush1.msra.mxu0 %v878
    %959 = vmatprep.subr.mxu0 %v875
    %960 = vmatpush1.msra.mxu0 %v874
    %961 = vmatprep.subr.mxu0 %v871
    %962 = vmatpush1.msra.mxu0 %v870
    %963 = vmatprep.subr.mxu0 %v867
    %964 = vmatpush1.msra.mxu0 %v866
    %965 = vmatprep.subr.mxu0 %v863
    %966 = vmatpush1.msra.mxu0 %v862
    %967 = vmatprep.subr.mxu0 %v859
    %968 = vmatpush1.msra.mxu0 %v858
    %969 = vmatprep.subr.mxu0 %v855
    %970 = vmatpush1.msra.mxu0 %v854
    %971 = vmatprep.subr.mxu0 %v851
    %972 = vmatpush1.msra.mxu0 %v850
    %973 = vmatprep.subr.mxu0 %v847
    %974 = vmatpush1.msra.mxu0 %v846
    %975 = vmatprep.subr.mxu0 %v843
    %976 = vmatpush1.msra.mxu0 %v842
    %977 = vmatprep.subr.mxu0 %v839
    %978 = vmatpush1.msra.mxu0 %v838
    %979 = vmatprep.subr.mxu0 %v835
    %980 = vmatpush1.msra.mxu0 %v834
    %981 = vmatprep.subr.mxu0 %v831
    %982 = vmatpush1.msra.mxu0 %v830
    %983 = vmatprep.subr.mxu0 %v827
    %984 = vmatpush1.msra.mxu0 %v826
    %985 = vmatprep.subr.mxu0 %v823
    %986 = vmatpush1.msra.mxu0 %v822
    %987 = vmatprep.subr.mxu0 0.0
    %988 = vmatpush2.msra.mxu0 0.0
    %989 = vmatprep.subr.mxu0 0.0
    %990 = vmatpush2.msra.mxu0 0.0
    %991 = vmatprep.subr.mxu0 0.0
    %992 = vmatpush2.msra.mxu0 0.0
    %993 = vmatprep.subr.mxu0 0.0
    %994 = vmatpush2.msra.mxu0 0.0
    %995 = vmatprep.subr.mxu0 0.0
    %996 = vmatpush2.msra.mxu0 0.0
    %997 = vmatprep.subr.mxu0 0.0
    %998 = vmatpush2.msra.mxu0 0.0
    %999 = vmatprep.subr.mxu0 0.0
    %1000 = vmatpush2.msra.mxu0 0.0
    %1001 = vmatprep.subr.mxu0 0.0
    %1002 = vmatpush2.msra.mxu0 0.0
    %1003 = vmatprep.subr.mxu0 0.0
    %1004 = vmatpush2.msra.mxu0 0.0
    %1005 = vmatprep.subr.mxu0 0.0
    %1006 = vmatpush2.msra.mxu0 0.0
    %1007 = vmatprep.subr.mxu0 0.0
    %1008 = vmatpush2.msra.mxu0 0.0
    %1009 = vmatprep.subr.mxu0 0.0
    %1010 = vmatpush2.msra.mxu0 0.0
    %1011 = vmatprep.subr.mxu0 0.0
    %1012 = vmatpush2.msra.mxu0 0.0
    %1013 = vmatprep.subr.mxu0 0.0
    %1014 = vmatpush2.msra.mxu0 0.0
    %1015 = vmatprep.subr.mxu0 0.0
    %1016 = vmatpush2.msra.mxu0 0.0
    %1017 = vmatprep.subr.mxu0 0.0
    %1018 = vmatpush2.msra.mxu0 0.0
    %1019 = vmatprep.mubr.f32.mxu0 0.0
    %1020 = vmatmul.mubr.f32.gmra.mxu0 %v818
    %v1021 = vpop.f32.mrf.mxu0
    %v1022 = vadd.f32 0.0, %v1021
    %v1023 = vpop.f32.mrf.mxu0
    %v1024 = vadd.f32 0.0, %v1023
    %1025 = vdwg.mxu0
    %v1026 = vadd.f32 %v203, %v951
    %v1027 = vadd.f32 %v205, %v953
    %v1028 = vadd.f32 %v316, %v1022
    %v1029 = vadd.f32 %v318, %v1024
    %v1030 = vxor.u32 %v1026, 2147483648
    %v1031 = vmul.f32 %v1030, 1.442695
    %v1032 = vpow.pop %v1031
    %v1033 = vadd.f32 %v1032, 1.0
    %v1034 = vrcp.pop %v1033
    %v1035 = vmul.f32 1.0, %v1034
    %v1036 = vxor.u32 %v1027, 2147483648
    %v1037 = vmul.f32 %v1036, 1.442695
    %v1038 = vpow.pop %v1037
    %v1039 = vadd.f32 %v1038, 1.0
    %v1040 = vrcp.pop %v1039
    %v1041 = vmul.f32 1.0, %v1040
    %v1042 = vtanh.pop %v1028
    %v1043 = vxor.u32 %v1029, 2147483648
    %v1044 = vmul.f32 %v1043, 1.442695
    %v1045 = vpow.pop %v1044
    %v1046 = vadd.f32 %v1045, 1.0
    %v1047 = vrcp.pop %v1046
    %v1048 = vmul.f32 1.0, %v1047
    %v1049 = vmul.f32 %v1041, %v816
    %v1050 = vmul.f32 %v1035, %v1042
    %v1051 = vadd.f32 %v1049, %v1050
    %v1052 = vtanh.pop %v1051
    %v1053 = vmul.f32 %v1048, %v1052
    %1054 = vst [vmem:[#allocation2 + $0x10] sm:$0xff] %v1053
    %v1055 = vld [vmem:[%s2] sm:$0xff]
    %v1056 = vld [vmem:[%s2 + $0x8] sm:$0xff]
    %v1057 = vld [vmem:[%s2 + $0x10] sm:$0xff]
    %v1058 = vld [vmem:[%s2 + $0x18] sm:$0xff]
    %v1059 = vld [vmem:[%s2 + $0x20] sm:$0xff]
    %v1060 = vld [vmem:[%s2 + $0x28] sm:$0xff]
    %v1061 = vld [vmem:[%s2 + $0x30] sm:$0xff]
    %v1062 = vld [vmem:[%s2 + $0x38] sm:$0xff]
    %v1063 = vld [vmem:[%s2 + $0x40] sm:$0xff]
    %v1064 = vld [vmem:[%s2 + $0x48] sm:$0xff]
    %v1065 = vld [vmem:[%s2 + $0x50] sm:$0xff]
    %v1066 = vld [vmem:[%s2 + $0x58] sm:$0xff]
    %v1067 = vld [vmem:[%s2 + $0x60] sm:$0xff]
    %v1068 = vld [vmem:[%s2 + $0x68] sm:$0xff]
    %v1069 = vld [vmem:[%s2 + $0x70] sm:$0xff]
    %v1070 = vld [vmem:[%s2 + $0x78] sm:$0xff]
    %v1071 = vld [vmem:[%s2 + $0x80] sm:$0xff]
    %v1072 = vld [vmem:[%s2 + $0x88] sm:$0xff]
    %v1073 = vld [vmem:[%s2 + $0x90] sm:$0xff]
    %v1074 = vld [vmem:[%s2 + $0x98] sm:$0xff]
    %v1075 = vld [vmem:[%s2 + $0xa0] sm:$0xff]
    %v1076 = vld [vmem:[%s2 + $0xa8] sm:$0xff]
    %v1077 = vld [vmem:[%s2 + $0xb0] sm:$0xff]
    %v1078 = vld [vmem:[%s2 + $0xb8] sm:$0xff]
    %v1079 = vld [vmem:[%s2 + $0xc0] sm:$0xff]
    %v1080 = vld [vmem:[%s2 + $0xc8] sm:$0xff]
    %v1081 = vld [vmem:[%s2 + $0xd0] sm:$0xff]
    %v1082 = vld [vmem:[%s2 + $0xd8] sm:$0xff]
    %v1083 = vld [vmem:[%s2 + $0xe0] sm:$0xff]
    %v1084 = vld [vmem:[%s2 + $0xe8] sm:$0xff]
    %v1085 = vld [vmem:[%s2 + $0xf0] sm:$0xff]
    %v1086 = vld [vmem:[%s2 + $0xf8] sm:$0xff]
    %v1087 = vld [vmem:[%s2 + $0x100] sm:$0xff]
    %v1088 = vld [vmem:[%s2 + $0x108] sm:$0xff]
    %v1089 = vld [vmem:[%s2 + $0x110] sm:$0xff]
    %v1090 = vld [vmem:[%s2 + $0x118] sm:$0xff]
    %v1091 = vld [vmem:[%s2 + $0x120] sm:$0xff]
    %v1092 = vld [vmem:[%s2 + $0x128] sm:$0xff]
    %v1093 = vld [vmem:[%s2 + $0x130] sm:$0xff]
    %v1094 = vld [vmem:[%s2 + $0x138] sm:$0xff]
    %v1095 = vld [vmem:[%s2 + $0x140] sm:$0xff]
    %v1096 = vld [vmem:[%s2 + $0x148] sm:$0xff]
    %v1097 = vld [vmem:[%s2 + $0x150] sm:$0xff]
    %v1098 = vld [vmem:[%s2 + $0x158] sm:$0xff]
    %v1099 = vld [vmem:[%s2 + $0x160] sm:$0xff]
    %v1100 = vld [vmem:[%s2 + $0x168] sm:$0xff]
    %v1101 = vld [vmem:[%s2 + $0x170] sm:$0xff]
    %v1102 = vld [vmem:[%s2 + $0x178] sm:$0xff]
    %v1103 = vld [vmem:[%s2 + $0x180] sm:$0xff]
    %v1104 = vld [vmem:[%s2 + $0x188] sm:$0xff]
    %v1105 = vld [vmem:[%s2 + $0x190] sm:$0xff]
    %v1106 = vld [vmem:[%s2 + $0x198] sm:$0xff]
    %v1107 = vld [vmem:[%s2 + $0x1a0] sm:$0xff]
    %v1108 = vld [vmem:[%s2 + $0x1a8] sm:$0xff]
    %v1109 = vld [vmem:[%s2 + $0x1b0] sm:$0xff]
    %v1110 = vld [vmem:[%s2 + $0x1b8] sm:$0xff]
    %v1111 = vld [vmem:[%s2 + $0x1c0] sm:$0xff]
    %v1112 = vld [vmem:[%s2 + $0x1c8] sm:$0xff]
    %v1113 = vld [vmem:[%s2 + $0x1d0] sm:$0xff]
    %v1114 = vld [vmem:[%s2 + $0x1d8] sm:$0xff]
    %v1115 = vld [vmem:[%s2 + $0x1e0] sm:$0xff]
    %v1116 = vld [vmem:[%s2 + $0x1e8] sm:$0xff]
    %v1117 = vld [vmem:[%s2 + $0x1f0] sm:$0xff]
    %v1118 = vld [vmem:[%s2 + $0x1f8] sm:$0xff]
    %1119 = vmatprep.subr.mxu0 %v1116
    %1120 = vmatpush1.msra.mxu0 %v1115
    %1121 = vmatprep.subr.mxu0 %v1112
    %1122 = vmatpush1.msra.mxu0 %v1111
    %1123 = vmatprep.subr.mxu0 %v1108
    %1124 = vmatpush1.msra.mxu0 %v1107
    %1125 = vmatprep.subr.mxu0 %v1104
    %1126 = vmatpush1.msra.mxu0 %v1103
    %1127 = vmatprep.subr.mxu0 %v1100
    %1128 = vmatpush1.msra.mxu0 %v1099
    %1129 = vmatprep.subr.mxu0 %v1096
    %1130 = vmatpush1.msra.mxu0 %v1095
    %1131 = vmatprep.subr.mxu0 %v1092
    %1132 = vmatpush1.msra.mxu0 %v1091
    %1133 = vmatprep.subr.mxu0 %v1088
    %1134 = vmatpush1.msra.mxu0 %v1087
    %1135 = vmatprep.subr.mxu0 %v1084
    %1136 = vmatpush1.msra.mxu0 %v1083
    %1137 = vmatprep.subr.mxu0 %v1080
    %1138 = vmatpush1.msra.mxu0 %v1079
    %1139 = vmatprep.subr.mxu0 %v1076
    %1140 = vmatpush1.msra.mxu0 %v1075
    %1141 = vmatprep.subr.mxu0 %v1072
    %1142 = vmatpush1.msra.mxu0 %v1071
    %1143 = vmatprep.subr.mxu0 %v1068
    %1144 = vmatpush1.msra.mxu0 %v1067
    %1145 = vmatprep.subr.mxu0 %v1064
    %1146 = vmatpush1.msra.mxu0 %v1063
    %1147 = vmatprep.subr.mxu0 %v1060
    %1148 = vmatpush1.msra.mxu0 %v1059
    %1149 = vmatprep.subr.mxu0 %v1056
    %1150 = vmatpush1.msra.mxu0 %v1055
    %1151 = vmatprep.subr.mxu0 0.0
    %1152 = vmatpush2.msra.mxu0 0.0
    %1153 = vmatprep.subr.mxu0 0.0
    %1154 = vmatpush2.msra.mxu0 0.0
    %1155 = vmatprep.subr.mxu0 0.0
    %1156 = vmatpush2.msra.mxu0 0.0
    %1157 = vmatprep.subr.mxu0 0.0
    %1158 = vmatpush2.msra.mxu0 0.0
    %1159 = vmatprep.subr.mxu0 0.0
    %1160 = vmatpush2.msra.mxu0 0.0
    %1161 = vmatprep.subr.mxu0 0.0
    %1162 = vmatpush2.msra.mxu0 0.0
    %1163 = vmatprep.subr.mxu0 0.0
    %1164 = vmatpush2.msra.mxu0 0.0
    %1165 = vmatprep.subr.mxu0 0.0
    %1166 = vmatpush2.msra.mxu0 0.0
    %1167 = vmatprep.subr.mxu0 0.0
    %1168 = vmatpush2.msra.mxu0 0.0
    %1169 = vmatprep.subr.mxu0 0.0
    %1170 = vmatpush2.msra.mxu0 0.0
    %1171 = vmatprep.subr.mxu0 0.0
    %1172 = vmatpush2.msra.mxu0 0.0
    %1173 = vmatprep.subr.mxu0 0.0
    %1174 = vmatpush2.msra.mxu0 0.0
    %1175 = vmatprep.subr.mxu0 0.0
    %1176 = vmatpush2.msra.mxu0 0.0
    %1177 = vmatprep.subr.mxu0 0.0
    %1178 = vmatpush2.msra.mxu0 0.0
    %1179 = vmatprep.subr.mxu0 0.0
    %1180 = vmatpush2.msra.mxu0 0.0
    %1181 = vmatprep.subr.mxu0 0.0
    %1182 = vmatpush2.msra.mxu0 0.0
    %1183 = vmatprep.mubr.f32.mxu0 0.0
    %1184 = vmatmul.mubr.f32.gmra.mxu0 %v1053
    %v1185 = vpop.f32.mrf.mxu0
    %v1186 = vadd.f32 0.0, %v1185
    %v1187 = vpop.f32.mrf.mxu0
    %v1188 = vadd.f32 0.0, %v1187
    %1189 = vdwg.mxu0
    %1190 = vmatprep.subr.mxu0 %v1118
    %1191 = vmatpush1.msra.mxu0 %v1117
    %1192 = vmatprep.subr.mxu0 %v1114
    %1193 = vmatpush1.msra.mxu0 %v1113
    %1194 = vmatprep.subr.mxu0 %v1110
    %1195 = vmatpush1.msra.mxu0 %v1109
    %1196 = vmatprep.subr.mxu0 %v1106
    %1197 = vmatpush1.msra.mxu0 %v1105
    %1198 = vmatprep.subr.mxu0 %v1102
    %1199 = vmatpush1.msra.mxu0 %v1101
    %1200 = vmatprep.subr.mxu0 %v1098
    %1201 = vmatpush1.msra.mxu0 %v1097
    %1202 = vmatprep.subr.mxu0 %v1094
    %1203 = vmatpush1.msra.mxu0 %v1093
    %1204 = vmatprep.subr.mxu0 %v1090
    %1205 = vmatpush1.msra.mxu0 %v1089
    %1206 = vmatprep.subr.mxu0 %v1086
    %1207 = vmatpush1.msra.mxu0 %v1085
    %1208 = vmatprep.subr.mxu0 %v1082
    %1209 = vmatpush1.msra.mxu0 %v1081
    %1210 = vmatprep.subr.mxu0 %v1078
    %1211 = vmatpush1.msra.mxu0 %v1077
    %1212 = vmatprep.subr.mxu0 %v1074
    %1213 = vmatpush1.msra.mxu0 %v1073
    %1214 = vmatprep.subr.mxu0 %v1070
    %1215 = vmatpush1.msra.mxu0 %v1069
    %1216 = vmatprep.subr.mxu0 %v1066
    %1217 = vmatpush1.msra.mxu0 %v1065
    %1218 = vmatprep.subr.mxu0 %v1062
    %1219 = vmatpush1.msra.mxu0 %v1061
    %1220 = vmatprep.subr.mxu0 %v1058
    %1221 = vmatpush1.msra.mxu0 %v1057
    %1222 = vmatprep.subr.mxu0 0.0
    %1223 = vmatpush2.msra.mxu0 0.0
    %1224 = vmatprep.subr.mxu0 0.0
    %1225 = vmatpush2.msra.mxu0 0.0
    %1226 = vmatprep.subr.mxu0 0.0
    %1227 = vmatpush2.msra.mxu0 0.0
    %1228 = vmatprep.subr.mxu0 0.0
    %1229 = vmatpush2.msra.mxu0 0.0
    %1230 = vmatprep.subr.mxu0 0.0
    %1231 = vmatpush2.msra.mxu0 0.0
    %1232 = vmatprep.subr.mxu0 0.0
    %1233 = vmatpush2.msra.mxu0 0.0
    %1234 = vmatprep.subr.mxu0 0.0
    %1235 = vmatpush2.msra.mxu0 0.0
    %1236 = vmatprep.subr.mxu0 0.0
    %1237 = vmatpush2.msra.mxu0 0.0
    %1238 = vmatprep.subr.mxu0 0.0
    %1239 = vmatpush2.msra.mxu0 0.0
    %1240 = vmatprep.subr.mxu0 0.0
    %1241 = vmatpush2.msra.mxu0 0.0
    %1242 = vmatprep.subr.mxu0 0.0
    %1243 = vmatpush2.msra.mxu0 0.0
    %1244 = vmatprep.subr.mxu0 0.0
    %1245 = vmatpush2.msra.mxu0 0.0
    %1246 = vmatprep.subr.mxu0 0.0
    %1247 = vmatpush2.msra.mxu0 0.0
    %1248 = vmatprep.subr.mxu0 0.0
    %1249 = vmatpush2.msra.mxu0 0.0
    %1250 = vmatprep.subr.mxu0 0.0
    %1251 = vmatpush2.msra.mxu0 0.0
    %1252 = vmatprep.subr.mxu0 0.0
    %1253 = vmatpush2.msra.mxu0 0.0
    %1254 = vmatprep.mubr.f32.mxu0 0.0
    %1255 = vmatmul.mubr.f32.gmra.mxu0 %v1053
    %v1256 = vpop.f32.mrf.mxu0
    %v1257 = vadd.f32 0.0, %v1256
    %v1258 = vpop.f32.mrf.mxu0
    %v1259 = vadd.f32 0.0, %v1258
    %1260 = vdwg.mxu0
    %v1261 = vadd.f32 %v209, %v1186
    %v1262 = vadd.f32 %v211, %v1188
    %v1263 = vadd.f32 %v322, %v1257
    %v1264 = vadd.f32 %v324, %v1259
    %v1265 = vxor.u32 %v1261, 2147483648
    %v1266 = vmul.f32 %v1265, 1.442695
    %v1267 = vpow.pop %v1266
    %v1268 = vadd.f32 %v1267, 1.0
    %v1269 = vrcp.pop %v1268
    %v1270 = vmul.f32 1.0, %v1269
    %v1271 = vxor.u32 %v1262, 2147483648
    %v1272 = vmul.f32 %v1271, 1.442695
    %v1273 = vpow.pop %v1272
    %v1274 = vadd.f32 %v1273, 1.0
    %v1275 = vrcp.pop %v1274
    %v1276 = vmul.f32 1.0, %v1275
    %v1277 = vtanh.pop %v1263
    %v1278 = vxor.u32 %v1264, 2147483648
    %v1279 = vmul.f32 %v1278, 1.442695
    %v1280 = vpow.pop %v1279
    %v1281 = vadd.f32 %v1280, 1.0
    %v1282 = vrcp.pop %v1281
    %v1283 = vmul.f32 1.0, %v1282
    %v1284 = vmul.f32 %v1276, %v1051
    %v1285 = vmul.f32 %v1270, %v1277
    %v1286 = vadd.f32 %v1284, %v1285
    %v1287 = vtanh.pop %v1286
    %v1288 = vmul.f32 %v1283, %v1287
    %1289 = vst [vmem:[#allocation2 + $0x18] sm:$0xff] %v1288
    %v1290 = vld [vmem:[%s2] sm:$0xff]
    %v1291 = vld [vmem:[%s2 + $0x8] sm:$0xff]
    %v1292 = vld [vmem:[%s2 + $0x10] sm:$0xff]
    %v1293 = vld [vmem:[%s2 + $0x18] sm:$0xff]
    %v1294 = vld [vmem:[%s2 + $0x20] sm:$0xff]
    %v1295 = vld [vmem:[%s2 + $0x28] sm:$0xff]
    %v1296 = vld [vmem:[%s2 + $0x30] sm:$0xff]
    %v1297 = vld [vmem:[%s2 + $0x38] sm:$0xff]
    %v1298 = vld [vmem:[%s2 + $0x40] sm:$0xff]
    %v1299 = vld [vmem:[%s2 + $0x48] sm:$0xff]
    %v1300 = vld [vmem:[%s2 + $0x50] sm:$0xff]
    %v1301 = vld [vmem:[%s2 + $0x58] sm:$0xff]
    %v1302 = vld [vmem:[%s2 + $0x60] sm:$0xff]
    %v1303 = vld [vmem:[%s2 + $0x68] sm:$0xff]
    %v1304 = vld [vmem:[%s2 + $0x70] sm:$0xff]
    %v1305 = vld [vmem:[%s2 + $0x78] sm:$0xff]
    %v1306 = vld [vmem:[%s2 + $0x80] sm:$0xff]
    %v1307 = vld [vmem:[%s2 + $0x88] sm:$0xff]
    %v1308 = vld [vmem:[%s2 + $0x90] sm:$0xff]
    %v1309 = vld [vmem:[%s2 + $0x98] sm:$0xff]
    %v1310 = vld [vmem:[%s2 + $0xa0] sm:$0xff]
    %v1311 = vld [vmem:[%s2 + $0xa8] sm:$0xff]
    %v1312 = vld [vmem:[%s2 + $0xb0] sm:$0xff]
    %v1313 = vld [vmem:[%s2 + $0xb8] sm:$0xff]
    %v1314 = vld [vmem:[%s2 + $0xc0] sm:$0xff]
    %v1315 = vld [vmem:[%s2 + $0xc8] sm:$0xff]
    %v1316 = vld [vmem:[%s2 + $0xd0] sm:$0xff]
    %v1317 = vld [vmem:[%s2 + $0xd8] sm:$0xff]
    %v1318 = vld [vmem:[%s2 + $0xe0] sm:$0xff]
    %v1319 = vld [vmem:[%s2 + $0xe8] sm:$0xff]
    %v1320 = vld [vmem:[%s2 + $0xf0] sm:$0xff]
    %v1321 = vld [vmem:[%s2 + $0xf8] sm:$0xff]
    %v1322 = vld [vmem:[%s2 + $0x100] sm:$0xff]
    %v1323 = vld [vmem:[%s2 + $0x108] sm:$0xff]
    %v1324 = vld [vmem:[%s2 + $0x110] sm:$0xff]
    %v1325 = vld [vmem:[%s2 + $0x118] sm:$0xff]
    %v1326 = vld [vmem:[%s2 + $0x120] sm:$0xff]
    %v1327 = vld [vmem:[%s2 + $0x128] sm:$0xff]
    %v1328 = vld [vmem:[%s2 + $0x130] sm:$0xff]
    %v1329 = vld [vmem:[%s2 + $0x138] sm:$0xff]
    %v1330 = vld [vmem:[%s2 + $0x140] sm:$0xff]
    %v1331 = vld [vmem:[%s2 + $0x148] sm:$0xff]
    %v1332 = vld [vmem:[%s2 + $0x150] sm:$0xff]
    %v1333 = vld [vmem:[%s2 + $0x158] sm:$0xff]
    %v1334 = vld [vmem:[%s2 + $0x160] sm:$0xff]
    %v1335 = vld [vmem:[%s2 + $0x168] sm:$0xff]
    %v1336 = vld [vmem:[%s2 + $0x170] sm:$0xff]
    %v1337 = vld [vmem:[%s2 + $0x178] sm:$0xff]
    %v1338 = vld [vmem:[%s2 + $0x180] sm:$0xff]
    %v1339 = vld [vmem:[%s2 + $0x188] sm:$0xff]
    %v1340 = vld [vmem:[%s2 + $0x190] sm:$0xff]
    %v1341 = vld [vmem:[%s2 + $0x198] sm:$0xff]
    %v1342 = vld [vmem:[%s2 + $0x1a0] sm:$0xff]
    %v1343 = vld [vmem:[%s2 + $0x1a8] sm:$0xff]
    %v1344 = vld [vmem:[%s2 + $0x1b0] sm:$0xff]
    %v1345 = vld [vmem:[%s2 + $0x1b8] sm:$0xff]
    %v1346 = vld [vmem:[%s2 + $0x1c0] sm:$0xff]
    %v1347 = vld [vmem:[%s2 + $0x1c8] sm:$0xff]
    %v1348 = vld [vmem:[%s2 + $0x1d0] sm:$0xff]
    %v1349 = vld [vmem:[%s2 + $0x1d8] sm:$0xff]
    %v1350 = vld [vmem:[%s2 + $0x1e0] sm:$0xff]
    %v1351 = vld [vmem:[%s2 + $0x1e8] sm:$0xff]
    %v1352 = vld [vmem:[%s2 + $0x1f0] sm:$0xff]
    %v1353 = vld [vmem:[%s2 + $0x1f8] sm:$0xff]
    %1354 = vmatprep.subr.mxu0 %v1351
    %1355 = vmatpush1.msra.mxu0 %v1350
    %1356 = vmatprep.subr.mxu0 %v1347
    %1357 = vmatpush1.msra.mxu0 %v1346
    %1358 = vmatprep.subr.mxu0 %v1343
    %1359 = vmatpush1.msra.mxu0 %v1342
    %1360 = vmatprep.subr.mxu0 %v1339
    %1361 = vmatpush1.msra.mxu0 %v1338
    %1362 = vmatprep.subr.mxu0 %v1335
    %1363 = vmatpush1.msra.mxu0 %v1334
    %1364 = vmatprep.subr.mxu0 %v1331
    %1365 = vmatpush1.msra.mxu0 %v1330
    %1366 = vmatprep.subr.mxu0 %v1327
    %1367 = vmatpush1.msra.mxu0 %v1326
    %1368 = vmatprep.subr.mxu0 %v1323
    %1369 = vmatpush1.msra.mxu0 %v1322
    %1370 = vmatprep.subr.mxu0 %v1319
    %1371 = vmatpush1.msra.mxu0 %v1318
    %1372 = vmatprep.subr.mxu0 %v1315
    %1373 = vmatpush1.msra.mxu0 %v1314
    %1374 = vmatprep.subr.mxu0 %v1311
    %1375 = vmatpush1.msra.mxu0 %v1310
    %1376 = vmatprep.subr.mxu0 %v1307
    %1377 = vmatpush1.msra.mxu0 %v1306
    %1378 = vmatprep.subr.mxu0 %v1303
    %1379 = vmatpush1.msra.mxu0 %v1302
    %1380 = vmatprep.subr.mxu0 %v1299
    %1381 = vmatpush1.msra.mxu0 %v1298
    %1382 = vmatprep.subr.mxu0 %v1295
    %1383 = vmatpush1.msra.mxu0 %v1294
    %1384 = vmatprep.subr.mxu0 %v1291
    %1385 = vmatpush1.msra.mxu0 %v1290
    %1386 = vmatprep.subr.mxu0 0.0
    %1387 = vmatpush2.msra.mxu0 0.0
    %1388 = vmatprep.subr.mxu0 0.0
    %1389 = vmatpush2.msra.mxu0 0.0
    %1390 = vmatprep.subr.mxu0 0.0
    %1391 = vmatpush2.msra.mxu0 0.0
    %1392 = vmatprep.subr.mxu0 0.0
    %1393 = vmatpush2.msra.mxu0 0.0
    %1394 = vmatprep.subr.mxu0 0.0
    %1395 = vmatpush2.msra.mxu0 0.0
    %1396 = vmatprep.subr.mxu0 0.0
    %1397 = vmatpush2.msra.mxu0 0.0
    %1398 = vmatprep.subr.mxu0 0.0
    %1399 = vmatpush2.msra.mxu0 0.0
    %1400 = vmatprep.subr.mxu0 0.0
    %1401 = vmatpush2.msra.mxu0 0.0
    %1402 = vmatprep.subr.mxu0 0.0
    %1403 = vmatpush2.msra.mxu0 0.0
    %1404 = vmatprep.subr.mxu0 0.0
    %1405 = vmatpush2.msra.mxu0 0.0
    %1406 = vmatprep.subr.mxu0 0.0
    %1407 = vmatpush2.msra.mxu0 0.0
    %1408 = vmatprep.subr.mxu0 0.0
    %1409 = vmatpush2.msra.mxu0 0.0
    %1410 = vmatprep.subr.mxu0 0.0
    %1411 = vmatpush2.msra.mxu0 0.0
    %1412 = vmatprep.subr.mxu0 0.0
    %1413 = vmatpush2.msra.mxu0 0.0
    %1414 = vmatprep.subr.mxu0 0.0
    %1415 = vmatpush2.msra.mxu0 0.0
    %1416 = vmatprep.subr.mxu0 0.0
    %1417 = vmatpush2.msra.mxu0 0.0
    %1418 = vmatprep.mubr.f32.mxu0 0.0
    %1419 = vmatmul.mubr.f32.gmra.mxu0 %v1288
    %v1420 = vpop.f32.mrf.mxu0
    %v1421 = vadd.f32 0.0, %v1420
    %v1422 = vpop.f32.mrf.mxu0
    %v1423 = vadd.f32 0.0, %v1422
    %1424 = vdwg.mxu0
    %1425 = vmatprep.subr.mxu0 %v1353
    %1426 = vmatpush1.msra.mxu0 %v1352
    %1427 = vmatprep.subr.mxu0 %v1349
    %1428 = vmatpush1.msra.mxu0 %v1348
    %1429 = vmatprep.subr.mxu0 %v1345
    %1430 = vmatpush1.msra.mxu0 %v1344
    %1431 = vmatprep.subr.mxu0 %v1341
    %1432 = vmatpush1.msra.mxu0 %v1340
    %1433 = vmatprep.subr.mxu0 %v1337
    %1434 = vmatpush1.msra.mxu0 %v1336
    %1435 = vmatprep.subr.mxu0 %v1333
    %1436 = vmatpush1.msra.mxu0 %v1332
    %1437 = vmatprep.subr.mxu0 %v1329
    %1438 = vmatpush1.msra.mxu0 %v1328
    %1439 = vmatprep.subr.mxu0 %v1325
    %1440 = vmatpush1.msra.mxu0 %v1324
    %1441 = vmatprep.subr.mxu0 %v1321
    %1442 = vmatpush1.msra.mxu0 %v1320
    %1443 = vmatprep.subr.mxu0 %v1317
    %1444 = vmatpush1.msra.mxu0 %v1316
    %1445 = vmatprep.subr.mxu0 %v1313
    %1446 = vmatpush1.msra.mxu0 %v1312
    %1447 = vmatprep.subr.mxu0 %v1309
    %1448 = vmatpush1.msra.mxu0 %v1308
    %1449 = vmatprep.subr.mxu0 %v1305
    %1450 = vmatpush1.msra.mxu0 %v1304
    %1451 = vmatprep.subr.mxu0 %v1301
    %1452 = vmatpush1.msra.mxu0 %v1300
    %1453 = vmatprep.subr.mxu0 %v1297
    %1454 = vmatpush1.msra.mxu0 %v1296
    %1455 = vmatprep.subr.mxu0 %v1293
    %1456 = vmatpush1.msra.mxu0 %v1292
    %1457 = vmatprep.subr.mxu0 0.0
    %1458 = vmatpush2.msra.mxu0 0.0
    %1459 = vmatprep.subr.mxu0 0.0
    %1460 = vmatpush2.msra.mxu0 0.0
    %1461 = vmatprep.subr.mxu0 0.0
    %1462 = vmatpush2.msra.mxu0 0.0
    %1463 = vmatprep.subr.mxu0 0.0
    %1464 = vmatpush2.msra.mxu0 0.0
    %1465 = vmatprep.subr.mxu0 0.0
    %1466 = vmatpush2.msra.mxu0 0.0
    %1467 = vmatprep.subr.mxu0 0.0
    %1468 = vmatpush2.msra.mxu0 0.0
    %1469 = vmatprep.subr.mxu0 0.0
    %1470 = vmatpush2.msra.mxu0 0.0
    %1471 = vmatprep.subr.mxu0 0.0
    %1472 = vmatpush2.msra.mxu0 0.0
    %1473 = vmatprep.subr.mxu0 0.0
    %1474 = vmatpush2.msra.mxu0 0.0
    %1475 = vmatprep.subr.mxu0 0.0
    %1476 = vmatpush2.msra.mxu0 0.0
    %1477 = vmatprep.subr.mxu0 0.0
    %1478 = vmatpush2.msra.mxu0 0.0
    %1479 = vmatprep.subr.mxu0 0.0
    %1480 = vmatpush2.msra.mxu0 0.0
    %1481 = vmatprep.subr.mxu0 0.0
    %1482 = vmatpush2.msra.mxu0 0.0
    %1483 = vmatprep.subr.mxu0 0.0
    %1484 = vmatpush2.msra.mxu0 0.0
    %1485 = vmatprep.subr.mxu0 0.0
    %1486 = vmatpush2.msra.mxu0 0.0
    %1487 = vmatprep.subr.mxu0 0.0
    %1488 = vmatpush2.msra.mxu0 0.0
    %1489 = vmatprep.mubr.f32.mxu0 0.0
    %1490 = vmatmul.mubr.f32.gmra.mxu0 %v1288
    %v1491 = vpop.f32.mrf.mxu0
    %v1492 = vadd.f32 0.0, %v1491
    %v1493 = vpop.f32.mrf.mxu0
    %v1494 = vadd.f32 0.0, %v1493
    %1495 = vdwg.mxu0
    %v1496 = vadd.f32 %v215, %v1421
    %v1497 = vadd.f32 %v217, %v1423
    %v1498 = vadd.f32 %v328, %v1492
    %v1499 = vadd.f32 %v330, %v1494
    %v1500 = vxor.u32 %v1496, 2147483648
    %v1501 = vmul.f32 %v1500, 1.442695
    %v1502 = vpow.pop %v1501
    %v1503 = vadd.f32 %v1502, 1.0
    %v1504 = vrcp.pop %v1503
    %v1505 = vmul.f32 1.0, %v1504
    %v1506 = vxor.u32 %v1497, 2147483648
    %v1507 = vmul.f32 %v1506, 1.442695
    %v1508 = vpow.pop %v1507
    %v1509 = vadd.f32 %v1508, 1.0
    %v1510 = vrcp.pop %v1509
    %v1511 = vmul.f32 1.0, %v1510
    %v1512 = vtanh.pop %v1498
    %v1513 = vxor.u32 %v1499, 2147483648
    %v1514 = vmul.f32 %v1513, 1.442695
    %v1515 = vpow.pop %v1514
    %v1516 = vadd.f32 %v1515, 1.0
    %v1517 = vrcp.pop %v1516
    %v1518 = vmul.f32 1.0, %v1517
    %v1519 = vmul.f32 %v1511, %v1286
    %v1520 = vmul.f32 %v1505, %v1512
    %v1521 = vadd.f32 %v1519, %v1520
    %v1522 = vtanh.pop %v1521
    %v1523 = vmul.f32 %v1518, %v1522
    %1524 = vst [vmem:[#allocation2 + $0x20] sm:$0xff] %v1523
    %v1525 = vld [vmem:[%s2] sm:$0xff]
    %v1526 = vld [vmem:[%s2 + $0x8] sm:$0xff]
    %v1527 = vld [vmem:[%s2 + $0x10] sm:$0xff]
    %v1528 = vld [vmem:[%s2 + $0x18] sm:$0xff]
    %v1529 = vld [vmem:[%s2 + $0x20] sm:$0xff]
    %v1530 = vld [vmem:[%s2 + $0x28] sm:$0xff]
    %v1531 = vld [vmem:[%s2 + $0x30] sm:$0xff]
    %v1532 = vld [vmem:[%s2 + $0x38] sm:$0xff]
    %v1533 = vld [vmem:[%s2 + $0x40] sm:$0xff]
    %v1534 = vld [vmem:[%s2 + $0x48] sm:$0xff]
    %v1535 = vld [vmem:[%s2 + $0x50] sm:$0xff]
    %v1536 = vld [vmem:[%s2 + $0x58] sm:$0xff]
    %v1537 = vld [vmem:[%s2 + $0x60] sm:$0xff]
    %v1538 = vld [vmem:[%s2 + $0x68] sm:$0xff]
    %v1539 = vld [vmem:[%s2 + $0x70] sm:$0xff]
    %v1540 = vld [vmem:[%s2 + $0x78] sm:$0xff]
    %v1541 = vld [vmem:[%s2 + $0x80] sm:$0xff]
    %v1542 = vld [vmem:[%s2 + $0x88] sm:$0xff]
    %v1543 = vld [vmem:[%s2 + $0x90] sm:$0xff]
    %v1544 = vld [vmem:[%s2 + $0x98] sm:$0xff]
    %v1545 = vld [vmem:[%s2 + $0xa0] sm:$0xff]
    %v1546 = vld [vmem:[%s2 + $0xa8] sm:$0xff]
    %v1547 = vld [vmem:[%s2 + $0xb0] sm:$0xff]
    %v1548 = vld [vmem:[%s2 + $0xb8] sm:$0xff]
    %v1549 = vld [vmem:[%s2 + $0xc0] sm:$0xff]
    %v1550 = vld [vmem:[%s2 + $0xc8] sm:$0xff]
    %v1551 = vld [vmem:[%s2 + $0xd0] sm:$0xff]
    %v1552 = vld [vmem:[%s2 + $0xd8] sm:$0xff]
    %v1553 = vld [vmem:[%s2 + $0xe0] sm:$0xff]
    %v1554 = vld [vmem:[%s2 + $0xe8] sm:$0xff]
    %v1555 = vld [vmem:[%s2 + $0xf0] sm:$0xff]
    %v1556 = vld [vmem:[%s2 + $0xf8] sm:$0xff]
    %v1557 = vld [vmem:[%s2 + $0x100] sm:$0xff]
    %v1558 = vld [vmem:[%s2 + $0x108] sm:$0xff]
    %v1559 = vld [vmem:[%s2 + $0x110] sm:$0xff]
    %v1560 = vld [vmem:[%s2 + $0x118] sm:$0xff]
    %v1561 = vld [vmem:[%s2 + $0x120] sm:$0xff]
    %v1562 = vld [vmem:[%s2 + $0x128] sm:$0xff]
    %v1563 = vld [vmem:[%s2 + $0x130] sm:$0xff]
    %v1564 = vld [vmem:[%s2 + $0x138] sm:$0xff]
    %v1565 = vld [vmem:[%s2 + $0x140] sm:$0xff]
    %v1566 = vld [vmem:[%s2 + $0x148] sm:$0xff]
    %v1567 = vld [vmem:[%s2 + $0x150] sm:$0xff]
    %v1568 = vld [vmem:[%s2 + $0x158] sm:$0xff]
    %v1569 = vld [vmem:[%s2 + $0x160] sm:$0xff]
    %v1570 = vld [vmem:[%s2 + $0x168] sm:$0xff]
    %v1571 = vld [vmem:[%s2 + $0x170] sm:$0xff]
    %v1572 = vld [vmem:[%s2 + $0x178] sm:$0xff]
    %v1573 = vld [vmem:[%s2 + $0x180] sm:$0xff]
    %v1574 = vld [vmem:[%s2 + $0x188] sm:$0xff]
    %v1575 = vld [vmem:[%s2 + $0x190] sm:$0xff]
    %v1576 = vld [vmem:[%s2 + $0x198] sm:$0xff]
    %v1577 = vld [vmem:[%s2 + $0x1a0] sm:$0xff]
    %v1578 = vld [vmem:[%s2 + $0x1a8] sm:$0xff]
    %v1579 = vld [vmem:[%s2 + $0x1b0] sm:$0xff]
    %v1580 = vld [vmem:[%s2 + $0x1b8] sm:$0xff]
    %v1581 = vld [vmem:[%s2 + $0x1c0] sm:$0xff]
    %v1582 = vld [vmem:[%s2 + $0x1c8] sm:$0xff]
    %v1583 = vld [vmem:[%s2 + $0x1d0] sm:$0xff]
    %v1584 = vld [vmem:[%s2 + $0x1d8] sm:$0xff]
    %v1585 = vld [vmem:[%s2 + $0x1e0] sm:$0xff]
    %v1586 = vld [vmem:[%s2 + $0x1e8] sm:$0xff]
    %v1587 = vld [vmem:[%s2 + $0x1f0] sm:$0xff]
    %v1588 = vld [vmem:[%s2 + $0x1f8] sm:$0xff]
    %1589 = vmatprep.subr.mxu0 %v1586
    %1590 = vmatpush1.msra.mxu0 %v1585
    %1591 = vmatprep.subr.mxu0 %v1582
    %1592 = vmatpush1.msra.mxu0 %v1581
    %1593 = vmatprep.subr.mxu0 %v1578
    %1594 = vmatpush1.msra.mxu0 %v1577
    %1595 = vmatprep.subr.mxu0 %v1574
    %1596 = vmatpush1.msra.mxu0 %v1573
    %1597 = vmatprep.subr.mxu0 %v1570
    %1598 = vmatpush1.msra.mxu0 %v1569
    %1599 = vmatprep.subr.mxu0 %v1566
    %1600 = vmatpush1.msra.mxu0 %v1565
    %1601 = vmatprep.subr.mxu0 %v1562
    %1602 = vmatpush1.msra.mxu0 %v1561
    %1603 = vmatprep.subr.mxu0 %v1558
    %1604 = vmatpush1.msra.mxu0 %v1557
    %1605 = vmatprep.subr.mxu0 %v1554
    %1606 = vmatpush1.msra.mxu0 %v1553
    %1607 = vmatprep.subr.mxu0 %v1550
    %1608 = vmatpush1.msra.mxu0 %v1549
    %1609 = vmatprep.subr.mxu0 %v1546
    %1610 = vmatpush1.msra.mxu0 %v1545
    %1611 = vmatprep.subr.mxu0 %v1542
    %1612 = vmatpush1.msra.mxu0 %v1541
    %1613 = vmatprep.subr.mxu0 %v1538
    %1614 = vmatpush1.msra.mxu0 %v1537
    %1615 = vmatprep.subr.mxu0 %v1534
    %1616 = vmatpush1.msra.mxu0 %v1533
    %1617 = vmatprep.subr.mxu0 %v1530
    %1618 = vmatpush1.msra.mxu0 %v1529
    %1619 = vmatprep.subr.mxu0 %v1526
    %1620 = vmatpush1.msra.mxu0 %v1525
    %1621 = vmatprep.subr.mxu0 0.0
    %1622 = vmatpush2.msra.mxu0 0.0
    %1623 = vmatprep.subr.mxu0 0.0
    %1624 = vmatpush2.msra.mxu0 0.0
    %1625 = vmatprep.subr.mxu0 0.0
    %1626 = vmatpush2.msra.mxu0 0.0
    %1627 = vmatprep.subr.mxu0 0.0
    %1628 = vmatpush2.msra.mxu0 0.0
    %1629 = vmatprep.subr.mxu0 0.0
    %1630 = vmatpush2.msra.mxu0 0.0
    %1631 = vmatprep.subr.mxu0 0.0
    %1632 = vmatpush2.msra.mxu0 0.0
    %1633 = vmatprep.subr.mxu0 0.0
    %1634 = vmatpush2.msra.mxu0 0.0
    %1635 = vmatprep.subr.mxu0 0.0
    %1636 = vmatpush2.msra.mxu0 0.0
    %1637 = vmatprep.subr.mxu0 0.0
    %1638 = vmatpush2.msra.mxu0 0.0
    %1639 = vmatprep.subr.mxu0 0.0
    %1640 = vmatpush2.msra.mxu0 0.0
    %1641 = vmatprep.subr.mxu0 0.0
    %1642 = vmatpush2.msra.mxu0 0.0
    %1643 = vmatprep.subr.mxu0 0.0
    %1644 = vmatpush2.msra.mxu0 0.0
    %1645 = vmatprep.subr.mxu0 0.0
    %1646 = vmatpush2.msra.mxu0 0.0
    %1647 = vmatprep.subr.mxu0 0.0
    %1648 = vmatpush2.msra.mxu0 0.0
    %1649 = vmatprep.subr.mxu0 0.0
    %1650 = vmatpush2.msra.mxu0 0.0
    %1651 = vmatprep.subr.mxu0 0.0
    %1652 = vmatpush2.msra.mxu0 0.0
    %1653 = vmatprep.mubr.f32.mxu0 0.0
    %1654 = vmatmul.mubr.f32.gmra.mxu0 %v1523
    %v1655 = vpop.f32.mrf.mxu0
    %v1656 = vadd.f32 0.0, %v1655
    %v1657 = vpop.f32.mrf.mxu0
    %v1658 = vadd.f32 0.0, %v1657
    %1659 = vdwg.mxu0
    %1660 = vmatprep.subr.mxu0 %v1588
    %1661 = vmatpush1.msra.mxu0 %v1587
    %1662 = vmatprep.subr.mxu0 %v1584
    %1663 = vmatpush1.msra.mxu0 %v1583
    %1664 = vmatprep.subr.mxu0 %v1580
    %1665 = vmatpush1.msra.mxu0 %v1579
    %1666 = vmatprep.subr.mxu0 %v1576
    %1667 = vmatpush1.msra.mxu0 %v1575
    %1668 = vmatprep.subr.mxu0 %v1572
    %1669 = vmatpush1.msra.mxu0 %v1571
    %1670 = vmatprep.subr.mxu0 %v1568
    %1671 = vmatpush1.msra.mxu0 %v1567
    %1672 = vmatprep.subr.mxu0 %v1564
    %1673 = vmatpush1.msra.mxu0 %v1563
    %1674 = vmatprep.subr.mxu0 %v1560
    %1675 = vmatpush1.msra.mxu0 %v1559
    %1676 = vmatprep.subr.mxu0 %v1556
    %1677 = vmatpush1.msra.mxu0 %v1555
    %1678 = vmatprep.subr.mxu0 %v1552
    %1679 = vmatpush1.msra.mxu0 %v1551
    %1680 = vmatprep.subr.mxu0 %v1548
    %1681 = vmatpush1.msra.mxu0 %v1547
    %1682 = vmatprep.subr.mxu0 %v1544
    %1683 = vmatpush1.msra.mxu0 %v1543
    %1684 = vmatprep.subr.mxu0 %v1540
    %1685 = vmatpush1.msra.mxu0 %v1539
    %1686 = vmatprep.subr.mxu0 %v1536
    %1687 = vmatpush1.msra.mxu0 %v1535
    %1688 = vmatprep.subr.mxu0 %v1532
    %1689 = vmatpush1.msra.mxu0 %v1531
    %1690 = vmatprep.subr.mxu0 %v1528
    %1691 = vmatpush1.msra.mxu0 %v1527
    %1692 = vmatprep.subr.mxu0 0.0
    %1693 = vmatpush2.msra.mxu0 0.0
    %1694 = vmatprep.subr.mxu0 0.0
    %1695 = vmatpush2.msra.mxu0 0.0
    %1696 = vmatprep.subr.mxu0 0.0
    %1697 = vmatpush2.msra.mxu0 0.0
    %1698 = vmatprep.subr.mxu0 0.0
    %1699 = vmatpush2.msra.mxu0 0.0
    %1700 = vmatprep.subr.mxu0 0.0
    %1701 = vmatpush2.msra.mxu0 0.0
    %1702 = vmatprep.subr.mxu0 0.0
    %1703 = vmatpush2.msra.mxu0 0.0
    %1704 = vmatprep.subr.mxu0 0.0
    %1705 = vmatpush2.msra.mxu0 0.0
    %1706 = vmatprep.subr.mxu0 0.0
    %1707 = vmatpush2.msra.mxu0 0.0
    %1708 = vmatprep.subr.mxu0 0.0
    %1709 = vmatpush2.msra.mxu0 0.0
    %1710 = vmatprep.subr.mxu0 0.0
    %1711 = vmatpush2.msra.mxu0 0.0
    %1712 = vmatprep.subr.mxu0 0.0
    %1713 = vmatpush2.msra.mxu0 0.0
    %1714 = vmatprep.subr.mxu0 0.0
    %1715 = vmatpush2.msra.mxu0 0.0
    %1716 = vmatprep.subr.mxu0 0.0
    %1717 = vmatpush2.msra.mxu0 0.0
    %1718 = vmatprep.subr.mxu0 0.0
    %1719 = vmatpush2.msra.mxu0 0.0
    %1720 = vmatprep.subr.mxu0 0.0
    %1721 = vmatpush2.msra.mxu0 0.0
    %1722 = vmatprep.subr.mxu0 0.0
    %1723 = vmatpush2.msra.mxu0 0.0
    %1724 = vmatprep.mubr.f32.mxu0 0.0
    %1725 = vmatmul.mubr.f32.gmra.mxu0 %v1523
    %v1726 = vpop.f32.mrf.mxu0
    %v1727 = vadd.f32 0.0, %v1726
    %v1728 = vpop.f32.mrf.mxu0
    %v1729 = vadd.f32 0.0, %v1728
    %1730 = vdwg.mxu0
    %v1731 = vadd.f32 %v221, %v1656
    %v1732 = vadd.f32 %v223, %v1658
    %v1733 = vadd.f32 %v334, %v1727
    %v1734 = vadd.f32 %v336, %v1729
    %v1735 = vxor.u32 %v1731, 2147483648
    %v1736 = vmul.f32 %v1735, 1.442695
    %v1737 = vpow.pop %v1736
    %v1738 = vadd.f32 %v1737, 1.0
    %v1739 = vrcp.pop %v1738
    %v1740 = vmul.f32 1.0, %v1739
    %v1741 = vxor.u32 %v1732, 2147483648
    %v1742 = vmul.f32 %v1741, 1.442695
    %v1743 = vpow.pop %v1742
    %v1744 = vadd.f32 %v1743, 1.0
    %v1745 = vrcp.pop %v1744
    %v1746 = vmul.f32 1.0, %v1745
    %v1747 = vtanh.pop %v1733
    %v1748 = vxor.u32 %v1734, 2147483648
    %v1749 = vmul.f32 %v1748, 1.442695
    %v1750 = vpow.pop %v1749
    %v1751 = vadd.f32 %v1750, 1.0
    %v1752 = vrcp.pop %v1751
    %v1753 = vmul.f32 1.0, %v1752
    %v1754 = vmul.f32 %v1746, %v1521
    %v1755 = vmul.f32 %v1740, %v1747
    %v1756 = vadd.f32 %v1754, %v1755
    %v1757 = vtanh.pop %v1756
    %v1758 = vmul.f32 %v1753, %v1757
    %1759 = vst [vmem:[#allocation2 + $0x28] sm:$0xff] %v1758
    %v1760 = vld [vmem:[%s2] sm:$0xff]
    %v1761 = vld [vmem:[%s2 + $0x8] sm:$0xff]
    %v1762 = vld [vmem:[%s2 + $0x10] sm:$0xff]
    %v1763 = vld [vmem:[%s2 + $0x18] sm:$0xff]
    %v1764 = vld [vmem:[%s2 + $0x20] sm:$0xff]
    %v1765 = vld [vmem:[%s2 + $0x28] sm:$0xff]
    %v1766 = vld [vmem:[%s2 + $0x30] sm:$0xff]
    %v1767 = vld [vmem:[%s2 + $0x38] sm:$0xff]
    %v1768 = vld [vmem:[%s2 + $0x40] sm:$0xff]
    %v1769 = vld [vmem:[%s2 + $0x48] sm:$0xff]
    %v1770 = vld [vmem:[%s2 + $0x50] sm:$0xff]
    %v1771 = vld [vmem:[%s2 + $0x58] sm:$0xff]
    %v1772 = vld [vmem:[%s2 + $0x60] sm:$0xff]
    %v1773 = vld [vmem:[%s2 + $0x68] sm:$0xff]
    %v1774 = vld [vmem:[%s2 + $0x70] sm:$0xff]
    %v1775 = vld [vmem:[%s2 + $0x78] sm:$0xff]
    %v1776 = vld [vmem:[%s2 + $0x80] sm:$0xff]
    %v1777 = vld [vmem:[%s2 + $0x88] sm:$0xff]
    %v1778 = vld [vmem:[%s2 + $0x90] sm:$0xff]
    %v1779 = vld [vmem:[%s2 + $0x98] sm:$0xff]
    %v1780 = vld [vmem:[%s2 + $0xa0] sm:$0xff]
    %v1781 = vld [vmem:[%s2 + $0xa8] sm:$0xff]
    %v1782 = vld [vmem:[%s2 + $0xb0] sm:$0xff]
    %v1783 = vld [vmem:[%s2 + $0xb8] sm:$0xff]
    %v1784 = vld [vmem:[%s2 + $0xc0] sm:$0xff]
    %v1785 = vld [vmem:[%s2 + $0xc8] sm:$0xff]
    %v1786 = vld [vmem:[%s2 + $0xd0] sm:$0xff]
    %v1787 = vld [vmem:[%s2 + $0xd8] sm:$0xff]
    %v1788 = vld [vmem:[%s2 + $0xe0] sm:$0xff]
    %v1789 = vld [vmem:[%s2 + $0xe8] sm:$0xff]
    %v1790 = vld [vmem:[%s2 + $0xf0] sm:$0xff]
    %v1791 = vld [vmem:[%s2 + $0xf8] sm:$0xff]
    %v1792 = vld [vmem:[%s2 + $0x100] sm:$0xff]
    %v1793 = vld [vmem:[%s2 + $0x108] sm:$0xff]
    %v1794 = vld [vmem:[%s2 + $0x110] sm:$0xff]
    %v1795 = vld [vmem:[%s2 + $0x118] sm:$0xff]
    %v1796 = vld [vmem:[%s2 + $0x120] sm:$0xff]
    %v1797 = vld [vmem:[%s2 + $0x128] sm:$0xff]
    %v1798 = vld [vmem:[%s2 + $0x130] sm:$0xff]
    %v1799 = vld [vmem:[%s2 + $0x138] sm:$0xff]
    %v1800 = vld [vmem:[%s2 + $0x140] sm:$0xff]
    %v1801 = vld [vmem:[%s2 + $0x148] sm:$0xff]
    %v1802 = vld [vmem:[%s2 + $0x150] sm:$0xff]
    %v1803 = vld [vmem:[%s2 + $0x158] sm:$0xff]
    %v1804 = vld [vmem:[%s2 + $0x160] sm:$0xff]
    %v1805 = vld [vmem:[%s2 + $0x168] sm:$0xff]
    %v1806 = vld [vmem:[%s2 + $0x170] sm:$0xff]
    %v1807 = vld [vmem:[%s2 + $0x178] sm:$0xff]
    %v1808 = vld [vmem:[%s2 + $0x180] sm:$0xff]
    %v1809 = vld [vmem:[%s2 + $0x188] sm:$0xff]
    %v1810 = vld [vmem:[%s2 + $0x190] sm:$0xff]
    %v1811 = vld [vmem:[%s2 + $0x198] sm:$0xff]
    %v1812 = vld [vmem:[%s2 + $0x1a0] sm:$0xff]
    %v1813 = vld [vmem:[%s2 + $0x1a8] sm:$0xff]
    %v1814 = vld [vmem:[%s2 + $0x1b0] sm:$0xff]
    %v1815 = vld [vmem:[%s2 + $0x1b8] sm:$0xff]
    %v1816 = vld [vmem:[%s2 + $0x1c0] sm:$0xff]
    %v1817 = vld [vmem:[%s2 + $0x1c8] sm:$0xff]
    %v1818 = vld [vmem:[%s2 + $0x1d0] sm:$0xff]
    %v1819 = vld [vmem:[%s2 + $0x1d8] sm:$0xff]
    %v1820 = vld [vmem:[%s2 + $0x1e0] sm:$0xff]
    %v1821 = vld [vmem:[%s2 + $0x1e8] sm:$0xff]
    %v1822 = vld [vmem:[%s2 + $0x1f0] sm:$0xff]
    %v1823 = vld [vmem:[%s2 + $0x1f8] sm:$0xff]
    %1824 = vmatprep.subr.mxu0 %v1821
    %1825 = vmatpush1.msra.mxu0 %v1820
    %1826 = vmatprep.subr.mxu0 %v1817
    %1827 = vmatpush1.msra.mxu0 %v1816
    %1828 = vmatprep.subr.mxu0 %v1813
    %1829 = vmatpush1.msra.mxu0 %v1812
    %1830 = vmatprep.subr.mxu0 %v1809
    %1831 = vmatpush1.msra.mxu0 %v1808
    %1832 = vmatprep.subr.mxu0 %v1805
    %1833 = vmatpush1.msra.mxu0 %v1804
    %1834 = vmatprep.subr.mxu0 %v1801
    %1835 = vmatpush1.msra.mxu0 %v1800
    %1836 = vmatprep.subr.mxu0 %v1797
    %1837 = vmatpush1.msra.mxu0 %v1796
    %1838 = vmatprep.subr.mxu0 %v1793
    %1839 = vmatpush1.msra.mxu0 %v1792
    %1840 = vmatprep.subr.mxu0 %v1789
    %1841 = vmatpush1.msra.mxu0 %v1788
    %1842 = vmatprep.subr.mxu0 %v1785
    %1843 = vmatpush1.msra.mxu0 %v1784
    %1844 = vmatprep.subr.mxu0 %v1781
    %1845 = vmatpush1.msra.mxu0 %v1780
    %1846 = vmatprep.subr.mxu0 %v1777
    %1847 = vmatpush1.msra.mxu0 %v1776
    %1848 = vmatprep.subr.mxu0 %v1773
    %1849 = vmatpush1.msra.mxu0 %v1772
    %1850 = vmatprep.subr.mxu0 %v1769
    %1851 = vmatpush1.msra.mxu0 %v1768
    %1852 = vmatprep.subr.mxu0 %v1765
    %1853 = vmatpush1.msra.mxu0 %v1764
    %1854 = vmatprep.subr.mxu0 %v1761
    %1855 = vmatpush1.msra.mxu0 %v1760
    %1856 = vmatprep.subr.mxu0 0.0
    %1857 = vmatpush2.msra.mxu0 0.0
    %1858 = vmatprep.subr.mxu0 0.0
    %1859 = vmatpush2.msra.mxu0 0.0
    %1860 = vmatprep.subr.mxu0 0.0
    %1861 = vmatpush2.msra.mxu0 0.0
    %1862 = vmatprep.subr.mxu0 0.0
    %1863 = vmatpush2.msra.mxu0 0.0
    %1864 = vmatprep.subr.mxu0 0.0
    %1865 = vmatpush2.msra.mxu0 0.0
    %1866 = vmatprep.subr.mxu0 0.0
    %1867 = vmatpush2.msra.mxu0 0.0
    %1868 = vmatprep.subr.mxu0 0.0
    %1869 = vmatpush2.msra.mxu0 0.0
    %1870 = vmatprep.subr.mxu0 0.0
    %1871 = vmatpush2.msra.mxu0 0.0
    %1872 = vmatprep.subr.mxu0 0.0
    %1873 = vmatpush2.msra.mxu0 0.0
    %1874 = vmatprep.subr.mxu0 0.0
    %1875 = vmatpush2.msra.mxu0 0.0
    %1876 = vmatprep.subr.mxu0 0.0
    %1877 = vmatpush2.msra.mxu0 0.0
    %1878 = vmatprep.subr.mxu0 0.0
    %1879 = vmatpush2.msra.mxu0 0.0
    %1880 = vmatprep.subr.mxu0 0.0
    %1881 = vmatpush2.msra.mxu0 0.0
    %1882 = vmatprep.subr.mxu0 0.0
    %1883 = vmatpush2.msra.mxu0 0.0
    %1884 = vmatprep.subr.mxu0 0.0
    %1885 = vmatpush2.msra.mxu0 0.0
    %1886 = vmatprep.subr.mxu0 0.0
    %1887 = vmatpush2.msra.mxu0 0.0
    %1888 = vmatprep.mubr.f32.mxu0 0.0
    %1889 = vmatmul.mubr.f32.gmra.mxu0 %v1758
    %v1890 = vpop.f32.mrf.mxu0
    %v1891 = vadd.f32 0.0, %v1890
    %v1892 = vpop.f32.mrf.mxu0
    %v1893 = vadd.f32 0.0, %v1892
    %1894 = vdwg.mxu0
    %1895 = vmatprep.subr.mxu0 %v1823
    %1896 = vmatpush1.msra.mxu0 %v1822
    %1897 = vmatprep.subr.mxu0 %v1819
    %1898 = vmatpush1.msra.mxu0 %v1818
    %1899 = vmatprep.subr.mxu0 %v1815
    %1900 = vmatpush1.msra.mxu0 %v1814
    %1901 = vmatprep.subr.mxu0 %v1811
    %1902 = vmatpush1.msra.mxu0 %v1810
    %1903 = vmatprep.subr.mxu0 %v1807
    %1904 = vmatpush1.msra.mxu0 %v1806
    %1905 = vmatprep.subr.mxu0 %v1803
    %1906 = vmatpush1.msra.mxu0 %v1802
    %1907 = vmatprep.subr.mxu0 %v1799
    %1908 = vmatpush1.msra.mxu0 %v1798
    %1909 = vmatprep.subr.mxu0 %v1795
    %1910 = vmatpush1.msra.mxu0 %v1794
    %1911 = vmatprep.subr.mxu0 %v1791
    %1912 = vmatpush1.msra.mxu0 %v1790
    %1913 = vmatprep.subr.mxu0 %v1787
    %1914 = vmatpush1.msra.mxu0 %v1786
    %1915 = vmatprep.subr.mxu0 %v1783
    %1916 = vmatpush1.msra.mxu0 %v1782
    %1917 = vmatprep.subr.mxu0 %v1779
    %1918 = vmatpush1.msra.mxu0 %v1778
    %1919 = vmatprep.subr.mxu0 %v1775
    %1920 = vmatpush1.msra.mxu0 %v1774
    %1921 = vmatprep.subr.mxu0 %v1771
    %1922 = vmatpush1.msra.mxu0 %v1770
    %1923 = vmatprep.subr.mxu0 %v1767
    %1924 = vmatpush1.msra.mxu0 %v1766
    %1925 = vmatprep.subr.mxu0 %v1763
    %1926 = vmatpush1.msra.mxu0 %v1762
    %1927 = vmatprep.subr.mxu0 0.0
    %1928 = vmatpush2.msra.mxu0 0.0
    %1929 = vmatprep.subr.mxu0 0.0
    %1930 = vmatpush2.msra.mxu0 0.0
    %1931 = vmatprep.subr.mxu0 0.0
    %1932 = vmatpush2.msra.mxu0 0.0
    %1933 = vmatprep.subr.mxu0 0.0
    %1934 = vmatpush2.msra.mxu0 0.0
    %1935 = vmatprep.subr.mxu0 0.0
    %1936 = vmatpush2.msra.mxu0 0.0
    %1937 = vmatprep.subr.mxu0 0.0
    %1938 = vmatpush2.msra.mxu0 0.0
    %1939 = vmatprep.subr.mxu0 0.0
    %1940 = vmatpush2.msra.mxu0 0.0
    %1941 = vmatprep.subr.mxu0 0.0
    %1942 = vmatpush2.msra.mxu0 0.0
    %1943 = vmatprep.subr.mxu0 0.0
    %1944 = vmatpush2.msra.mxu0 0.0
    %1945 = vmatprep.subr.mxu0 0.0
    %1946 = vmatpush2.msra.mxu0 0.0
    %1947 = vmatprep.subr.mxu0 0.0
    %1948 = vmatpush2.msra.mxu0 0.0
    %1949 = vmatprep.subr.mxu0 0.0
    %1950 = vmatpush2.msra.mxu0 0.0
    %1951 = vmatprep.subr.mxu0 0.0
    %1952 = vmatpush2.msra.mxu0 0.0
    %1953 = vmatprep.subr.mxu0 0.0
    %1954 = vmatpush2.msra.mxu0 0.0
    %1955 = vmatprep.subr.mxu0 0.0
    %1956 = vmatpush2.msra.mxu0 0.0
    %1957 = vmatprep.subr.mxu0 0.0
    %1958 = vmatpush2.msra.mxu0 0.0
    %1959 = vmatprep.mubr.f32.mxu0 0.0
    %1960 = vmatmul.mubr.f32.gmra.mxu0 %v1758
    %v1961 = vpop.f32.mrf.mxu0
    %v1962 = vadd.f32 0.0, %v1961
    %v1963 = vpop.f32.mrf.mxu0
    %v1964 = vadd.f32 0.0, %v1963
    %1965 = vdwg.mxu0
    %v1966 = vadd.f32 %v227, %v1891
    %v1967 = vadd.f32 %v229, %v1893
    %v1968 = vadd.f32 %v340, %v1962
    %v1969 = vadd.f32 %v342, %v1964
    %v1970 = vxor.u32 %v1966, 2147483648
    %v1971 = vmul.f32 %v1970, 1.442695
    %v1972 = vpow.pop %v1971
    %v1973 = vadd.f32 %v1972, 1.0
    %v1974 = vrcp.pop %v1973
    %v1975 = vmul.f32 1.0, %v1974
    %v1976 = vxor.u32 %v1967, 2147483648
    %v1977 = vmul.f32 %v1976, 1.442695
    %v1978 = vpow.pop %v1977
    %v1979 = vadd.f32 %v1978, 1.0
    %v1980 = vrcp.pop %v1979
    %v1981 = vmul.f32 1.0, %v1980
    %v1982 = vtanh.pop %v1968
    %v1983 = vxor.u32 %v1969, 2147483648
    %v1984 = vmul.f32 %v1983, 1.442695
    %v1985 = vpow.pop %v1984
    %v1986 = vadd.f32 %v1985, 1.0
    %v1987 = vrcp.pop %v1986
    %v1988 = vmul.f32 1.0, %v1987
    %v1989 = vmul.f32 %v1981, %v1756
    %v1990 = vmul.f32 %v1975, %v1982
    %v1991 = vadd.f32 %v1989, %v1990
    %v1992 = vtanh.pop %v1991
    %v1993 = vmul.f32 %v1988, %v1992
    %1994 = vst [vmem:[#allocation2 + $0x30] sm:$0xff] %v1993
    %v1995 = vld [vmem:[%s2] sm:$0xff]
    %v1996 = vld [vmem:[%s2 + $0x8] sm:$0xff]
    %v1997 = vld [vmem:[%s2 + $0x10] sm:$0xff]
    %v1998 = vld [vmem:[%s2 + $0x18] sm:$0xff]
    %v1999 = vld [vmem:[%s2 + $0x20] sm:$0xff]
    %v2000 = vld [vmem:[%s2 + $0x28] sm:$0xff]
    %v2001 = vld [vmem:[%s2 + $0x30] sm:$0xff]
    %v2002 = vld [vmem:[%s2 + $0x38] sm:$0xff]
    %v2003 = vld [vmem:[%s2 + $0x40] sm:$0xff]
    %v2004 = vld [vmem:[%s2 + $0x48] sm:$0xff]
    %v2005 = vld [vmem:[%s2 + $0x50] sm:$0xff]
    %v2006 = vld [vmem:[%s2 + $0x58] sm:$0xff]
    %v2007 = vld [vmem:[%s2 + $0x60] sm:$0xff]
    %v2008 = vld [vmem:[%s2 + $0x68] sm:$0xff]
    %v2009 = vld [vmem:[%s2 + $0x70] sm:$0xff]
    %v2010 = vld [vmem:[%s2 + $0x78] sm:$0xff]
    %v2011 = vld [vmem:[%s2 + $0x80] sm:$0xff]
    %v2012 = vld [vmem:[%s2 + $0x88] sm:$0xff]
    %v2013 = vld [vmem:[%s2 + $0x90] sm:$0xff]
    %v2014 = vld [vmem:[%s2 + $0x98] sm:$0xff]
    %v2015 = vld [vmem:[%s2 + $0xa0] sm:$0xff]
    %v2016 = vld [vmem:[%s2 + $0xa8] sm:$0xff]
    %v2017 = vld [vmem:[%s2 + $0xb0] sm:$0xff]
    %v2018 = vld [vmem:[%s2 + $0xb8] sm:$0xff]
    %v2019 = vld [vmem:[%s2 + $0xc0] sm:$0xff]
    %v2020 = vld [vmem:[%s2 + $0xc8] sm:$0xff]
    %v2021 = vld [vmem:[%s2 + $0xd0] sm:$0xff]
    %v2022 = vld [vmem:[%s2 + $0xd8] sm:$0xff]
    %v2023 = vld [vmem:[%s2 + $0xe0] sm:$0xff]
    %v2024 = vld [vmem:[%s2 + $0xe8] sm:$0xff]
    %v2025 = vld [vmem:[%s2 + $0xf0] sm:$0xff]
    %v2026 = vld [vmem:[%s2 + $0xf8] sm:$0xff]
    %v2027 = vld [vmem:[%s2 + $0x100] sm:$0xff]
    %v2028 = vld [vmem:[%s2 + $0x108] sm:$0xff]
    %v2029 = vld [vmem:[%s2 + $0x110] sm:$0xff]
    %v2030 = vld [vmem:[%s2 + $0x118] sm:$0xff]
    %v2031 = vld [vmem:[%s2 + $0x120] sm:$0xff]
    %v2032 = vld [vmem:[%s2 + $0x128] sm:$0xff]
    %v2033 = vld [vmem:[%s2 + $0x130] sm:$0xff]
    %v2034 = vld [vmem:[%s2 + $0x138] sm:$0xff]
    %v2035 = vld [vmem:[%s2 + $0x140] sm:$0xff]
    %v2036 = vld [vmem:[%s2 + $0x148] sm:$0xff]
    %v2037 = vld [vmem:[%s2 + $0x150] sm:$0xff]
    %v2038 = vld [vmem:[%s2 + $0x158] sm:$0xff]
    %v2039 = vld [vmem:[%s2 + $0x160] sm:$0xff]
    %v2040 = vld [vmem:[%s2 + $0x168] sm:$0xff]
    %v2041 = vld [vmem:[%s2 + $0x170] sm:$0xff]
    %v2042 = vld [vmem:[%s2 + $0x178] sm:$0xff]
    %v2043 = vld [vmem:[%s2 + $0x180] sm:$0xff]
    %v2044 = vld [vmem:[%s2 + $0x188] sm:$0xff]
    %v2045 = vld [vmem:[%s2 + $0x190] sm:$0xff]
    %v2046 = vld [vmem:[%s2 + $0x198] sm:$0xff]
    %v2047 = vld [vmem:[%s2 + $0x1a0] sm:$0xff]
    %v2048 = vld [vmem:[%s2 + $0x1a8] sm:$0xff]
    %v2049 = vld [vmem:[%s2 + $0x1b0] sm:$0xff]
    %v2050 = vld [vmem:[%s2 + $0x1b8] sm:$0xff]
    %v2051 = vld [vmem:[%s2 + $0x1c0] sm:$0xff]
    %v2052 = vld [vmem:[%s2 + $0x1c8] sm:$0xff]
    %v2053 = vld [vmem:[%s2 + $0x1d0] sm:$0xff]
    %v2054 = vld [vmem:[%s2 + $0x1d8] sm:$0xff]
    %v2055 = vld [vmem:[%s2 + $0x1e0] sm:$0xff]
    %v2056 = vld [vmem:[%s2 + $0x1e8] sm:$0xff]
    %v2057 = vld [vmem:[%s2 + $0x1f0] sm:$0xff]
    %v2058 = vld [vmem:[%s2 + $0x1f8] sm:$0xff]
    %2059 = vmatprep.subr.mxu0 %v2056
    %2060 = vmatpush1.msra.mxu0 %v2055
    %2061 = vmatprep.subr.mxu0 %v2052
    %2062 = vmatpush1.msra.mxu0 %v2051
    %2063 = vmatprep.subr.mxu0 %v2048
    %2064 = vmatpush1.msra.mxu0 %v2047
    %2065 = vmatprep.subr.mxu0 %v2044
    %2066 = vmatpush1.msra.mxu0 %v2043
    %2067 = vmatprep.subr.mxu0 %v2040
    %2068 = vmatpush1.msra.mxu0 %v2039
    %2069 = vmatprep.subr.mxu0 %v2036
    %2070 = vmatpush1.msra.mxu0 %v2035
    %2071 = vmatprep.subr.mxu0 %v2032
    %2072 = vmatpush1.msra.mxu0 %v2031
    %2073 = vmatprep.subr.mxu0 %v2028
    %2074 = vmatpush1.msra.mxu0 %v2027
    %2075 = vmatprep.subr.mxu0 %v2024
    %2076 = vmatpush1.msra.mxu0 %v2023
    %2077 = vmatprep.subr.mxu0 %v2020
    %2078 = vmatpush1.msra.mxu0 %v2019
    %2079 = vmatprep.subr.mxu0 %v2016
    %2080 = vmatpush1.msra.mxu0 %v2015
    %2081 = vmatprep.subr.mxu0 %v2012
    %2082 = vmatpush1.msra.mxu0 %v2011
    %2083 = vmatprep.subr.mxu0 %v2008
    %2084 = vmatpush1.msra.mxu0 %v2007
    %2085 = vmatprep.subr.mxu0 %v2004
    %2086 = vmatpush1.msra.mxu0 %v2003
    %2087 = vmatprep.subr.mxu0 %v2000
    %2088 = vmatpush1.msra.mxu0 %v1999
    %2089 = vmatprep.subr.mxu0 %v1996
    %2090 = vmatpush1.msra.mxu0 %v1995
    %2091 = vmatprep.subr.mxu0 0.0
    %2092 = vmatpush2.msra.mxu0 0.0
    %2093 = vmatprep.subr.mxu0 0.0
    %2094 = vmatpush2.msra.mxu0 0.0
    %2095 = vmatprep.subr.mxu0 0.0
    %2096 = vmatpush2.msra.mxu0 0.0
    %2097 = vmatprep.subr.mxu0 0.0
    %2098 = vmatpush2.msra.mxu0 0.0
    %2099 = vmatprep.subr.mxu0 0.0
    %2100 = vmatpush2.msra.mxu0 0.0
    %2101 = vmatprep.subr.mxu0 0.0
    %2102 = vmatpush2.msra.mxu0 0.0
    %2103 = vmatprep.subr.mxu0 0.0
    %2104 = vmatpush2.msra.mxu0 0.0
    %2105 = vmatprep.subr.mxu0 0.0
    %2106 = vmatpush2.msra.mxu0 0.0
    %2107 = vmatprep.subr.mxu0 0.0
    %2108 = vmatpush2.msra.mxu0 0.0
    %2109 = vmatprep.subr.mxu0 0.0
    %2110 = vmatpush2.msra.mxu0 0.0
    %2111 = vmatprep.subr.mxu0 0.0
    %2112 = vmatpush2.msra.mxu0 0.0
    %2113 = vmatprep.subr.mxu0 0.0
    %2114 = vmatpush2.msra.mxu0 0.0
    %2115 = vmatprep.subr.mxu0 0.0
    %2116 = vmatpush2.msra.mxu0 0.0
    %2117 = vmatprep.subr.mxu0 0.0
    %2118 = vmatpush2.msra.mxu0 0.0
    %2119 = vmatprep.subr.mxu0 0.0
    %2120 = vmatpush2.msra.mxu0 0.0
    %2121 = vmatprep.subr.mxu0 0.0
    %2122 = vmatpush2.msra.mxu0 0.0
    %2123 = vmatprep.mubr.f32.mxu0 0.0
    %2124 = vmatmul.mubr.f32.gmra.mxu0 %v1993
    %v2125 = vpop.f32.mrf.mxu0
    %v2126 = vadd.f32 0.0, %v2125
    %v2127 = vpop.f32.mrf.mxu0
    %v2128 = vadd.f32 0.0, %v2127
    %2129 = vdwg.mxu0
    %2130 = vmatprep.subr.mxu0 %v2058
    %2131 = vmatpush1.msra.mxu0 %v2057
    %2132 = vmatprep.subr.mxu0 %v2054
    %2133 = vmatpush1.msra.mxu0 %v2053
    %2134 = vmatprep.subr.mxu0 %v2050
    %2135 = vmatpush1.msra.mxu0 %v2049
    %2136 = vmatprep.subr.mxu0 %v2046
    %2137 = vmatpush1.msra.mxu0 %v2045
    %2138 = vmatprep.subr.mxu0 %v2042
    %2139 = vmatpush1.msra.mxu0 %v2041
    %2140 = vmatprep.subr.mxu0 %v2038
    %2141 = vmatpush1.msra.mxu0 %v2037
    %2142 = vmatprep.subr.mxu0 %v2034
    %2143 = vmatpush1.msra.mxu0 %v2033
    %2144 = vmatprep.subr.mxu0 %v2030
    %2145 = vmatpush1.msra.mxu0 %v2029
    %2146 = vmatprep.subr.mxu0 %v2026
    %2147 = vmatpush1.msra.mxu0 %v2025
    %2148 = vmatprep.subr.mxu0 %v2022
    %2149 = vmatpush1.msra.mxu0 %v2021
    %2150 = vmatprep.subr.mxu0 %v2018
    %2151 = vmatpush1.msra.mxu0 %v2017
    %2152 = vmatprep.subr.mxu0 %v2014
    %2153 = vmatpush1.msra.mxu0 %v2013
    %2154 = vmatprep.subr.mxu0 %v2010
    %2155 = vmatpush1.msra.mxu0 %v2009
    %2156 = vmatprep.subr.mxu0 %v2006
    %2157 = vmatpush1.msra.mxu0 %v2005
    %2158 = vmatprep.subr.mxu0 %v2002
    %2159 = vmatpush1.msra.mxu0 %v2001
    %2160 = vmatprep.subr.mxu0 %v1998
    %2161 = vmatpush1.msra.mxu0 %v1997
    %2162 = vmatprep.subr.mxu0 0.0
    %2163 = vmatpush2.msra.mxu0 0.0
    %2164 = vmatprep.subr.mxu0 0.0
    %2165 = vmatpush2.msra.mxu0 0.0
    %2166 = vmatprep.subr.mxu0 0.0
    %2167 = vmatpush2.msra.mxu0 0.0
    %2168 = vmatprep.subr.mxu0 0.0
    %2169 = vmatpush2.msra.mxu0 0.0
    %2170 = vmatprep.subr.mxu0 0.0
    %2171 = vmatpush2.msra.mxu0 0.0
    %2172 = vmatprep.subr.mxu0 0.0
    %2173 = vmatpush2.msra.mxu0 0.0
    %2174 = vmatprep.subr.mxu0 0.0
    %2175 = vmatpush2.msra.mxu0 0.0
    %2176 = vmatprep.subr.mxu0 0.0
    %2177 = vmatpush2.msra.mxu0 0.0
    %2178 = vmatprep.subr.mxu0 0.0
    %2179 = vmatpush2.msra.mxu0 0.0
    %2180 = vmatprep.subr.mxu0 0.0
    %2181 = vmatpush2.msra.mxu0 0.0
    %2182 = vmatprep.subr.mxu0 0.0
    %2183 = vmatpush2.msra.mxu0 0.0
    %2184 = vmatprep.subr.mxu0 0.0
    %2185 = vmatpush2.msra.mxu0 0.0
    %2186 = vmatprep.subr.mxu0 0.0
    %2187 = vmatpush2.msra.mxu0 0.0
    %2188 = vmatprep.subr.mxu0 0.0
    %2189 = vmatpush2.msra.mxu0 0.0
    %2190 = vmatprep.subr.mxu0 0.0
    %2191 = vmatpush2.msra.mxu0 0.0
    %2192 = vmatprep.subr.mxu0 0.0
    %2193 = vmatpush2.msra.mxu0 0.0
    %2194 = vmatprep.mubr.f32.mxu0 0.0
    %2195 = vmatmul.mubr.f32.gmra.mxu0 %v1993
    %v2196 = vpop.f32.mrf.mxu0
    %v2197 = vadd.f32 0.0, %v2196
    %v2198 = vpop.f32.mrf.mxu0
    %v2199 = vadd.f32 0.0, %v2198
    %2200 = vdwg.mxu0
    %v2201 = vadd.f32 %v233, %v2126
    %v2202 = vadd.f32 %v235, %v2128
    %v2203 = vadd.f32 %v346, %v2197
    %v2204 = vadd.f32 %v348, %v2199
    %v2205 = vxor.u32 %v2201, 2147483648
    %v2206 = vmul.f32 %v2205, 1.442695
    %v2207 = vpow.pop %v2206
    %v2208 = vadd.f32 %v2207, 1.0
    %v2209 = vrcp.pop %v2208
    %v2210 = vmul.f32 1.0, %v2209
    %v2211 = vxor.u32 %v2202, 2147483648
    %v2212 = vmul.f32 %v2211, 1.442695
    %v2213 = vpow.pop %v2212
    %v2214 = vadd.f32 %v2213, 1.0
    %v2215 = vrcp.pop %v2214
    %v2216 = vmul.f32 1.0, %v2215
    %v2217 = vtanh.pop %v2203
    %v2218 = vxor.u32 %v2204, 2147483648
    %v2219 = vmul.f32 %v2218, 1.442695
    %v2220 = vpow.pop %v2219
    %v2221 = vadd.f32 %v2220, 1.0
    %v2222 = vrcp.pop %v2221
    %v2223 = vmul.f32 1.0, %v2222
    %v2224 = vmul.f32 %v2216, %v1991
    %v2225 = vmul.f32 %v2210, %v2217
    %v2226 = vadd.f32 %v2224, %v2225
    %v2227 = vtanh.pop %v2226
    %v2228 = vmul.f32 %v2223, %v2227
    %2229 = vst [vmem:[#allocation2 + $0x38] sm:$0xff] %v2228
    %v2230 = vld [vmem:[#allocation2] sm:$0xff]
    %v2231 = vld [vmem:[#allocation2 + $0x8] sm:$0xff]
    %v2232 = vld [vmem:[#allocation2 + $0x10] sm:$0xff]
    %v2233 = vld [vmem:[#allocation2 + $0x18] sm:$0xff]
    %v2234 = vld [vmem:[#allocation2 + $0x20] sm:$0xff]
    %v2235 = vld [vmem:[#allocation2 + $0x28] sm:$0xff]
    %v2236 = vld [vmem:[#allocation2 + $0x30] sm:$0xff]
    %v2237 = vld [vmem:[#allocation2 + $0x38] sm:$0xff]
    %v2238 = vld [vmem:[%s4] sm:$0xff]
    %v2239 = vld [vmem:[%s4 + $0x8] sm:$0xff]
    %v2240 = vld [vmem:[%s4 + $0x10] sm:$0xff]
    %v2241 = vld [vmem:[%s4 + $0x18] sm:$0xff]
    %v2242 = vld [vmem:[%s4 + $0x20] sm:$0xff]
    %v2243 = vld [vmem:[%s4 + $0x28] sm:$0xff]
    %v2244 = vld [vmem:[%s4 + $0x30] sm:$0xff]
    %v2245 = vld [vmem:[%s4 + $0x38] sm:$0xff]
    %v2246 = vld [vmem:[%s4 + $0x40] sm:$0xff]
    %v2247 = vld [vmem:[%s4 + $0x48] sm:$0xff]
    %v2248 = vld [vmem:[%s4 + $0x50] sm:$0xff]
    %v2249 = vld [vmem:[%s4 + $0x58] sm:$0xff]
    %v2250 = vld [vmem:[%s4 + $0x60] sm:$0xff]
    %v2251 = vld [vmem:[%s4 + $0x68] sm:$0xff]
    %v2252 = vld [vmem:[%s4 + $0x70] sm:$0xff]
    %v2253 = vld [vmem:[%s4 + $0x78] sm:$0xff]
    %v2254 = vld [vmem:[%s4 + $0x80] sm:$0xff]
    %v2255 = vld [vmem:[%s4 + $0x88] sm:$0xff]
    %v2256 = vld [vmem:[%s4 + $0x90] sm:$0xff]
    %v2257 = vld [vmem:[%s4 + $0x98] sm:$0xff]
    %v2258 = vld [vmem:[%s4 + $0xa0] sm:$0xff]
    %v2259 = vld [vmem:[%s4 + $0xa8] sm:$0xff]
    %v2260 = vld [vmem:[%s4 + $0xb0] sm:$0xff]
    %v2261 = vld [vmem:[%s4 + $0xb8] sm:$0xff]
    %v2262 = vld [vmem:[%s4 + $0xc0] sm:$0xff]
    %v2263 = vld [vmem:[%s4 + $0xc8] sm:$0xff]
    %v2264 = vld [vmem:[%s4 + $0xd0] sm:$0xff]
    %v2265 = vld [vmem:[%s4 + $0xd8] sm:$0xff]
    %v2266 = vld [vmem:[%s4 + $0xe0] sm:$0xff]
    %v2267 = vld [vmem:[%s4 + $0xe8] sm:$0xff]
    %v2268 = vld [vmem:[%s4 + $0xf0] sm:$0xff]
    %v2269 = vld [vmem:[%s4 + $0xf8] sm:$0xff]
    %v2270 = vld [vmem:[%s4 + $0x100] sm:$0xff]
    %v2271 = vld [vmem:[%s4 + $0x108] sm:$0xff]
    %v2272 = vld [vmem:[%s4 + $0x110] sm:$0xff]
    %v2273 = vld [vmem:[%s4 + $0x118] sm:$0xff]
    %v2274 = vld [vmem:[%s4 + $0x120] sm:$0xff]
    %v2275 = vld [vmem:[%s4 + $0x128] sm:$0xff]
    %v2276 = vld [vmem:[%s4 + $0x130] sm:$0xff]
    %v2277 = vld [vmem:[%s4 + $0x138] sm:$0xff]
    %v2278 = vld [vmem:[%s4 + $0x140] sm:$0xff]
    %v2279 = vld [vmem:[%s4 + $0x148] sm:$0xff]
    %v2280 = vld [vmem:[%s4 + $0x150] sm:$0xff]
    %v2281 = vld [vmem:[%s4 + $0x158] sm:$0xff]
    %v2282 = vld [vmem:[%s4 + $0x160] sm:$0xff]
    %v2283 = vld [vmem:[%s4 + $0x168] sm:$0xff]
    %v2284 = vld [vmem:[%s4 + $0x170] sm:$0xff]
    %v2285 = vld [vmem:[%s4 + $0x178] sm:$0xff]
    %v2286 = vld [vmem:[%s4 + $0x180] sm:$0xff]
    %v2287 = vld [vmem:[%s4 + $0x188] sm:$0xff]
    %v2288 = vld [vmem:[%s4 + $0x190] sm:$0xff]
    %v2289 = vld [vmem:[%s4 + $0x198] sm:$0xff]
    %v2290 = vld [vmem:[%s4 + $0x1a0] sm:$0xff]
    %v2291 = vld [vmem:[%s4 + $0x1a8] sm:$0xff]
    %v2292 = vld [vmem:[%s4 + $0x1b0] sm:$0xff]
    %v2293 = vld [vmem:[%s4 + $0x1b8] sm:$0xff]
    %v2294 = vld [vmem:[%s4 + $0x1c0] sm:$0xff]
    %v2295 = vld [vmem:[%s4 + $0x1c8] sm:$0xff]
    %v2296 = vld [vmem:[%s4 + $0x1d0] sm:$0xff]
    %v2297 = vld [vmem:[%s4 + $0x1d8] sm:$0xff]
    %v2298 = vld [vmem:[%s4 + $0x1e0] sm:$0xff]
    %v2299 = vld [vmem:[%s4 + $0x1e8] sm:$0xff]
    %v2300 = vld [vmem:[%s4 + $0x1f0] sm:$0xff]
    %v2301 = vld [vmem:[%s4 + $0x1f8] sm:$0xff]
    %v2302 = vld [vmem:[%s4 + $0x200] sm:$0xff]
    %v2303 = vld [vmem:[%s4 + $0x208] sm:$0xff]
    %v2304 = vld [vmem:[%s4 + $0x210] sm:$0xff]
    %v2305 = vld [vmem:[%s4 + $0x218] sm:$0xff]
    %v2306 = vld [vmem:[%s4 + $0x220] sm:$0xff]
    %v2307 = vld [vmem:[%s4 + $0x228] sm:$0xff]
    %v2308 = vld [vmem:[%s4 + $0x230] sm:$0xff]
    %v2309 = vld [vmem:[%s4 + $0x238] sm:$0xff]
    %v2310 = vld [vmem:[%s4 + $0x240] sm:$0xff]
    %v2311 = vld [vmem:[%s4 + $0x248] sm:$0xff]
    %v2312 = vld [vmem:[%s4 + $0x250] sm:$0xff]
    %v2313 = vld [vmem:[%s4 + $0x258] sm:$0xff]
    %v2314 = vld [vmem:[%s4 + $0x260] sm:$0xff]
    %v2315 = vld [vmem:[%s4 + $0x268] sm:$0xff]
    %v2316 = vld [vmem:[%s4 + $0x270] sm:$0xff]
    %v2317 = vld [vmem:[%s4 + $0x278] sm:$0xff]
    %v2318 = vld [vmem:[%s4 + $0x280] sm:$0xff]
    %v2319 = vld [vmem:[%s4 + $0x288] sm:$0xff]
    %v2320 = vld [vmem:[%s4 + $0x290] sm:$0xff]
    %v2321 = vld [vmem:[%s4 + $0x298] sm:$0xff]
    %v2322 = vld [vmem:[%s4 + $0x2a0] sm:$0xff]
    %v2323 = vld [vmem:[%s4 + $0x2a8] sm:$0xff]
    %v2324 = vld [vmem:[%s4 + $0x2b0] sm:$0xff]
    %v2325 = vld [vmem:[%s4 + $0x2b8] sm:$0xff]
    %v2326 = vld [vmem:[%s4 + $0x2c0] sm:$0xff]
    %v2327 = vld [vmem:[%s4 + $0x2c8] sm:$0xff]
    %v2328 = vld [vmem:[%s4 + $0x2d0] sm:$0xff]
    %v2329 = vld [vmem:[%s4 + $0x2d8] sm:$0xff]
    %v2330 = vld [vmem:[%s4 + $0x2e0] sm:$0xff]
    %v2331 = vld [vmem:[%s4 + $0x2e8] sm:$0xff]
    %v2332 = vld [vmem:[%s4 + $0x2f0] sm:$0xff]
    %v2333 = vld [vmem:[%s4 + $0x2f8] sm:$0xff]
    %v2334 = vld [vmem:[%s4 + $0x300] sm:$0xff]
    %v2335 = vld [vmem:[%s4 + $0x308] sm:$0xff]
    %v2336 = vld [vmem:[%s4 + $0x310] sm:$0xff]
    %v2337 = vld [vmem:[%s4 + $0x318] sm:$0xff]
    %v2338 = vld [vmem:[%s4 + $0x320] sm:$0xff]
    %v2339 = vld [vmem:[%s4 + $0x328] sm:$0xff]
    %v2340 = vld [vmem:[%s4 + $0x330] sm:$0xff]
    %v2341 = vld [vmem:[%s4 + $0x338] sm:$0xff]
    %v2342 = vld [vmem:[%s4 + $0x340] sm:$0xff]
    %v2343 = vld [vmem:[%s4 + $0x348] sm:$0xff]
    %v2344 = vld [vmem:[%s4 + $0x350] sm:$0xff]
    %v2345 = vld [vmem:[%s4 + $0x358] sm:$0xff]
    %v2346 = vld [vmem:[%s4 + $0x360] sm:$0xff]
    %v2347 = vld [vmem:[%s4 + $0x368] sm:$0xff]
    %v2348 = vld [vmem:[%s4 + $0x370] sm:$0xff]
    %v2349 = vld [vmem:[%s4 + $0x378] sm:$0xff]
    %v2350 = vld [vmem:[%s4 + $0x380] sm:$0xff]
    %v2351 = vld [vmem:[%s4 + $0x388] sm:$0xff]
    %v2352 = vld [vmem:[%s4 + $0x390] sm:$0xff]
    %v2353 = vld [vmem:[%s4 + $0x398] sm:$0xff]
    %v2354 = vld [vmem:[%s4 + $0x3a0] sm:$0xff]
    %v2355 = vld [vmem:[%s4 + $0x3a8] sm:$0xff]
    %v2356 = vld [vmem:[%s4 + $0x3b0] sm:$0xff]
    %v2357 = vld [vmem:[%s4 + $0x3b8] sm:$0xff]
    %v2358 = vld [vmem:[%s4 + $0x3c0] sm:$0xff]
    %v2359 = vld [vmem:[%s4 + $0x3c8] sm:$0xff]
    %v2360 = vld [vmem:[%s4 + $0x3d0] sm:$0xff]
    %v2361 = vld [vmem:[%s4 + $0x3d8] sm:$0xff]
    %v2362 = vld [vmem:[%s4 + $0x3e0] sm:$0xff]
    %v2363 = vld [vmem:[%s4 + $0x3e8] sm:$0xff]
    %v2364 = vld [vmem:[%s4 + $0x3f0] sm:$0xff]
    %v2365 = vld [vmem:[%s4 + $0x3f8] sm:$0xff]
    %v2366 = vld [vmem:[%s5] sm:$0x1]
    %v2368 = vlaneseq
    %v2369 = vshrl.u32 %v2368, 7
    %v2370 = vsub.s32 0, %v2369
    %v2371 = vrot.slane %v2366, %v2370
    %2373 = vmatprep.subr.mxu0 0.0
    %2374 = vmatpush1.msra.mxu0 %v2253
    %2375 = vmatprep.subr.mxu0 0.0
    %2376 = vmatpush1.msra.mxu0 %v2252
    %2377 = vmatprep.subr.mxu0 0.0
    %2378 = vmatpush1.msra.mxu0 %v2251
    %2379 = vmatprep.subr.mxu0 0.0
    %2380 = vmatpush1.msra.mxu0 %v2250
    %2381 = vmatprep.subr.mxu0 0.0
    %2382 = vmatpush1.msra.mxu0 %v2249
    %2383 = vmatprep.subr.mxu0 0.0
    %2384 = vmatpush1.msra.mxu0 %v2248
    %2385 = vmatprep.subr.mxu0 0.0
    %2386 = vmatpush1.msra.mxu0 %v2247
    %2387 = vmatprep.subr.mxu0 0.0
    %2388 = vmatpush1.msra.mxu0 %v2246
    %2389 = vmatprep.subr.mxu0 0.0
    %2390 = vmatpush1.msra.mxu0 %v2245
    %2391 = vmatprep.subr.mxu0 0.0
    %2392 = vmatpush1.msra.mxu0 %v2244
    %2393 = vmatprep.subr.mxu0 0.0
    %2394 = vmatpush1.msra.mxu0 %v2243
    %2395 = vmatprep.subr.mxu0 0.0
    %2396 = vmatpush1.msra.mxu0 %v2242
    %2397 = vmatprep.subr.mxu0 0.0
    %2398 = vmatpush1.msra.mxu0 %v2241
    %2399 = vmatprep.subr.mxu0 0.0
    %2400 = vmatpush1.msra.mxu0 %v2240
    %2401 = vmatprep.subr.mxu0 0.0
    %2402 = vmatpush1.msra.mxu0 %v2239
    %2403 = vmatprep.subr.mxu0 0.0
    %2404 = vmatpush1.msra.mxu0 %v2238
    %2405 = vmatprep.subr.mxu0 0.0
    %2406 = vmatpush2.msra.mxu0 %v2269
    %2407 = vmatprep.subr.mxu0 0.0
    %2408 = vmatpush2.msra.mxu0 %v2268
    %2409 = vmatprep.subr.mxu0 0.0
    %2410 = vmatpush2.msra.mxu0 %v2267
    %2411 = vmatprep.subr.mxu0 0.0
    %2412 = vmatpush2.msra.mxu0 %v2266
    %2413 = vmatprep.subr.mxu0 0.0
    %2414 = vmatpush2.msra.mxu0 %v2265
    %2415 = vmatprep.subr.mxu0 0.0
    %2416 = vmatpush2.msra.mxu0 %v2264
    %2417 = vmatprep.subr.mxu0 0.0
    %2418 = vmatpush2.msra.mxu0 %v2263
    %2419 = vmatprep.subr.mxu0 0.0
    %2420 = vmatpush2.msra.mxu0 %v2262
    %2421 = vmatprep.subr.mxu0 0.0
    %2422 = vmatpush2.msra.mxu0 %v2261
    %2423 = vmatprep.subr.mxu0 0.0
    %2424 = vmatpush2.msra.mxu0 %v2260
    %2425 = vmatprep.subr.mxu0 0.0
    %2426 = vmatpush2.msra.mxu0 %v2259
    %2427 = vmatprep.subr.mxu0 0.0
    %2428 = vmatpush2.msra.mxu0 %v2258
    %2429 = vmatprep.subr.mxu0 0.0
    %2430 = vmatpush2.msra.mxu0 %v2257
    %2431 = vmatprep.subr.mxu0 0.0
    %2432 = vmatpush2.msra.mxu0 %v2256
    %2433 = vmatprep.subr.mxu0 0.0
    %2434 = vmatpush2.msra.mxu0 %v2255
    %2435 = vmatprep.subr.mxu0 0.0
    %2436 = vmatpush2.msra.mxu0 %v2254
    %2437 = vmatprep.mubr.f32.mxu0 %v2231
    %2438 = vmatmul.mubr.f32.gmra.mxu0 %v2230
    %v2439 = vpop.f32.mrf.mxu0
    %v2440 = vadd.f32 %v2371, %v2439
    %v2441 = vpop.f32.mrf.mxu0
    %2442 = vdwg.mxu0
    %2443 = vmatprep.subr.mxu0 0.0
    %2444 = vmatpush1.msra.mxu0 %v2285
    %2445 = vmatprep.subr.mxu0 0.0
    %2446 = vmatpush1.msra.mxu0 %v2284
    %2447 = vmatprep.subr.mxu0 0.0
    %2448 = vmatpush1.msra.mxu0 %v2283
    %2449 = vmatprep.subr.mxu0 0.0
    %2450 = vmatpush1.msra.mxu0 %v2282
    %2451 = vmatprep.subr.mxu0 0.0
    %2452 = vmatpush1.msra.mxu0 %v2281
    %2453 = vmatprep.subr.mxu0 0.0
    %2454 = vmatpush1.msra.mxu0 %v2280
    %2455 = vmatprep.subr.mxu0 0.0
    %2456 = vmatpush1.msra.mxu0 %v2279
    %2457 = vmatprep.subr.mxu0 0.0
    %2458 = vmatpush1.msra.mxu0 %v2278
    %2459 = vmatprep.subr.mxu0 0.0
    %2460 = vmatpush1.msra.mxu0 %v2277
    %2461 = vmatprep.subr.mxu0 0.0
    %2462 = vmatpush1.msra.mxu0 %v2276
    %2463 = vmatprep.subr.mxu0 0.0
    %2464 = vmatpush1.msra.mxu0 %v2275
    %2465 = vmatprep.subr.mxu0 0.0
    %2466 = vmatpush1.msra.mxu0 %v2274
    %2467 = vmatprep.subr.mxu0 0.0
    %2468 = vmatpush1.msra.mxu0 %v2273
    %2469 = vmatprep.subr.mxu0 0.0
    %2470 = vmatpush1.msra.mxu0 %v2272
    %2471 = vmatprep.subr.mxu0 0.0
    %2472 = vmatpush1.msra.mxu0 %v2271
    %2473 = vmatprep.subr.mxu0 0.0
    %2474 = vmatpush1.msra.mxu0 %v2270
    %2475 = vmatprep.subr.mxu0 0.0
    %2476 = vmatpush2.msra.mxu0 %v2301
    %2477 = vmatprep.subr.mxu0 0.0
    %2478 = vmatpush2.msra.mxu0 %v2300
    %2479 = vmatprep.subr.mxu0 0.0
    %2480 = vmatpush2.msra.mxu0 %v2299
    %2481 = vmatprep.subr.mxu0 0.0
    %2482 = vmatpush2.msra.mxu0 %v2298
    %2483 = vmatprep.subr.mxu0 0.0
    %2484 = vmatpush2.msra.mxu0 %v2297
    %2485 = vmatprep.subr.mxu0 0.0
    %2486 = vmatpush2.msra.mxu0 %v2296
    %2487 = vmatprep.subr.mxu0 0.0
    %2488 = vmatpush2.msra.mxu0 %v2295
    %2489 = vmatprep.subr.mxu0 0.0
    %2490 = vmatpush2.msra.mxu0 %v2294
    %2491 = vmatprep.subr.mxu0 0.0
    %2492 = vmatpush2.msra.mxu0 %v2293
    %2493 = vmatprep.subr.mxu0 0.0
    %2494 = vmatpush2.msra.mxu0 %v2292
    %2495 = vmatprep.subr.mxu0 0.0
    %2496 = vmatpush2.msra.mxu0 %v2291
    %2497 = vmatprep.subr.mxu0 0.0
    %2498 = vmatpush2.msra.mxu0 %v2290
    %2499 = vmatprep.subr.mxu0 0.0
    %2500 = vmatpush2.msra.mxu0 %v2289
    %2501 = vmatprep.subr.mxu0 0.0
    %2502 = vmatpush2.msra.mxu0 %v2288
    %2503 = vmatprep.subr.mxu0 0.0
    %2504 = vmatpush2.msra.mxu0 %v2287
    %2505 = vmatprep.subr.mxu0 0.0
    %2506 = vmatpush2.msra.mxu0 %v2286
    %2507 = vmatprep.mubr.f32.mxu0 %v2233
    %2508 = vmatmul.mubr.f32.gmra.mxu0 %v2232
    %v2509 = vpop.f32.mrf.mxu0
    %v2510 = vadd.f32 %v2440, %v2509
    %v2511 = vpop.f32.mrf.mxu0
    %2512 = vdwg.mxu0
    %2513 = vmatprep.subr.mxu0 0.0
    %2514 = vmatpush1.msra.mxu0 %v2317
    %2515 = vmatprep.subr.mxu0 0.0
    %2516 = vmatpush1.msra.mxu0 %v2316
    %2517 = vmatprep.subr.mxu0 0.0
    %2518 = vmatpush1.msra.mxu0 %v2315
    %2519 = vmatprep.subr.mxu0 0.0
    %2520 = vmatpush1.msra.mxu0 %v2314
    %2521 = vmatprep.subr.mxu0 0.0
    %2522 = vmatpush1.msra.mxu0 %v2313
    %2523 = vmatprep.subr.mxu0 0.0
    %2524 = vmatpush1.msra.mxu0 %v2312
    %2525 = vmatprep.subr.mxu0 0.0
    %2526 = vmatpush1.msra.mxu0 %v2311
    %2527 = vmatprep.subr.mxu0 0.0
    %2528 = vmatpush1.msra.mxu0 %v2310
    %2529 = vmatprep.subr.mxu0 0.0
    %2530 = vmatpush1.msra.mxu0 %v2309
    %2531 = vmatprep.subr.mxu0 0.0
    %2532 = vmatpush1.msra.mxu0 %v2308
    %2533 = vmatprep.subr.mxu0 0.0
    %2534 = vmatpush1.msra.mxu0 %v2307
    %2535 = vmatprep.subr.mxu0 0.0
    %2536 = vmatpush1.msra.mxu0 %v2306
    %2537 = vmatprep.subr.mxu0 0.0
    %2538 = vmatpush1.msra.mxu0 %v2305
    %2539 = vmatprep.subr.mxu0 0.0
    %2540 = vmatpush1.msra.mxu0 %v2304
    %2541 = vmatprep.subr.mxu0 0.0
    %2542 = vmatpush1.msra.mxu0 %v2303
    %2543 = vmatprep.subr.mxu0 0.0
    %2544 = vmatpush1.msra.mxu0 %v2302
    %2545 = vmatprep.subr.mxu0 0.0
    %2546 = vmatpush2.msra.mxu0 %v2333
    %2547 = vmatprep.subr.mxu0 0.0
    %2548 = vmatpush2.msra.mxu0 %v2332
    %2549 = vmatprep.subr.mxu0 0.0
    %2550 = vmatpush2.msra.mxu0 %v2331
    %2551 = vmatprep.subr.mxu0 0.0
    %2552 = vmatpush2.msra.mxu0 %v2330
    %2553 = vmatprep.subr.mxu0 0.0
    %2554 = vmatpush2.msra.mxu0 %v2329
    %2555 = vmatprep.subr.mxu0 0.0
    %2556 = vmatpush2.msra.mxu0 %v2328
    %2557 = vmatprep.subr.mxu0 0.0
    %2558 = vmatpush2.msra.mxu0 %v2327
    %2559 = vmatprep.subr.mxu0 0.0
    %2560 = vmatpush2.msra.mxu0 %v2326
    %2561 = vmatprep.subr.mxu0 0.0
    %2562 = vmatpush2.msra.mxu0 %v2325
    %2563 = vmatprep.subr.mxu0 0.0
    %2564 = vmatpush2.msra.mxu0 %v2324
    %2565 = vmatprep.subr.mxu0 0.0
    %2566 = vmatpush2.msra.mxu0 %v2323
    %2567 = vmatprep.subr.mxu0 0.0
    %2568 = vmatpush2.msra.mxu0 %v2322
    %2569 = vmatprep.subr.mxu0 0.0
    %2570 = vmatpush2.msra.mxu0 %v2321
    %2571 = vmatprep.subr.mxu0 0.0
    %2572 = vmatpush2.msra.mxu0 %v2320
    %2573 = vmatprep.subr.mxu0 0.0
    %2574 = vmatpush2.msra.mxu0 %v2319
    %2575 = vmatprep.subr.mxu0 0.0
    %2576 = vmatpush2.msra.mxu0 %v2318
    %2577 = vmatprep.mubr.f32.mxu0 %v2235
    %2578 = vmatmul.mubr.f32.gmra.mxu0 %v2234
    %v2579 = vpop.f32.mrf.mxu0
    %v2580 = vadd.f32 %v2510, %v2579
    %v2581 = vpop.f32.mrf.mxu0
    %2582 = vdwg.mxu0
    %2583 = vmatprep.subr.mxu0 0.0
    %2584 = vmatpush1.msra.mxu0 %v2349
    %2585 = vmatprep.subr.mxu0 0.0
    %2586 = vmatpush1.msra.mxu0 %v2348
    %2587 = vmatprep.subr.mxu0 0.0
    %2588 = vmatpush1.msra.mxu0 %v2347
    %2589 = vmatprep.subr.mxu0 0.0
    %2590 = vmatpush1.msra.mxu0 %v2346
    %2591 = vmatprep.subr.mxu0 0.0
    %2592 = vmatpush1.msra.mxu0 %v2345
    %2593 = vmatprep.subr.mxu0 0.0
    %2594 = vmatpush1.msra.mxu0 %v2344
    %2595 = vmatprep.subr.mxu0 0.0
    %2596 = vmatpush1.msra.mxu0 %v2343
    %2597 = vmatprep.subr.mxu0 0.0
    %2598 = vmatpush1.msra.mxu0 %v2342
    %2599 = vmatprep.subr.mxu0 0.0
    %2600 = vmatpush1.msra.mxu0 %v2341
    %2601 = vmatprep.subr.mxu0 0.0
    %2602 = vmatpush1.msra.mxu0 %v2340
    %2603 = vmatprep.subr.mxu0 0.0
    %2604 = vmatpush1.msra.mxu0 %v2339
    %2605 = vmatprep.subr.mxu0 0.0
    %2606 = vmatpush1.msra.mxu0 %v2338
    %2607 = vmatprep.subr.mxu0 0.0
    %2608 = vmatpush1.msra.mxu0 %v2337
    %2609 = vmatprep.subr.mxu0 0.0
    %2610 = vmatpush1.msra.mxu0 %v2336
    %2611 = vmatprep.subr.mxu0 0.0
    %2612 = vmatpush1.msra.mxu0 %v2335
    %2613 = vmatprep.subr.mxu0 0.0
    %2614 = vmatpush1.msra.mxu0 %v2334
    %2615 = vmatprep.subr.mxu0 0.0
    %2616 = vmatpush2.msra.mxu0 %v2365
    %2617 = vmatprep.subr.mxu0 0.0
    %2618 = vmatpush2.msra.mxu0 %v2364
    %2619 = vmatprep.subr.mxu0 0.0
    %2620 = vmatpush2.msra.mxu0 %v2363
    %2621 = vmatprep.subr.mxu0 0.0
    %2622 = vmatpush2.msra.mxu0 %v2362
    %2623 = vmatprep.subr.mxu0 0.0
    %2624 = vmatpush2.msra.mxu0 %v2361
    %2625 = vmatprep.subr.mxu0 0.0
    %2626 = vmatpush2.msra.mxu0 %v2360
    %2627 = vmatprep.subr.mxu0 0.0
    %2628 = vmatpush2.msra.mxu0 %v2359
    %2629 = vmatprep.subr.mxu0 0.0
    %2630 = vmatpush2.msra.mxu0 %v2358
    %2631 = vmatprep.subr.mxu0 0.0
    %2632 = vmatpush2.msra.mxu0 %v2357
    %2633 = vmatprep.subr.mxu0 0.0
    %2634 = vmatpush2.msra.mxu0 %v2356
    %2635 = vmatprep.subr.mxu0 0.0
    %2636 = vmatpush2.msra.mxu0 %v2355
    %2637 = vmatprep.subr.mxu0 0.0
    %2638 = vmatpush2.msra.mxu0 %v2354
    %2639 = vmatprep.subr.mxu0 0.0
    %2640 = vmatpush2.msra.mxu0 %v2353
    %2641 = vmatprep.subr.mxu0 0.0
    %2642 = vmatpush2.msra.mxu0 %v2352
    %2643 = vmatprep.subr.mxu0 0.0
    %2644 = vmatpush2.msra.mxu0 %v2351
    %2645 = vmatprep.subr.mxu0 0.0
    %2646 = vmatpush2.msra.mxu0 %v2350
    %2647 = vmatprep.mubr.f32.mxu0 %v2237
    %2648 = vmatmul.mubr.f32.gmra.mxu0 %v2236
    %v2649 = vpop.f32.mrf.mxu0
    %v2650 = vadd.f32 %v2580, %v2649
    %v2651 = vpop.f32.mrf.mxu0
    %2652 = vdwg.mxu0
    %v2653 = vld [vmem:[%s6] sm:$0x1]
    %v2655 = vlaneseq
    %v2656 = vshrl.u32 %v2655, 7
    %v2657 = vsub.s32 0, %v2656
    %v2658 = vrot.slane %v2653, %v2657
    %v2660 = vmul.f32 %v2650, %v2658
    %v2661 = vld [vmem:[%s7] sm:$0x1]
    %v2663 = vlaneseq
    %v2664 = vshrl.u32 %v2663, 7
    %v2665 = vsub.s32 0, %v2664
    %v2666 = vrot.slane %v2661, %v2665
    %v2668 = vadd.f32 %v2660, %v2666
    %v2669 = vxor.u32 %v2668, 2147483648
    %v2670 = vmul.f32 %v2669, 1.442695
    %v2671 = vpow.pop %v2670
    %v2672 = vadd.f32 %v2671, 1.0
    %v2673 = vrcp.pop %v2672
    %v2674 = vmul.f32 1.0, %v2673
    %2675 = vst [vmem:[#allocation3] sm:$0xff] %v2674
    // Predicated region
    $region34: #{news_rec_forward.1} parent=1 // pred_check
      _
    $region35: #{news_rec_forward.1} parent=1 // pred_check_branch
      %2677 = sbr.rel (0) target = $region37
    $region36: #{news_rec_forward.1} parent=1 // pred_region
      %s2679 = ssub.s32 128, 128
      %2680 = vsyncadd [#allocation4], %s2679
      %s2682 = sshll.u32 [#allocation3], 4
      %s2683 = int_to_ptr.vmem [resolvable:$true] %s2682
      %2685 = dma.vmem_to_hbm [thread:$0]  %s2683, 128, %s8, [#allocation4]
    $region37: #{news_rec_forward.1} parent=1 // pred_fallthru
      _
    // Predicated region
    $region38: #{news_rec_forward.1} parent=1 // pred_check
      _
    $region39: #{news_rec_forward.1} parent=1 // pred_check_branch
      %2687 = sbr.rel (0) target = $region41
    $region40: #{news_rec_forward.1} parent=1 // pred_region
      %2688 = dma.done [#allocation4], 128
    $region41: #{news_rec_forward.1} parent=1 // pred_fallthru
      _
    %2689 = vsyncpa [#allocation4], 1

</llo_original>
